<compile_context>
chip_gen: v5e
topology: v5e:2x2
jax: 0.10.0
libtpu: 0.0.40
codegen_flags: <defaults>
</compile_context>

<pallas_src>
import functools

import jax
import jax.numpy as jnp
from jax import lax
from jax.experimental import pallas as pl
from jax.experimental.pallas import tpu as pltpu


LANE = 128      # TPU lane width; channel dims are padded up to this
CO_TILE = 128   # output-channel tile (lane-dense output blocks)


def _round_up(x, m):
    return (x + m - 1) // m * m


def _hasp_kernel(x_ref, w_ref, bias_ref, o_ref, xpad_ref, patch_ref, *,
                 H, W, Ho, Wo, Cin, Cin_pad, K, dilation, padding):
    """Grid step = (batch index n, output-channel tile co).

    x_ref:     (1, H, W, Cin)          unpadded input image (f32)
    w_ref:     (K*K*Cin_pad, CO_TILE)  BN-folded, zero-padded weights (bf16)
    bias_ref:  (1, CO_TILE)            BN bias (f32)
    o_ref:     (1, Ho, Wo, CO_TILE)    output tile (f32)
    xpad_ref:  (Hp, Wp, Cin_pad)       spatially+channel zero-padded input (f32)
    patch_ref: (Ho*Wo, K*K*Cin_pad)    im2col patch (bf16), reused across co
    """
    co = pl.program_id(1)

    # The patch only depends on the batch index; co is the innermost
    # ("arbitrary") grid axis, so build it once per image at co == 0.
    @pl.when(co == 0)
    def _build_patch():
        # In-kernel zero padding (spatial pad + channel pad up to lane width).
        # Re-zero every step: scratch contents are undefined on first use per
        # core and the border / channel tail must be exactly zero.
        xpad_ref[...] = jnp.zeros_like(xpad_ref)
        xpad_ref[padding:padding + H, padding:padding + W, 0:Cin] = x_ref[0]

        # im2col: each dilated tap becomes one lane-aligned 128-wide slab of
        # the patch matrix (stores are at lane offsets that are multiples of
        # 128, so they are unmasked full-width stores).
        for kh in range(K):
            for kw in range(K):
                t = kh * K + kw
                tap = xpad_ref[kh * dilation:kh * dilation + Ho,
                               kw * dilation:kw * dilation + Wo, :]
                patch_ref[:, t * Cin_pad:(t + 1) * Cin_pad] = (
                    tap.reshape(Ho * Wo, Cin_pad).astype(patch_ref.dtype))

    # One MXU matmul per (image, Cout tile): bf16 operands, f32 accumulation.
    acc = jnp.dot(patch_ref[...], w_ref[...],
                  preferred_element_type=jnp.float32)        # (Ho*Wo, CO_TILE)

    # Fused BatchNorm (scale already folded into the weights) + ReLU.
    y = jnp.maximum(acc + bias_ref[...], 0.0)
    o_ref[0] = y.reshape(Ho, Wo, CO_TILE).astype(o_ref.dtype)


def hasp_forward(x_nhwc, weight, bn_gamma, bn_beta, bn_mean, bn_var, *,
                 kernel_size, padding, dilation, eps=1e-5):
    """x_nhwc: (N, H, W, Cin) f32. weight: (K*K, Cin, Cout) f32 (flat HWIO)."""
    N, H, W, Cin = x_nhwc.shape
    K = kernel_size
    Cout = weight.shape[-1]

    # Output spatial size (stride=1).
    Ho = H + 2 * padding - dilation * (K - 1)
    Wo = W + 2 * padding - dilation * (K - 1)
    assert Ho > 0 and Wo > 0
    Hp, Wp = H + 2 * padding, W + 2 * padding

    Cin_pad = _round_up(Cin, LANE)       # channels fill the lane dimension
    Cout_pad = _round_up(Cout, CO_TILE)  # lane-dense accumulator / output
    n_co = Cout_pad // CO_TILE
    KKC = K * K * Cin_pad

    # Fold BN (inference form) into the conv weights; keep only a bias vector.
    scale = bn_gamma / jnp.sqrt(bn_var + eps)                 # (Cout,)
    bias = bn_beta - bn_mean * scale                          # (Cout,)
    w_folded = weight.astype(jnp.float32) * scale             # (K*K, Cin, Cout)
    w_pad = jnp.zeros((K * K, Cin_pad, Cout_pad), jnp.float32)
    w_pad = w_pad.at[:, :Cin, :Cout].set(w_folded)
    w_pad = w_pad.reshape(KKC, Cout_pad).astype(jnp.bfloat16)  # MXU operand
    bias_pad = jnp.zeros((1, Cout_pad), jnp.float32).at[0, :Cout].set(bias)

    kernel = functools.partial(
        _hasp_kernel, H=H, W=W, Ho=Ho, Wo=Wo, Cin=Cin, Cin_pad=Cin_pad,
        K=K, dilation=dilation, padding=padding)

    out = pl.pallas_call(
        kernel,
        out_shape=jax.ShapeDtypeStruct((N, Ho, Wo, Cout_pad), jnp.float32),
        grid_spec=pltpu.PrefetchScalarGridSpec(
            num_scalar_prefetch=0,
            grid=(N, n_co),
            in_specs=[
                pl.BlockSpec((1, H, W, Cin), lambda n, co: (n, 0, 0, 0)),
                # Weights / bias are constant across the batch axis.  For
                # production-sized weights, add pipeline_mode=pl.Buffered(1)
                # to avoid double-buffering them in VMEM.
                pl.BlockSpec((KKC, CO_TILE), lambda n, co: (0, co)),
                pl.BlockSpec((1, CO_TILE), lambda n, co: (0, co)),
            ],
            out_specs=pl.BlockSpec((1, Ho, Wo, CO_TILE),
                                   lambda n, co: (n, 0, 0, co)),
            scratch_shapes=[
                pltpu.VMEM((Hp, Wp, Cin_pad), jnp.float32),    # padded input
                pltpu.VMEM((Ho * Wo, KKC), jnp.bfloat16),      # im2col patch
            ],
        ),
        compiler_params=pltpu.CompilerParams(
            dimension_semantics=("parallel", "arbitrary"),
            vmem_limit_bytes=32 * 1024 * 1024,
        ),
    )(x_nhwc, w_pad, bias_pad)

    return out[..., :Cout]


@functools.partial(jax.jit, static_argnames=("kernel_size", "padding", "dilation"))
def hasp_module_apply(x_nchw, params, *, kernel_size, padding, dilation):
    """PyTorch-facing wrapper: NCHW in, NCHW out.

    # TODO(synk): if the surrounding model stays NCHW, fuse this layout change
    # into neighbouring ops (or tile channels directly from NCHW) instead of a
    # standalone transpose pass over HBM.
    """
    x_nhwc = jnp.transpose(x_nchw, (0, 2, 3, 1))
    y_nhwc = hasp_forward(
        x_nhwc, params["weight"], params["gamma"], params["beta"],
        params["running_mean"], params["running_var"],
        kernel_size=kernel_size, padding=padding, dilation=dilation)
    return jnp.transpose(y_nhwc, (0, 3, 1, 2))


def init_params(key, inplanes, planes, kernel_size):
    """Deterministic init mirroring the module's _init_weight."""
    K = kernel_size
    fan_in = inplanes * K * K
    std = (2.0 / fan_in) ** 0.5           # kaiming_normal_, fan_in, relu gain
    # Weight laid out as (KH*KW, Cin, Cout) == flattened HWIO.
    w = std * jax.random.normal(key, (K * K, inplanes, planes), dtype=jnp.float32)
    return {
        "weight": w,
        "gamma": jnp.ones((planes,), jnp.float32),
        "beta": jnp.zeros((planes,), jnp.float32),
        "running_mean": jnp.zeros((planes,), jnp.float32),
        "running_var": jnp.ones((planes,), jnp.float32),
    }


def _reference(x_nchw, params, *, kernel_size, padding, dilation, eps=1e-5,
               mxu_dtype=jnp.float32):
    """Pure-JAX reference (lax dilated conv + BN + ReLU).

    mxu_dtype=bfloat16 mirrors the kernel's MXU operand rounding (f32 accum),
    mxu_dtype=float32 is the exact fp32 module semantics.
    """
    K = kernel_size
    Cin = x_nchw.shape[1]
    Cout = params["weight"].shape[-1]
    scale = params["gamma"] / jnp.sqrt(params["running_var"] + eps)
    bias = params["beta"] - params["running_mean"] * scale
    x_nhwc = jnp.transpose(x_nchw, (0, 2, 3, 1))
    w_hwio = (params["weight"] * scale).reshape(K, K, Cin, Cout).astype(mxu_dtype)
    y = lax.conv_general_dilated(
        x_nhwc.astype(mxu_dtype), w_hwio, window_strides=(1, 1),
        padding=[(padding, padding), (padding, padding)],
        rhs_dilation=(dilation, dilation),
        dimension_numbers=("NHWC", "HWIO", "NHWC"),
        preferred_element_type=jnp.float32)
    y = jnp.maximum(y + bias, 0.0)
    return jnp.transpose(y, (0, 3, 1, 2))


if __name__ == "__main__":
    # Small HASP config: 3x3 atrous conv, dilation=2, padding=2 (same spatial).
    N, Cin, H, W = 2, 4, 16, 16
    Cout = 8
    kernel_size, padding, dilation = 3, 2, 2

    key = jax.random.PRNGKey(0)
    k_x, k_w = jax.random.split(key)
    x = jax.random.normal(k_x, (N, Cin, H, W), dtype=jnp.float32)  # NCHW
    params = init_params(k_w, Cin, Cout, kernel_size)

    out = hasp_module_apply(x, params, kernel_size=kernel_size,
                            padding=padding, dilation=dilation)
    out = jax.block_until_ready(out)
    assert out.shape == (N, Cout, H, W)

    # Tight check against a reference with the same bf16 MXU operand rounding.
    ref_bf16 = _reference(x, params, kernel_size=kernel_size, padding=padding,
                          dilation=dilation, mxu_dtype=jnp.bfloat16)
    assert jnp.allclose(out, ref_bf16, atol=2e-3, rtol=2e-3), (
        float(jnp.max(jnp.abs(out - ref_bf16))))

    # Loose sanity check against the exact fp32 module semantics.
    ref_f32 = _reference(x, params, kernel_size=kernel_size, padding=padding,
                         dilation=dilation, mxu_dtype=jnp.float32)
    assert jnp.allclose(out, ref_f32, atol=5e-2, rtol=5e-2), (
        float(jnp.max(jnp.abs(out - ref_f32))))

    print("KERNEL_OK")
</pallas_src>

<mosaic_0001>
module attributes {stable_mosaic.version = 11 : i64} {
  func.func @_hasp_kernel(%arg0: i32, %arg1: i32, %arg2: memref<1x16x16x4xf32, #tpu.memory_space<vmem>>, %arg3: memref<1152x128xbf16, #tpu.memory_space<vmem>>, %arg4: memref<1x128xf32, #tpu.memory_space<vmem>>, %arg5: memref<1x16x16x128xf32, #tpu.memory_space<vmem>>, %arg6: memref<20x20x128xf32, #tpu.memory_space<vmem>>, %arg7: memref<256x1152xbf16, #tpu.memory_space<vmem>>) attributes {dimension_semantics = [#tpu.dimension_semantics<parallel>, #tpu.dimension_semantics<arbitrary>], iteration_bounds = array<i64: 2, 1>, scalar_prefetch = 0 : i64, scratch_operands = 2 : i64, tpu.core_type = #tpu.core_type<tc>, window_params = [{transform_indices = @transform_0, window_bounds = array<i64: 1, 16, 16, 4>}, {transform_indices = @transform_1, window_bounds = array<i64: 1152, 128>}, {transform_indices = @transform_2, window_bounds = array<i64: 1, 128>}, {transform_indices = @transform_3, window_bounds = array<i64: 1, 16, 16, 128>}]} {
    %c0_i32 = arith.constant 0 : i32
    %0 = arith.cmpi eq, %arg1, %c0_i32 : i32
    %1 = arith.extui %0 : i1 to i32
    %c0_i32_0 = arith.constant 0 : i32
    %2 = arith.cmpi ne, %1, %c0_i32_0 : i32
    scf.if %2 {
      %cst_11 = arith.constant 0.000000e+00 : f32
      %15 = vector.broadcast %cst_11 : f32 to vector<20x20x128xf32>
      %c0_12 = arith.constant 0 : index
      %c0_13 = arith.constant 0 : index
      %c0_14 = arith.constant 0 : index
      %16 = vector.load %arg6[%c0_12, %c0_13, %c0_14] : memref<20x20x128xf32, #tpu.memory_space<vmem>>, vector<20x20x128xf32>
      tpu.vector_store %arg6[%c0_12, %c0_13, %c0_14], %15 {strides = array<i32>} : memref<20x20x128xf32, #tpu.memory_space<vmem>>, vector<20x20x128xf32>,
      %c0_15 = arith.constant 0 : index
      %c0_16 = arith.constant 0 : index
      %c0_17 = arith.constant 0 : index
      %c0_18 = arith.constant 0 : index
      %17 = vector.load %arg2[%c0_15, %c0_16, %c0_17, %c0_18] : memref<1x16x16x4xf32, #tpu.memory_space<vmem>>, vector<1x16x16x4xf32>
      %18 = vector.shape_cast %17 : vector<1x16x16x4xf32> to vector<16x16x4xf32>
      %c2 = arith.constant 2 : index
      %c2_19 = arith.constant 2 : index
      %c0_20 = arith.constant 0 : index
      %19 = vector.load %arg6[%c2, %c2_19, %c0_20] : memref<20x20x128xf32, #tpu.memory_space<vmem>>, vector<16x16x4xf32>
      tpu.vector_store %arg6[%c2, %c2_19, %c0_20], %18 {strides = array<i32>} : memref<20x20x128xf32, #tpu.memory_space<vmem>>, vector<16x16x4xf32>,
      %c0_21 = arith.constant 0 : index
      %c0_22 = arith.constant 0 : index
      %c0_23 = arith.constant 0 : index
      %20 = vector.load %arg6[%c0_21, %c0_22, %c0_23] : memref<20x20x128xf32, #tpu.memory_space<vmem>>, vector<16x16x128xf32>
      %21 = vector.shape_cast %20 : vector<16x16x128xf32> to vector<256x128xf32>
      %22 = arith.truncf %21 : vector<256x128xf32> to vector<256x128xbf16>
      %c0_24 = arith.constant 0 : index
      %c0_25 = arith.constant 0 : index
      %23 = vector.load %arg7[%c0_24, %c0_25] : memref<256x1152xbf16, #tpu.memory_space<vmem>>, vector<256x128xbf16>
      tpu.vector_store %arg7[%c0_24, %c0_25], %22 {strides = array<i32>} : memref<256x1152xbf16, #tpu.memory_space<vmem>>, vector<256x128xbf16>,
      %c0_26 = arith.constant 0 : index
      %c2_27 = arith.constant 2 : index
      %c0_28 = arith.constant 0 : index
      %24 = vector.load %arg6[%c0_26, %c2_27, %c0_28] : memref<20x20x128xf32, #tpu.memory_space<vmem>>, vector<16x16x128xf32>
      %25 = vector.shape_cast %24 : vector<16x16x128xf32> to vector<256x128xf32>
      %26 = arith.truncf %25 : vector<256x128xf32> to vector<256x128xbf16>
      %c0_29 = arith.constant 0 : index
      %c128 = arith.constant 128 : index
      %27 = vector.load %arg7[%c0_29, %c128] : memref<256x1152xbf16, #tpu.memory_space<vmem>>, vector<256x128xbf16>
      tpu.vector_store %arg7[%c0_29, %c128], %26 {strides = array<i32>} : memref<256x1152xbf16, #tpu.memory_space<vmem>>, vector<256x128xbf16>,
      %c0_30 = arith.constant 0 : index
      %c4 = arith.constant 4 : index
      %c0_31 = arith.constant 0 : index
      %28 = vector.load %arg6[%c0_30, %c4, %c0_31] : memref<20x20x128xf32, #tpu.memory_space<vmem>>, vector<16x16x128xf32>
      %29 = vector.shape_cast %28 : vector<16x16x128xf32> to vector<256x128xf32>
      %30 = arith.truncf %29 : vector<256x128xf32> to vector<256x128xbf16>
      %c0_32 = arith.constant 0 : index
      %c256 = arith.constant 256 : index
      %31 = vector.load %arg7[%c0_32, %c256] : memref<256x1152xbf16, #tpu.memory_space<vmem>>, vector<256x128xbf16>
      tpu.vector_store %arg7[%c0_32, %c256], %30 {strides = array<i32>} : memref<256x1152xbf16, #tpu.memory_space<vmem>>, vector<256x128xbf16>,
      %c2_33 = arith.constant 2 : index
      %c0_34 = arith.constant 0 : index
      %c0_35 = arith.constant 0 : index
      %32 = vector.load %arg6[%c2_33, %c0_34, %c0_35] : memref<20x20x128xf32, #tpu.memory_space<vmem>>, vector<16x16x128xf32>
      %33 = vector.shape_cast %32 : vector<16x16x128xf32> to vector<256x128xf32>
      %34 = arith.truncf %33 : vector<256x128xf32> to vector<256x128xbf16>
      %c0_36 = arith.constant 0 : index
      %c384 = arith.constant 384 : index
      %35 = vector.load %arg7[%c0_36, %c384] : memref<256x1152xbf16, #tpu.memory_space<vmem>>, vector<256x128xbf16>
      tpu.vector_store %arg7[%c0_36, %c384], %34 {strides = array<i32>} : memref<256x1152xbf16, #tpu.memory_space<vmem>>, vector<256x128xbf16>,
      %c2_37 = arith.constant 2 : index
      %c2_38 = arith.constant 2 : index
      %c0_39 = arith.constant 0 : index
      %36 = vector.load %arg6[%c2_37, %c2_38, %c0_39] : memref<20x20x128xf32, #tpu.memory_space<vmem>>, vector<16x16x128xf32>
      %37 = vector.shape_cast %36 : vector<16x16x128xf32> to vector<256x128xf32>
      %38 = arith.truncf %37 : vector<256x128xf32> to vector<256x128xbf16>
      %c0_40 = arith.constant 0 : index
      %c512 = arith.constant 512 : index
      %39 = vector.load %arg7[%c0_40, %c512] : memref<256x1152xbf16, #tpu.memory_space<vmem>>, vector<256x128xbf16>
      tpu.vector_store %arg7[%c0_40, %c512], %38 {strides = array<i32>} : memref<256x1152xbf16, #tpu.memory_space<vmem>>, vector<256x128xbf16>,
      %c2_41 = arith.constant 2 : index
      %c4_42 = arith.constant 4 : index
      %c0_43 = arith.constant 0 : index
      %40 = vector.load %arg6[%c2_41, %c4_42, %c0_43] : memref<20x20x128xf32, #tpu.memory_space<vmem>>, vector<16x16x128xf32>
      %41 = vector.shape_cast %40 : vector<16x16x128xf32> to vector<256x128xf32>
      %42 = arith.truncf %41 : vector<256x128xf32> to vector<256x128xbf16>
      %c0_44 = arith.constant 0 : index
      %c640 = arith.constant 640 : index
      %43 = vector.load %arg7[%c0_44, %c640] : memref<256x1152xbf16, #tpu.memory_space<vmem>>, vector<256x128xbf16>
      tpu.vector_store %arg7[%c0_44, %c640], %42 {strides = array<i32>} : memref<256x1152xbf16, #tpu.memory_space<vmem>>, vector<256x128xbf16>,
      %c4_45 = arith.constant 4 : index
      %c0_46 = arith.constant 0 : index
      %c0_47 = arith.constant 0 : index
      %44 = vector.load %arg6[%c4_45, %c0_46, %c0_47] : memref<20x20x128xf32, #tpu.memory_space<vmem>>, vector<16x16x128xf32>
      %45 = vector.shape_cast %44 : vector<16x16x128xf32> to vector<256x128xf32>
      %46 = arith.truncf %45 : vector<256x128xf32> to vector<256x128xbf16>
      %c0_48 = arith.constant 0 : index
      %c768 = arith.constant 768 : index
      %47 = vector.load %arg7[%c0_48, %c768] : memref<256x1152xbf16, #tpu.memory_space<vmem>>, vector<256x128xbf16>
      tpu.vector_store %arg7[%c0_48, %c768], %46 {strides = array<i32>} : memref<256x1152xbf16, #tpu.memory_space<vmem>>, vector<256x128xbf16>,
      %c4_49 = arith.constant 4 : index
      %c2_50 = arith.constant 2 : index
      %c0_51 = arith.constant 0 : index
      %48 = vector.load %arg6[%c4_49, %c2_50, %c0_51] : memref<20x20x128xf32, #tpu.memory_space<vmem>>, vector<16x16x128xf32>
      %49 = vector.shape_cast %48 : vector<16x16x128xf32> to vector<256x128xf32>
      %50 = arith.truncf %49 : vector<256x128xf32> to vector<256x128xbf16>
      %c0_52 = arith.constant 0 : index
      %c896 = arith.constant 896 : index
      %51 = vector.load %arg7[%c0_52, %c896] : memref<256x1152xbf16, #tpu.memory_space<vmem>>, vector<256x128xbf16>
      tpu.vector_store %arg7[%c0_52, %c896], %50 {strides = array<i32>} : memref<256x1152xbf16, #tpu.memory_space<vmem>>, vector<256x128xbf16>,
      %c4_53 = arith.constant 4 : index
      %c4_54 = arith.constant 4 : index
      %c0_55 = arith.constant 0 : index
      %52 = vector.load %arg6[%c4_53, %c4_54, %c0_55] : memref<20x20x128xf32, #tpu.memory_space<vmem>>, vector<16x16x128xf32>
      %53 = vector.shape_cast %52 : vector<16x16x128xf32> to vector<256x128xf32>
      %54 = arith.truncf %53 : vector<256x128xf32> to vector<256x128xbf16>
      %c0_56 = arith.constant 0 : index
      %c1024 = arith.constant 1024 : index
      %55 = vector.load %arg7[%c0_56, %c1024] : memref<256x1152xbf16, #tpu.memory_space<vmem>>, vector<256x128xbf16>
      tpu.vector_store %arg7[%c0_56, %c1024], %54 {strides = array<i32>} : memref<256x1152xbf16, #tpu.memory_space<vmem>>, vector<256x128xbf16>,
    } else {
    }
    %c0 = arith.constant 0 : index
    %c0_1 = arith.constant 0 : index
    %3 = vector.load %arg7[%c0, %c0_1] : memref<256x1152xbf16, #tpu.memory_space<vmem>>, vector<256x1152xbf16>
    %c0_2 = arith.constant 0 : index
    %c0_3 = arith.constant 0 : index
    %4 = vector.load %arg3[%c0_2, %c0_3] : memref<1152x128xbf16, #tpu.memory_space<vmem>>, vector<1152x128xbf16>
    %cst = arith.constant dense<0.000000e+00> : vector<256x128xf32>
    %5 = tpu.matmul %3, %4, %cst {dimension_numbers = #tpu.dot_dimension_numbers<[1], [0], [0], [1], [0, 0, 1, 1], [], []>} : vector<256x1152xbf16>, vector<1152x128xbf16>, vector<256x128xf32> -> vector<256x128xf32>
    %c0_4 = arith.constant 0 : index
    %c0_5 = arith.constant 0 : index
    %6 = vector.load %arg4[%c0_4, %c0_5] : memref<1x128xf32, #tpu.memory_space<vmem>>, vector<1x128xf32>
    %7 = vector.broadcast %6 : vector<1x128xf32> to vector<256x128xf32>
    %8 = arith.addf %5, %7 : vector<256x128xf32>
    %cst_6 = arith.constant 0.000000e+00 : f32
    %9 = vector.broadcast %cst_6 : f32 to vector<256x128xf32>
    %10 = arith.maximumf %8, %9 : vector<256x128xf32>
    %11 = vector.shape_cast %10 : vector<256x128xf32> to vector<16x16x128xf32>
    %c0_7 = arith.constant 0 : index
    %c0_8 = arith.constant 0 : index
    %c0_9 = arith.constant 0 : index
    %c0_10 = arith.constant 0 : index
    %12 = vector.load %arg5[%c0_7, %c0_8, %c0_9, %c0_10] : memref<1x16x16x128xf32, #tpu.memory_space<vmem>>, vector<1x16x16x128xf32>
    %13 = vector.shape_cast %12 : vector<1x16x16x128xf32> to vector<16x16x128xf32>
    %14 = vector.shape_cast %11 : vector<16x16x128xf32> to vector<1x16x16x128xf32>
    tpu.vector_store %arg5[%c0_7, %c0_8, %c0_9, %c0_10], %14 {strides = array<i32>} : memref<1x16x16x128xf32, #tpu.memory_space<vmem>>, vector<1x16x16x128xf32>,
    return
  }
  func.func @transform_0(%arg0: i32, %arg1: i32) -> (i32, i32, i32, i32) {
    %c0_i32 = arith.constant 0 : i32
    %c0_i32_0 = arith.constant 0 : i32
    %c0_i32_1 = arith.constant 0 : i32
    %c0_i32_2 = arith.constant 0 : i32
    return %arg0, %c0_i32, %c0_i32_0, %c0_i32_1 : i32, i32, i32, i32
  }
  func.func @transform_1(%arg0: i32, %arg1: i32) -> (i32, i32) {
    %c0_i32 = arith.constant 0 : i32
    %c0_i32_0 = arith.constant 0 : i32
    return %c0_i32, %arg1 : i32, i32
  }
  func.func @transform_2(%arg0: i32, %arg1: i32) -> (i32, i32) {
    %c0_i32 = arith.constant 0 : i32
    %c0_i32_0 = arith.constant 0 : i32
    return %c0_i32, %arg1 : i32, i32
  }
  func.func @transform_3(%arg0: i32, %arg1: i32) -> (i32, i32, i32, i32) {
    %c0_i32 = arith.constant 0 : i32
    %c0_i32_0 = arith.constant 0 : i32
    %c0_i32_1 = arith.constant 0 : i32
    return %arg0, %c0_i32, %c0_i32_0, %arg1 : i32, i32, i32, i32
  }
}

</mosaic_0001>

<llo_original>
// kernel: hasp_module_apply.1
$region0: #{hasp_module_apply.1}
  #allocation0 [shape = 'u32[]', space=smem, size = 0x4, offset = 0x4, fixed_abs, tag = 'smem constant byte address 0x4 - core index']
  #allocation1 [shape = 'u32[72,128]{1,0:T(1,128)}', space=vmem, size = 0x9000, scoped, tag = 'internal scratch']
  #allocation2 [shape = 'f32[20,20,128]{2,1,0:T(8,128)}', space=vmem, size = 0x3c000, scoped, tag = 'scratch operand']
  #allocation3 [shape = 'bf16[256,1152]{1,0:T(8,128)(2,1)}', space=vmem, size = 0x90000, scoped, tag = 'scratch operand']
  %s0 = inlined_call_operand.vmem [shape: f32[2,16,16,4], index: 0, kind: input, shape index: {}]
  %s1 = inlined_call_operand.vmem [shape: bf16[1152,128], index: 1, kind: input, shape index: {}]
  %s2 = inlined_call_operand.vmem [shape: f32[1,128], index: 2, kind: input, shape index: {}]
  %s3 = inlined_call_operand.vmem [shape: f32[2,16,16,128], index: 3, kind: output, shape index: {}]
  %s4 = sld [smem:[#allocation0]]
  $region49: #{hasp_module_apply.1} parent=0
    _
  %s6 = ssub.s32 1, %s4
  %s7 = scalar_select 0, %s6, %s4
  loop: start=0, step=1, limit=4
  $region2: #{hasp_module_apply.1} parent=0 // loop_pre_header
    _
  $region3: #{hasp_module_apply.1} parent=0 // loop_header
    %s9 = sphi 0, %s13
    %p10 = scmp.ge.s32.totalorder %s9, 4
    %s16 = sphi 0, %s28
    %s17 = sphi 0, %s24
    %s18 = sphi 0, %s16
    %s19 = sphi 0, %s17
    %s20 = sphi 0, %s18
    %s21 = sphi 0, %s19
    %s31 = sphi 0, %s33
    %s34 = sphi 0, %s31
    %s35 = sphi 0, %s34
    %s51 = sphi 0, %s35
    %s57 = sphi 0, %s59
    %s60 = sphi 0, %s57
    %s61 = sphi 0, %s60
    %s77 = sphi 0, %s61
    %s83 = sphi 0, %s85
    %s86 = sphi 0, %s83
    %s87 = sphi 0, %s86
    %s103 = sphi 0, %s87
    %s111 = sphi 0, %s113
    %s114 = sphi 0, %s111
    %s115 = sphi 0, %s114
    %s131 = sphi 0, %s115
  $region4: #{hasp_module_apply.1} parent=0 // loop_header_branch
    %12 = sbr.rel (%p10) target = $region8
  $region5: #{hasp_module_apply.1} parent=0 // loop_body
    %s14 = ssub.s32 %s9, 1
    %s15 = ssub.s32 %s9, 2
    %s22 = sadd.s32 1, %s17
    %p23 = scmp.ge.s32.totalorder %s22, 1
    %s24 = scalar_select %p23, 0, %s22
    %s25 = sadd.s32 1, %s16
    %s26 = scalar_select %p23, %s25, %s16
    %p27 = scmp.ge.s32.totalorder %s26, 2
    %s28 = scalar_select %p27, 0, %s26
    %s29 = ssub.s32 %s16, %s28
    %p30 = scmp.eq.s32.totalorder %s29, 0
    %s32 = sadd.s32 %s31, 1
    %s33 = scalar_select %p30, %s31, %s32
    %p36 = pneg %p30
    %p37 = scmp.eq.s32.totalorder %s9, 1
    %p38 = por %p36, %p37
    %p39 = scmp.ne.s32.totalorder %s31, %s34
    %p40 = scmp.eq.s32.totalorder %s9, 0
    %p41 = por %p39, %p40
    %p42 = scmp.ne.s32.totalorder %s31, %s34
    %p43 = scmp.eq.s32.totalorder %s14, 1
    %p44 = por %p42, %p43
    %p45 = scmp.ne.s32.totalorder %s34, %s35
    %p46 = scmp.eq.s32.totalorder %s14, 0
    %p47 = por %p45, %p46
    %p48 = scmp.ne.s32.totalorder %s34, %s35
    %p49 = scmp.eq.s32.totalorder %s15, 1
    %p50 = por %p48, %p49
    %p52 = scmp.ne.s32.totalorder %s35, %s51
    %p53 = scmp.eq.s32.totalorder %s15, 0
    %p54 = por %p52, %p53
    %s55 = ssub.s32 %s17, %s24
    %p56 = scmp.eq.s32.totalorder %s55, 0
    %s58 = sadd.s32 %s57, 1
    %s59 = scalar_select %p56, %s57, %s58
    %p62 = pneg %p56
    %p63 = scmp.eq.s32.totalorder %s9, 1
    %p64 = por %p62, %p63
    %p65 = scmp.ne.s32.totalorder %s57, %s60
    %p66 = scmp.eq.s32.totalorder %s9, 0
    %p67 = por %p65, %p66
    %p68 = scmp.ne.s32.totalorder %s57, %s60
    %p69 = scmp.eq.s32.totalorder %s14, 1
    %p70 = por %p68, %p69
    %p71 = scmp.ne.s32.totalorder %s60, %s61
    %p72 = scmp.eq.s32.totalorder %s14, 0
    %p73 = por %p71, %p72
    %p74 = scmp.ne.s32.totalorder %s60, %s61
    %p75 = scmp.eq.s32.totalorder %s15, 1
    %p76 = por %p74, %p75
    %p78 = scmp.ne.s32.totalorder %s61, %s77
    %p79 = scmp.eq.s32.totalorder %s15, 0
    %p80 = por %p78, %p79
    %s81 = ssub.s32 %s17, %s24
    %p82 = scmp.eq.s32.totalorder %s81, 0
    %s84 = sadd.s32 %s83, 1
    %s85 = scalar_select %p82, %s83, %s84
    %p88 = pneg %p82
    %p89 = scmp.eq.s32.totalorder %s9, 1
    %p90 = por %p88, %p89
    %p91 = scmp.ne.s32.totalorder %s83, %s86
    %p92 = scmp.eq.s32.totalorder %s9, 0
    %p93 = por %p91, %p92
    %p94 = scmp.ne.s32.totalorder %s83, %s86
    %p95 = scmp.eq.s32.totalorder %s14, 1
    %p96 = por %p94, %p95
    %p97 = scmp.ne.s32.totalorder %s86, %s87
    %p98 = scmp.eq.s32.totalorder %s14, 0
    %p99 = por %p97, %p98
    %p100 = scmp.ne.s32.totalorder %s86, %s87
    %p101 = scmp.eq.s32.totalorder %s15, 1
    %p102 = por %p100, %p101
    %p104 = scmp.ne.s32.totalorder %s87, %s103
    %p105 = scmp.eq.s32.totalorder %s15, 0
    %p106 = por %p104, %p105
    %s107 = ssub.s32 %s16, %s28
    %s108 = ssub.s32 %s17, %s24
    %s109 = sor.u32 %s107, %s108
    %p110 = scmp.eq.s32.totalorder %s109, 0
    %s112 = sadd.s32 %s111, 1
    %s113 = scalar_select %p110, %s111, %s112
    %p116 = pneg %p110
    %p117 = scmp.eq.s32.totalorder %s9, 1
    %p118 = por %p116, %p117
    %p119 = scmp.ne.s32.totalorder %s111, %s114
    %p120 = scmp.eq.s32.totalorder %s9, 0
    %p121 = por %p119, %p120
    %p122 = scmp.ne.s32.totalorder %s111, %s114
    %p123 = scmp.eq.s32.totalorder %s14, 1
    %p124 = por %p122, %p123
    %p125 = scmp.ne.s32.totalorder %s114, %s115
    %p126 = scmp.eq.s32.totalorder %s14, 0
    %p127 = por %p125, %p126
    %p128 = scmp.ne.s32.totalorder %s114, %s115
    %p129 = scmp.eq.s32.totalorder %s15, 1
    %p130 = por %p128, %p129
    %p132 = scmp.ne.s32.totalorder %s115, %s131
    %p133 = scmp.eq.s32.totalorder %s15, 0
    %p134 = por %p132, %p133
    %p135 = scmp.le.s32.totalorder 1, %s9
    %p136 = scmp.lt.s32.totalorder %s9, 3
    %p137 = pnand %p135, %p136
    %p138 = pneg %p137
    // Predicated region
    $region9: #{hasp_module_apply.1} parent=5 // pred_check
      _
    $region10: #{hasp_module_apply.1} parent=5 // pred_check_branch
      %140 = sbr.rel (%p137) target = $region12
    $region11: #{hasp_module_apply.1} parent=5 // pred_region
      %s141 = ssub.s32 %s9, 1
      // Predicated region
      $region13: #{hasp_module_apply.1} parent=11 // pred_check
        %p142 = pneg %p73
      $region14: #{hasp_module_apply.1} parent=11 // pred_check_branch
        %144 = sbr.rel (%p142) target = $region16
      $region15: #{hasp_module_apply.1} parent=11 // pred_region
        %p145 = scmp.lt.s32.totalorder %s19, 0
        %s146 = scalar_select %p145, %s19, 0
        %s147 = smul.addr %s146, 4
        %s148 = scalar_lea.vmem %s1, %s147
      $region16: #{hasp_module_apply.1} parent=11 // pred_fallthru
        _
      // Predicated region
      $region17: #{hasp_module_apply.1} parent=11 // pred_check
        %p149 = pneg %p99
      $region18: #{hasp_module_apply.1} parent=11 // pred_check_branch
        %151 = sbr.rel (%p149) target = $region20
      $region19: #{hasp_module_apply.1} parent=11 // pred_region
        %p152 = scmp.lt.s32.totalorder %s19, 0
        %s153 = scalar_select %p152, %s19, 0
        %s154 = scalar_lea.vmem %s2, %s153
      $region20: #{hasp_module_apply.1} parent=11 // pred_fallthru
        _
    $region12: #{hasp_module_apply.1} parent=5 // pred_fallthru
      _
    %p155 = scmp.lt.s32.totalorder %s9, 2
    // Predicated region
    $region21: #{hasp_module_apply.1} parent=5 // pred_check
      %p156 = pneg %p155
    $region22: #{hasp_module_apply.1} parent=5 // pred_check_branch
      %158 = sbr.rel (%p156) target = $region24
    $region23: #{hasp_module_apply.1} parent=5 // pred_region
      // Predicated region
      $region25: #{hasp_module_apply.1} parent=23 // pred_check
        %p159 = pneg %p41
      $region26: #{hasp_module_apply.1} parent=23 // pred_check_branch
        %161 = sbr.rel (%p159) target = $region28
      $region27: #{hasp_module_apply.1} parent=23 // pred_region
        %p162 = scmp.lt.s32.totalorder %s16, 1
        %s163 = scalar_select %p162, %s16, 1
        %s164 = smul.addr %s163, 32
        %s165 = smul.addr %s164, 8
        %s166 = scalar_lea.vmem %s0, %s165
      $region28: #{hasp_module_apply.1} parent=23 // pred_fallthru
        _
    $region24: #{hasp_module_apply.1} parent=5 // pred_fallthru
      _
    %p167 = scmp.le.s32.totalorder 1, %s9
    %p168 = scmp.lt.s32.totalorder %s9, 3
    %p169 = pnand %p167, %p168
    %p170 = pneg %p169
    // Predicated region
    $region29: #{hasp_module_apply.1} parent=5 // pred_check
      _
    $region30: #{hasp_module_apply.1} parent=5 // pred_check_branch
      %172 = sbr.rel (%p169) target = $region32
    $region31: #{hasp_module_apply.1} parent=5 // pred_region
      %s173 = ssub.s32 %s9, 1
      %p174 = scmp.lt.s32.totalorder %s18, 1
      %s175 = scalar_select %p174, %s18, 1
      %s176 = smul.addr %s175, 32
      %s177 = smul.addr %s176, 8
      %s178 = scalar_lea.vmem %s0, %s177
      %p179 = pneg %p47
      %p180 = pneg %p44
      %p181 = scmp.lt.s32.totalorder %s19, 0
      %s182 = scalar_select %p181, %s19, 0
      %s183 = smul.addr %s182, 4
      %s184 = scalar_lea.vmem %s1, %s183
      %p185 = pneg %p73
      %p186 = pneg %p70
      %p187 = scmp.lt.s32.totalorder %s19, 0
      %s188 = scalar_select %p187, %s19, 0
      %s189 = scalar_lea.vmem %s2, %s188
      %p190 = pneg %p99
      %p191 = pneg %p96
      %p192 = pneg %p127
      %p193 = pneg %p124
      %p194 = scmp.lt.s32.totalorder %s18, 1
      %s195 = scalar_select %p194, %s18, 1
      %p196 = scmp.lt.s32.totalorder %s19, 0
      %s197 = scalar_select %p196, %s19, 0
      %s198 = smul.addr %s195, 32
      %s199 = sadd.s32 %s197, %s198
      %s200 = smul.addr %s199, 8
      %s201 = scalar_lea.vmem %s3, %s200
      %p202 = scmp.lt.s32.totalorder %s18, 1
      %s203 = scalar_select %p202, %s18, 1
      %s204 = smul.addr %s203, 32
      %s205 = smul.addr %s204, 8
      %s206 = scalar_lea.vmem %s0, %s205
      %p207 = scmp.lt.s32.totalorder %s19, 0
      %s208 = scalar_select %p207, %s19, 0
      %s209 = smul.addr %s208, 4
      %s210 = scalar_lea.vmem %s1, %s209
      %p211 = scmp.lt.s32.totalorder %s19, 0
      %s212 = scalar_select %p211, %s19, 0
      %s213 = scalar_lea.vmem %s2, %s212
      %p214 = scmp.lt.s32.totalorder %s18, 1
      %s215 = scalar_select %p214, %s18, 1
      %p216 = scmp.lt.s32.totalorder %s19, 0
      %s217 = scalar_select %p216, %s19, 0
      %s218 = smul.addr %s215, 32
      %s219 = sadd.s32 %s217, %s218
      %s220 = smul.addr %s219, 8
      %s221 = scalar_lea.vmem %s3, %s220
      %p222 = scmp.eq.s32.totalorder %s19, 0
      // Predicated region
      $region33: #{hasp_module_apply.1} parent=31 // pred_check
        %p223 = pneg %p222
      $region34: #{hasp_module_apply.1} parent=31 // pred_check_branch
        %225 = sbr.rel (%p223) target = $region36
      $region35: #{hasp_module_apply.1} parent=31 // pred_region
        %226 = vst [vmem:[#allocation2] sm:$0xff] 0.0
        %227 = vst [vmem:[#allocation2 + $0x8] sm:$0xff] 0.0
        %228 = vst [vmem:[#allocation2 + $0x10] sm:$0xf] 0.0
        %229 = vst [vmem:[#allocation2 + $0x18] sm:$0xff] 0.0
        %230 = vst [vmem:[#allocation2 + $0x20] sm:$0xff] 0.0
        %231 = vst [vmem:[#allocation2 + $0x28] sm:$0xf] 0.0
        %232 = vst [vmem:[#allocation2 + $0x30] sm:$0xff] 0.0
        %233 = vst [vmem:[#allocation2 + $0x38] sm:$0xff] 0.0
        %234 = vst [vmem:[#allocation2 + $0x40] sm:$0xf] 0.0
        %235 = vst [vmem:[#allocation2 + $0x48] sm:$0xff] 0.0
        %236 = vst [vmem:[#allocation2 + $0x50] sm:$0xff] 0.0
        %237 = vst [vmem:[#allocation2 + $0x58] sm:$0xf] 0.0
        %238 = vst [vmem:[#allocation2 + $0x60] sm:$0xff] 0.0
        %239 = vst [vmem:[#allocation2 + $0x68] sm:$0xff] 0.0
        %240 = vst [vmem:[#allocation2 + $0x70] sm:$0xf] 0.0
        %241 = vst [vmem:[#allocation2 + $0x78] sm:$0xff] 0.0
        %242 = vst [vmem:[#allocation2 + $0x80] sm:$0xff] 0.0
        %243 = vst [vmem:[#allocation2 + $0x88] sm:$0xf] 0.0
        %244 = vst [vmem:[#allocation2 + $0x90] sm:$0xff] 0.0
        %245 = vst [vmem:[#allocation2 + $0x98] sm:$0xff] 0.0
        %246 = vst [vmem:[#allocation2 + $0xa0] sm:$0xf] 0.0
        %247 = vst [vmem:[#allocation2 + $0xa8] sm:$0xff] 0.0
        %248 = vst [vmem:[#allocation2 + $0xb0] sm:$0xff] 0.0
        %249 = vst [vmem:[#allocation2 + $0xb8] sm:$0xf] 0.0
        %250 = vst [vmem:[#allocation2 + $0xc0] sm:$0xff] 0.0
        %251 = vst [vmem:[#allocation2 + $0xc8] sm:$0xff] 0.0
        %252 = vst [vmem:[#allocation2 + $0xd0] sm:$0xf] 0.0
        %253 = vst [vmem:[#allocation2 + $0xd8] sm:$0xff] 0.0
        %254 = vst [vmem:[#allocation2 + $0xe0] sm:$0xff] 0.0
        %255 = vst [vmem:[#allocation2 + $0xe8] sm:$0xf] 0.0
        %256 = vst [vmem:[#allocation2 + $0xf0] sm:$0xff] 0.0
        %257 = vst [vmem:[#allocation2 + $0xf8] sm:$0xff] 0.0
        %258 = vst [vmem:[#allocation2 + $0x100] sm:$0xf] 0.0
        %259 = vst [vmem:[#allocation2 + $0x108] sm:$0xff] 0.0
        %260 = vst [vmem:[#allocation2 + $0x110] sm:$0xff] 0.0
        %261 = vst [vmem:[#allocation2 + $0x118] sm:$0xf] 0.0
        %262 = vst [vmem:[#allocation2 + $0x120] sm:$0xff] 0.0
        %263 = vst [vmem:[#allocation2 + $0x128] sm:$0xff] 0.0
        %264 = vst [vmem:[#allocation2 + $0x130] sm:$0xf] 0.0
        %265 = vst [vmem:[#allocation2 + $0x138] sm:$0xff] 0.0
        %266 = vst [vmem:[#allocation2 + $0x140] sm:$0xff] 0.0
        %267 = vst [vmem:[#allocation2 + $0x148] sm:$0xf] 0.0
        %268 = vst [vmem:[#allocation2 + $0x150] sm:$0xff] 0.0
        %269 = vst [vmem:[#allocation2 + $0x158] sm:$0xff] 0.0
        %270 = vst [vmem:[#allocation2 + $0x160] sm:$0xf] 0.0
        %271 = vst [vmem:[#allocation2 + $0x168] sm:$0xff] 0.0
        %272 = vst [vmem:[#allocation2 + $0x170] sm:$0xff] 0.0
        %273 = vst [vmem:[#allocation2 + $0x178] sm:$0xf] 0.0
        %274 = vst [vmem:[#allocation2 + $0x180] sm:$0xff] 0.0
        %275 = vst [vmem:[#allocation2 + $0x188] sm:$0xff] 0.0
        %276 = vst [vmem:[#allocation2 + $0x190] sm:$0xf] 0.0
        %277 = vst [vmem:[#allocation2 + $0x198] sm:$0xff] 0.0
        %278 = vst [vmem:[#allocation2 + $0x1a0] sm:$0xff] 0.0
        %279 = vst [vmem:[#allocation2 + $0x1a8] sm:$0xf] 0.0
        %280 = vst [vmem:[#allocation2 + $0x1b0] sm:$0xff] 0.0
        %281 = vst [vmem:[#allocation2 + $0x1b8] sm:$0xff] 0.0
        %282 = vst [vmem:[#allocation2 + $0x1c0] sm:$0xf] 0.0
        %283 = vst [vmem:[#allocation2 + $0x1c8] sm:$0xff] 0.0
        %284 = vst [vmem:[#allocation2 + $0x1d0] sm:$0xff] 0.0
        %285 = vst [vmem:[#allocation2 + $0x1d8] sm:$0xf] 0.0
        %v286 = vld [vmem:[%s206] sm:$0xff]
        %v287 = vld [vmem:[%s206 + $0x8] sm:$0xff]
        %v288 = vld [vmem:[%s206 + $0x10] sm:$0xff]
        %v289 = vld [vmem:[%s206 + $0x18] sm:$0xff]
        %v290 = vld [vmem:[%s206 + $0x20] sm:$0xff]
        %v291 = vld [vmem:[%s206 + $0x28] sm:$0xff]
        %v292 = vld [vmem:[%s206 + $0x30] sm:$0xff]
        %v293 = vld [vmem:[%s206 + $0x38] sm:$0xff]
        %v294 = vld [vmem:[%s206 + $0x40] sm:$0xff]
        %v295 = vld [vmem:[%s206 + $0x48] sm:$0xff]
        %v296 = vld [vmem:[%s206 + $0x50] sm:$0xff]
        %v297 = vld [vmem:[%s206 + $0x58] sm:$0xff]
        %v298 = vld [vmem:[%s206 + $0x60] sm:$0xff]
        %v299 = vld [vmem:[%s206 + $0x68] sm:$0xff]
        %v300 = vld [vmem:[%s206 + $0x70] sm:$0xff]
        %v301 = vld [vmem:[%s206 + $0x78] sm:$0xff]
        %v302 = vld [vmem:[%s206 + $0x80] sm:$0xff]
        %v303 = vld [vmem:[%s206 + $0x88] sm:$0xff]
        %v304 = vld [vmem:[%s206 + $0x90] sm:$0xff]
        %v305 = vld [vmem:[%s206 + $0x98] sm:$0xff]
        %v306 = vld [vmem:[%s206 + $0xa0] sm:$0xff]
        %v307 = vld [vmem:[%s206 + $0xa8] sm:$0xff]
        %v308 = vld [vmem:[%s206 + $0xb0] sm:$0xff]
        %v309 = vld [vmem:[%s206 + $0xb8] sm:$0xff]
        %v310 = vld [vmem:[%s206 + $0xc0] sm:$0xff]
        %v311 = vld [vmem:[%s206 + $0xc8] sm:$0xff]
        %v312 = vld [vmem:[%s206 + $0xd0] sm:$0xff]
        %v313 = vld [vmem:[%s206 + $0xd8] sm:$0xff]
        %v314 = vld [vmem:[%s206 + $0xe0] sm:$0xff]
        %v315 = vld [vmem:[%s206 + $0xe8] sm:$0xff]
        %v316 = vld [vmem:[%s206 + $0xf0] sm:$0xff]
        %v317 = vld [vmem:[%s206 + $0xf8] sm:$0xff]
        %s318 = scalar_lea.vmem [#allocation2], 48
        %vm319 = vcmask 31744
        %320 = vst.msk [vmem:[%s318 + $0x2] sm:$0xff] %vm319, %v286
        %321 = vst.msk [vmem:[%s318 + $0xa] sm:$0xff] %vm319, %v287
        %322 = vst.msk [vmem:[%s318 + $0x1a] sm:$0xff] %vm319, %v288
        %323 = vst.msk [vmem:[%s318 + $0x22] sm:$0xff] %vm319, %v289
        %324 = vst.msk [vmem:[%s318 + $0x32] sm:$0xff] %vm319, %v290
        %325 = vst.msk [vmem:[%s318 + $0x3a] sm:$0xff] %vm319, %v291
        %326 = vst.msk [vmem:[%s318 + $0x4a] sm:$0xff] %vm319, %v292
        %327 = vst.msk [vmem:[%s318 + $0x52] sm:$0xff] %vm319, %v293
        %328 = vst.msk [vmem:[%s318 + $0x62] sm:$0xff] %vm319, %v294
        %329 = vst.msk [vmem:[%s318 + $0x6a] sm:$0xff] %vm319, %v295
        %330 = vst.msk [vmem:[%s318 + $0x7a] sm:$0xff] %vm319, %v296
        %331 = vst.msk [vmem:[%s318 + $0x82] sm:$0xff] %vm319, %v297
        %332 = vst.msk [vmem:[%s318 + $0x92] sm:$0xff] %vm319, %v298
        %333 = vst.msk [vmem:[%s318 + $0x9a] sm:$0xff] %vm319, %v299
        %334 = vst.msk [vmem:[%s318 + $0xaa] sm:$0xff] %vm319, %v300
        %335 = vst.msk [vmem:[%s318 + $0xb2] sm:$0xff] %vm319, %v301
        %336 = vst.msk [vmem:[%s318 + $0xc2] sm:$0xff] %vm319, %v302
        %337 = vst.msk [vmem:[%s318 + $0xca] sm:$0xff] %vm319, %v303
        %338 = vst.msk [vmem:[%s318 + $0xda] sm:$0xff] %vm319, %v304
        %339 = vst.msk [vmem:[%s318 + $0xe2] sm:$0xff] %vm319, %v305
        %340 = vst.msk [vmem:[%s318 + $0xf2] sm:$0xff] %vm319, %v306
        %341 = vst.msk [vmem:[%s318 + $0xfa] sm:$0xff] %vm319, %v307
        %342 = vst.msk [vmem:[%s318 + $0x10a] sm:$0xff] %vm319, %v308
        %343 = vst.msk [vmem:[%s318 + $0x112] sm:$0xff] %vm319, %v309
        %344 = vst.msk [vmem:[%s318 + $0x122] sm:$0xff] %vm319, %v310
        %345 = vst.msk [vmem:[%s318 + $0x12a] sm:$0xff] %vm319, %v311
        %346 = vst.msk [vmem:[%s318 + $0x13a] sm:$0xff] %vm319, %v312
        %347 = vst.msk [vmem:[%s318 + $0x142] sm:$0xff] %vm319, %v313
        %348 = vst.msk [vmem:[%s318 + $0x152] sm:$0xff] %vm319, %v314
        %349 = vst.msk [vmem:[%s318 + $0x15a] sm:$0xff] %vm319, %v315
        %350 = vst.msk [vmem:[%s318 + $0x16a] sm:$0xff] %vm319, %v316
        %351 = vst.msk [vmem:[%s318 + $0x172] sm:$0xff] %vm319, %v317
        %v352 = vld [vmem:[#allocation2] sm:$0xff]
        %v353 = vld [vmem:[#allocation2 + $0x8] sm:$0xff]
        %v354 = vld [vmem:[#allocation2 + $0x18] sm:$0xff]
        %v355 = vld [vmem:[#allocation2 + $0x20] sm:$0xff]
        %v356 = vld [vmem:[#allocation2 + $0x30] sm:$0xff]
        %v357 = vld [vmem:[#allocation2 + $0x38] sm:$0xff]
        %v358 = vld [vmem:[#allocation2 + $0x48] sm:$0xff]
        %v359 = vld [vmem:[#allocation2 + $0x50] sm:$0xff]
        %v360 = vld [vmem:[#allocation2 + $0x60] sm:$0xff]
        %v361 = vld [vmem:[#allocation2 + $0x68] sm:$0xff]
        %v362 = vld [vmem:[#allocation2 + $0x78] sm:$0xff]
        %v363 = vld [vmem:[#allocation2 + $0x80] sm:$0xff]
        %v364 = vld [vmem:[#allocation2 + $0x90] sm:$0xff]
        %v365 = vld [vmem:[#allocation2 + $0x98] sm:$0xff]
        %v366 = vld [vmem:[#allocation2 + $0xa8] sm:$0xff]
        %v367 = vld [vmem:[#allocation2 + $0xb0] sm:$0xff]
        %v368 = vld [vmem:[#allocation2 + $0xc0] sm:$0xff]
        %v369 = vld [vmem:[#allocation2 + $0xc8] sm:$0xff]
        %v370 = vld [vmem:[#allocation2 + $0xd8] sm:$0xff]
        %v371 = vld [vmem:[#allocation2 + $0xe0] sm:$0xff]
        %v372 = vld [vmem:[#allocation2 + $0xf0] sm:$0xff]
        %v373 = vld [vmem:[#allocation2 + $0xf8] sm:$0xff]
        %v374 = vld [vmem:[#allocation2 + $0x108] sm:$0xff]
        %v375 = vld [vmem:[#allocation2 + $0x110] sm:$0xff]
        %v376 = vld [vmem:[#allocation2 + $0x120] sm:$0xff]
        %v377 = vld [vmem:[#allocation2 + $0x128] sm:$0xff]
        %v378 = vld [vmem:[#allocation2 + $0x138] sm:$0xff]
        %v379 = vld [vmem:[#allocation2 + $0x140] sm:$0xff]
        %v380 = vld [vmem:[#allocation2 + $0x150] sm:$0xff]
        %v381 = vld [vmem:[#allocation2 + $0x158] sm:$0xff]
        %v382 = vld [vmem:[#allocation2 + $0x168] sm:$0xff]
        %v383 = vld [vmem:[#allocation2 + $0x170] sm:$0xff]
        %v384 = vpack.c.bf16 %v352, %v352
        %v385 = vpack.c.bf16 %v353, %v353
        %v386 = vpack.c.bf16 %v354, %v354
        %v387 = vpack.c.bf16 %v355, %v355
        %v388 = vpack.c.bf16 %v356, %v356
        %v389 = vpack.c.bf16 %v357, %v357
        %v390 = vpack.c.bf16 %v358, %v358
        %v391 = vpack.c.bf16 %v359, %v359
        %v392 = vpack.c.bf16 %v360, %v360
        %v393 = vpack.c.bf16 %v361, %v361
        %v394 = vpack.c.bf16 %v362, %v362
        %v395 = vpack.c.bf16 %v363, %v363
        %v396 = vpack.c.bf16 %v364, %v364
        %v397 = vpack.c.bf16 %v365, %v365
        %v398 = vpack.c.bf16 %v366, %v366
        %v399 = vpack.c.bf16 %v367, %v367
        %v400 = vpack.c.bf16 %v368, %v368
        %v401 = vpack.c.bf16 %v369, %v369
        %v402 = vpack.c.bf16 %v370, %v370
        %v403 = vpack.c.bf16 %v371, %v371
        %v404 = vpack.c.bf16 %v372, %v372
        %v405 = vpack.c.bf16 %v373, %v373
        %v406 = vpack.c.bf16 %v374, %v374
        %v407 = vpack.c.bf16 %v375, %v375
        %v408 = vpack.c.bf16 %v376, %v376
        %v409 = vpack.c.bf16 %v377, %v377
        %v410 = vpack.c.bf16 %v378, %v378
        %v411 = vpack.c.bf16 %v379, %v379
        %v412 = vpack.c.bf16 %v380, %v380
        %v413 = vpack.c.bf16 %v381, %v381
        %v414 = vpack.c.bf16 %v382, %v382
        %v415 = vpack.c.bf16 %v383, %v383
        %416 = vst [vmem:[#allocation3] sm:$0xf] %v384
        %417 = vst [vmem:[#allocation3 + $0x24] sm:$0xf] %v385
        %418 = vst [vmem:[#allocation3 + $0x48] sm:$0xf] %v386
        %419 = vst [vmem:[#allocation3 + $0x6c] sm:$0xf] %v387
        %420 = vst [vmem:[#allocation3 + $0x90] sm:$0xf] %v388
        %421 = vst [vmem:[#allocation3 + $0xb4] sm:$0xf] %v389
        %422 = vst [vmem:[#allocation3 + $0xd8] sm:$0xf] %v390
        %423 = vst [vmem:[#allocation3 + $0xfc] sm:$0xf] %v391
        %424 = vst [vmem:[#allocation3 + $0x120] sm:$0xf] %v392
        %425 = vst [vmem:[#allocation3 + $0x144] sm:$0xf] %v393
        %426 = vst [vmem:[#allocation3 + $0x168] sm:$0xf] %v394
        %427 = vst [vmem:[#allocation3 + $0x18c] sm:$0xf] %v395
        %428 = vst [vmem:[#allocation3 + $0x1b0] sm:$0xf] %v396
        %429 = vst [vmem:[#allocation3 + $0x1d4] sm:$0xf] %v397
        %430 = vst [vmem:[#allocation3 + $0x1f8] sm:$0xf] %v398
        %431 = vst [vmem:[#allocation3 + $0x21c] sm:$0xf] %v399
        %432 = vst [vmem:[#allocation3 + $0x240] sm:$0xf] %v400
        %433 = vst [vmem:[#allocation3 + $0x264] sm:$0xf] %v401
        %434 = vst [vmem:[#allocation3 + $0x288] sm:$0xf] %v402
        %435 = vst [vmem:[#allocation3 + $0x2ac] sm:$0xf] %v403
        %436 = vst [vmem:[#allocation3 + $0x2d0] sm:$0xf] %v404
        %437 = vst [vmem:[#allocation3 + $0x2f4] sm:$0xf] %v405
        %438 = vst [vmem:[#allocation3 + $0x318] sm:$0xf] %v406
        %439 = vst [vmem:[#allocation3 + $0x33c] sm:$0xf] %v407
        %440 = vst [vmem:[#allocation3 + $0x360] sm:$0xf] %v408
        %441 = vst [vmem:[#allocation3 + $0x384] sm:$0xf] %v409
        %442 = vst [vmem:[#allocation3 + $0x3a8] sm:$0xf] %v410
        %443 = vst [vmem:[#allocation3 + $0x3cc] sm:$0xf] %v411
        %444 = vst [vmem:[#allocation3 + $0x3f0] sm:$0xf] %v412
        %445 = vst [vmem:[#allocation3 + $0x414] sm:$0xf] %v413
        %446 = vst [vmem:[#allocation3 + $0x438] sm:$0xf] %v414
        %447 = vst [vmem:[#allocation3 + $0x45c] sm:$0xf] %v415
        %v448 = vld [vmem:[#allocation2 + $0x2] sm:$0xff]
        %v449 = vld [vmem:[#allocation2 + $0xa] sm:$0xff]
        %v450 = vld [vmem:[#allocation2 + $0x1a] sm:$0xff]
        %v451 = vld [vmem:[#allocation2 + $0x22] sm:$0xff]
        %v452 = vld [vmem:[#allocation2 + $0x32] sm:$0xff]
        %v453 = vld [vmem:[#allocation2 + $0x3a] sm:$0xff]
        %v454 = vld [vmem:[#allocation2 + $0x4a] sm:$0xff]
        %v455 = vld [vmem:[#allocation2 + $0x52] sm:$0xff]
        %v456 = vld [vmem:[#allocation2 + $0x62] sm:$0xff]
        %v457 = vld [vmem:[#allocation2 + $0x6a] sm:$0xff]
        %v458 = vld [vmem:[#allocation2 + $0x7a] sm:$0xff]
        %v459 = vld [vmem:[#allocation2 + $0x82] sm:$0xff]
        %v460 = vld [vmem:[#allocation2 + $0x92] sm:$0xff]
        %v461 = vld [vmem:[#allocation2 + $0x9a] sm:$0xff]
        %v462 = vld [vmem:[#allocation2 + $0xaa] sm:$0xff]
        %v463 = vld [vmem:[#allocation2 + $0xb2] sm:$0xff]
        %v464 = vld [vmem:[#allocation2 + $0xc2] sm:$0xff]
        %v465 = vld [vmem:[#allocation2 + $0xca] sm:$0xff]
        %v466 = vld [vmem:[#allocation2 + $0xda] sm:$0xff]
        %v467 = vld [vmem:[#allocation2 + $0xe2] sm:$0xff]
        %v468 = vld [vmem:[#allocation2 + $0xf2] sm:$0xff]
        %v469 = vld [vmem:[#allocation2 + $0xfa] sm:$0xff]
        %v470 = vld [vmem:[#allocation2 + $0x10a] sm:$0xff]
        %v471 = vld [vmem:[#allocation2 + $0x112] sm:$0xff]
        %v472 = vld [vmem:[#allocation2 + $0x122] sm:$0xff]
        %v473 = vld [vmem:[#allocation2 + $0x12a] sm:$0xff]
        %v474 = vld [vmem:[#allocation2 + $0x13a] sm:$0xff]
        %v475 = vld [vmem:[#allocation2 + $0x142] sm:$0xff]
        %v476 = vld [vmem:[#allocation2 + $0x152] sm:$0xff]
        %v477 = vld [vmem:[#allocation2 + $0x15a] sm:$0xff]
        %v478 = vld [vmem:[#allocation2 + $0x16a] sm:$0xff]
        %v479 = vld [vmem:[#allocation2 + $0x172] sm:$0xff]
        %v480 = vpack.c.bf16 %v448, %v448
        %v481 = vpack.c.bf16 %v449, %v449
        %v482 = vpack.c.bf16 %v450, %v450
        %v483 = vpack.c.bf16 %v451, %v451
        %v484 = vpack.c.bf16 %v452, %v452
        %v485 = vpack.c.bf16 %v453, %v453
        %v486 = vpack.c.bf16 %v454, %v454
        %v487 = vpack.c.bf16 %v455, %v455
        %v488 = vpack.c.bf16 %v456, %v456
        %v489 = vpack.c.bf16 %v457, %v457
        %v490 = vpack.c.bf16 %v458, %v458
        %v491 = vpack.c.bf16 %v459, %v459
        %v492 = vpack.c.bf16 %v460, %v460
        %v493 = vpack.c.bf16 %v461, %v461
        %v494 = vpack.c.bf16 %v462, %v462
        %v495 = vpack.c.bf16 %v463, %v463
        %v496 = vpack.c.bf16 %v464, %v464
        %v497 = vpack.c.bf16 %v465, %v465
        %v498 = vpack.c.bf16 %v466, %v466
        %v499 = vpack.c.bf16 %v467, %v467
        %v500 = vpack.c.bf16 %v468, %v468
        %v501 = vpack.c.bf16 %v469, %v469
        %v502 = vpack.c.bf16 %v470, %v470
        %v503 = vpack.c.bf16 %v471, %v471
        %v504 = vpack.c.bf16 %v472, %v472
        %v505 = vpack.c.bf16 %v473, %v473
        %v506 = vpack.c.bf16 %v474, %v474
        %v507 = vpack.c.bf16 %v475, %v475
        %v508 = vpack.c.bf16 %v476, %v476
        %v509 = vpack.c.bf16 %v477, %v477
        %v510 = vpack.c.bf16 %v478, %v478
        %v511 = vpack.c.bf16 %v479, %v479
        %512 = vst [vmem:[#allocation3 + $0x4] sm:$0xf] %v480
        %513 = vst [vmem:[#allocation3 + $0x28] sm:$0xf] %v481
        %514 = vst [vmem:[#allocation3 + $0x4c] sm:$0xf] %v482
        %515 = vst [vmem:[#allocation3 + $0x70] sm:$0xf] %v483
        %516 = vst [vmem:[#allocation3 + $0x94] sm:$0xf] %v484
        %517 = vst [vmem:[#allocation3 + $0xb8] sm:$0xf] %v485
        %518 = vst [vmem:[#allocation3 + $0xdc] sm:$0xf] %v486
        %519 = vst [vmem:[#allocation3 + $0x100] sm:$0xf] %v487
        %520 = vst [vmem:[#allocation3 + $0x124] sm:$0xf] %v488
        %521 = vst [vmem:[#allocation3 + $0x148] sm:$0xf] %v489
        %522 = vst [vmem:[#allocation3 + $0x16c] sm:$0xf] %v490
        %523 = vst [vmem:[#allocation3 + $0x190] sm:$0xf] %v491
        %524 = vst [vmem:[#allocation3 + $0x1b4] sm:$0xf] %v492
        %525 = vst [vmem:[#allocation3 + $0x1d8] sm:$0xf] %v493
        %526 = vst [vmem:[#allocation3 + $0x1fc] sm:$0xf] %v494
        %527 = vst [vmem:[#allocation3 + $0x220] sm:$0xf] %v495
        %528 = vst [vmem:[#allocation3 + $0x244] sm:$0xf] %v496
        %529 = vst [vmem:[#allocation3 + $0x268] sm:$0xf] %v497
        %530 = vst [vmem:[#allocation3 + $0x28c] sm:$0xf] %v498
        %531 = vst [vmem:[#allocation3 + $0x2b0] sm:$0xf] %v499
        %532 = vst [vmem:[#allocation3 + $0x2d4] sm:$0xf] %v500
        %533 = vst [vmem:[#allocation3 + $0x2f8] sm:$0xf] %v501
        %534 = vst [vmem:[#allocation3 + $0x31c] sm:$0xf] %v502
        %535 = vst [vmem:[#allocation3 + $0x340] sm:$0xf] %v503
        %536 = vst [vmem:[#allocation3 + $0x364] sm:$0xf] %v504
        %537 = vst [vmem:[#allocation3 + $0x388] sm:$0xf] %v505
        %538 = vst [vmem:[#allocation3 + $0x3ac] sm:$0xf] %v506
        %539 = vst [vmem:[#allocation3 + $0x3d0] sm:$0xf] %v507
        %540 = vst [vmem:[#allocation3 + $0x3f4] sm:$0xf] %v508
        %541 = vst [vmem:[#allocation3 + $0x418] sm:$0xf] %v509
        %542 = vst [vmem:[#allocation3 + $0x43c] sm:$0xf] %v510
        %543 = vst [vmem:[#allocation3 + $0x460] sm:$0xf] %v511
        %v544 = vld [vmem:[#allocation2 + $0x4] sm:$0xff]
        %v545 = vld [vmem:[#allocation2 + $0xc] sm:$0xff]
        %v546 = vld [vmem:[#allocation2 + $0x1c] sm:$0xff]
        %v547 = vld [vmem:[#allocation2 + $0x24] sm:$0xff]
        %v548 = vld [vmem:[#allocation2 + $0x34] sm:$0xff]
        %v549 = vld [vmem:[#allocation2 + $0x3c] sm:$0xff]
        %v550 = vld [vmem:[#allocation2 + $0x4c] sm:$0xff]
        %v551 = vld [vmem:[#allocation2 + $0x54] sm:$0xff]
        %v552 = vld [vmem:[#allocation2 + $0x64] sm:$0xff]
        %v553 = vld [vmem:[#allocation2 + $0x6c] sm:$0xff]
        %v554 = vld [vmem:[#allocation2 + $0x7c] sm:$0xff]
        %v555 = vld [vmem:[#allocation2 + $0x84] sm:$0xff]
        %v556 = vld [vmem:[#allocation2 + $0x94] sm:$0xff]
        %v557 = vld [vmem:[#allocation2 + $0x9c] sm:$0xff]
        %v558 = vld [vmem:[#allocation2 + $0xac] sm:$0xff]
        %v559 = vld [vmem:[#allocation2 + $0xb4] sm:$0xff]
        %v560 = vld [vmem:[#allocation2 + $0xc4] sm:$0xff]
        %v561 = vld [vmem:[#allocation2 + $0xcc] sm:$0xff]
        %v562 = vld [vmem:[#allocation2 + $0xdc] sm:$0xff]
        %v563 = vld [vmem:[#allocation2 + $0xe4] sm:$0xff]
        %v564 = vld [vmem:[#allocation2 + $0xf4] sm:$0xff]
        %v565 = vld [vmem:[#allocation2 + $0xfc] sm:$0xff]
        %v566 = vld [vmem:[#allocation2 + $0x10c] sm:$0xff]
        %v567 = vld [vmem:[#allocation2 + $0x114] sm:$0xff]
        %v568 = vld [vmem:[#allocation2 + $0x124] sm:$0xff]
        %v569 = vld [vmem:[#allocation2 + $0x12c] sm:$0xff]
        %v570 = vld [vmem:[#allocation2 + $0x13c] sm:$0xff]
        %v571 = vld [vmem:[#allocation2 + $0x144] sm:$0xff]
        %v572 = vld [vmem:[#allocation2 + $0x154] sm:$0xff]
        %v573 = vld [vmem:[#allocation2 + $0x15c] sm:$0xff]
        %v574 = vld [vmem:[#allocation2 + $0x16c] sm:$0xff]
        %v575 = vld [vmem:[#allocation2 + $0x174] sm:$0xff]
        %v576 = vpack.c.bf16 %v544, %v544
        %v577 = vpack.c.bf16 %v545, %v545
        %v578 = vpack.c.bf16 %v546, %v546
        %v579 = vpack.c.bf16 %v547, %v547
        %v580 = vpack.c.bf16 %v548, %v548
        %v581 = vpack.c.bf16 %v549, %v549
        %v582 = vpack.c.bf16 %v550, %v550
        %v583 = vpack.c.bf16 %v551, %v551
        %v584 = vpack.c.bf16 %v552, %v552
        %v585 = vpack.c.bf16 %v553, %v553
        %v586 = vpack.c.bf16 %v554, %v554
        %v587 = vpack.c.bf16 %v555, %v555
        %v588 = vpack.c.bf16 %v556, %v556
        %v589 = vpack.c.bf16 %v557, %v557
        %v590 = vpack.c.bf16 %v558, %v558
        %v591 = vpack.c.bf16 %v559, %v559
        %v592 = vpack.c.bf16 %v560, %v560
        %v593 = vpack.c.bf16 %v561, %v561
        %v594 = vpack.c.bf16 %v562, %v562
        %v595 = vpack.c.bf16 %v563, %v563
        %v596 = vpack.c.bf16 %v564, %v564
        %v597 = vpack.c.bf16 %v565, %v565
        %v598 = vpack.c.bf16 %v566, %v566
        %v599 = vpack.c.bf16 %v567, %v567
        %v600 = vpack.c.bf16 %v568, %v568
        %v601 = vpack.c.bf16 %v569, %v569
        %v602 = vpack.c.bf16 %v570, %v570
        %v603 = vpack.c.bf16 %v571, %v571
        %v604 = vpack.c.bf16 %v572, %v572
        %v605 = vpack.c.bf16 %v573, %v573
        %v606 = vpack.c.bf16 %v574, %v574
        %v607 = vpack.c.bf16 %v575, %v575
        %608 = vst [vmem:[#allocation3 + $0x8] sm:$0xf] %v576
        %609 = vst [vmem:[#allocation3 + $0x2c] sm:$0xf] %v577
        %610 = vst [vmem:[#allocation3 + $0x50] sm:$0xf] %v578
        %611 = vst [vmem:[#allocation3 + $0x74] sm:$0xf] %v579
        %612 = vst [vmem:[#allocation3 + $0x98] sm:$0xf] %v580
        %613 = vst [vmem:[#allocation3 + $0xbc] sm:$0xf] %v581
        %614 = vst [vmem:[#allocation3 + $0xe0] sm:$0xf] %v582
        %615 = vst [vmem:[#allocation3 + $0x104] sm:$0xf] %v583
        %616 = vst [vmem:[#allocation3 + $0x128] sm:$0xf] %v584
        %617 = vst [vmem:[#allocation3 + $0x14c] sm:$0xf] %v585
        %618 = vst [vmem:[#allocation3 + $0x170] sm:$0xf] %v586
        %619 = vst [vmem:[#allocation3 + $0x194] sm:$0xf] %v587
        %620 = vst [vmem:[#allocation3 + $0x1b8] sm:$0xf] %v588
        %621 = vst [vmem:[#allocation3 + $0x1dc] sm:$0xf] %v589
        %622 = vst [vmem:[#allocation3 + $0x200] sm:$0xf] %v590
        %623 = vst [vmem:[#allocation3 + $0x224] sm:$0xf] %v591
        %624 = vst [vmem:[#allocation3 + $0x248] sm:$0xf] %v592
        %625 = vst [vmem:[#allocation3 + $0x26c] sm:$0xf] %v593
        %626 = vst [vmem:[#allocation3 + $0x290] sm:$0xf] %v594
        %627 = vst [vmem:[#allocation3 + $0x2b4] sm:$0xf] %v595
        %628 = vst [vmem:[#allocation3 + $0x2d8] sm:$0xf] %v596
        %629 = vst [vmem:[#allocation3 + $0x2fc] sm:$0xf] %v597
        %630 = vst [vmem:[#allocation3 + $0x320] sm:$0xf] %v598
        %631 = vst [vmem:[#allocation3 + $0x344] sm:$0xf] %v599
        %632 = vst [vmem:[#allocation3 + $0x368] sm:$0xf] %v600
        %633 = vst [vmem:[#allocation3 + $0x38c] sm:$0xf] %v601
        %634 = vst [vmem:[#allocation3 + $0x3b0] sm:$0xf] %v602
        %635 = vst [vmem:[#allocation3 + $0x3d4] sm:$0xf] %v603
        %636 = vst [vmem:[#allocation3 + $0x3f8] sm:$0xf] %v604
        %637 = vst [vmem:[#allocation3 + $0x41c] sm:$0xf] %v605
        %638 = vst [vmem:[#allocation3 + $0x440] sm:$0xf] %v606
        %639 = vst [vmem:[#allocation3 + $0x464] sm:$0xf] %v607
        %v640 = vld [vmem:[%s318] sm:$0xff]
        %v641 = vld [vmem:[%s318 + $0x8] sm:$0xff]
        %v642 = vld [vmem:[%s318 + $0x18] sm:$0xff]
        %v643 = vld [vmem:[%s318 + $0x20] sm:$0xff]
        %v644 = vld [vmem:[%s318 + $0x30] sm:$0xff]
        %v645 = vld [vmem:[%s318 + $0x38] sm:$0xff]
        %v646 = vld [vmem:[%s318 + $0x48] sm:$0xff]
        %v647 = vld [vmem:[%s318 + $0x50] sm:$0xff]
        %v648 = vld [vmem:[%s318 + $0x60] sm:$0xff]
        %v649 = vld [vmem:[%s318 + $0x68] sm:$0xff]
        %v650 = vld [vmem:[%s318 + $0x78] sm:$0xff]
        %v651 = vld [vmem:[%s318 + $0x80] sm:$0xff]
        %v652 = vld [vmem:[%s318 + $0x90] sm:$0xff]
        %v653 = vld [vmem:[%s318 + $0x98] sm:$0xff]
        %v654 = vld [vmem:[%s318 + $0xa8] sm:$0xff]
        %v655 = vld [vmem:[%s318 + $0xb0] sm:$0xff]
        %v656 = vld [vmem:[%s318 + $0xc0] sm:$0xff]
        %v657 = vld [vmem:[%s318 + $0xc8] sm:$0xff]
        %v658 = vld [vmem:[%s318 + $0xd8] sm:$0xff]
        %v659 = vld [vmem:[%s318 + $0xe0] sm:$0xff]
        %v660 = vld [vmem:[%s318 + $0xf0] sm:$0xff]
        %v661 = vld [vmem:[%s318 + $0xf8] sm:$0xff]
        %v662 = vld [vmem:[%s318 + $0x108] sm:$0xff]
        %v663 = vld [vmem:[%s318 + $0x110] sm:$0xff]
        %v664 = vld [vmem:[%s318 + $0x120] sm:$0xff]
        %v665 = vld [vmem:[%s318 + $0x128] sm:$0xff]
        %v666 = vld [vmem:[%s318 + $0x138] sm:$0xff]
        %v667 = vld [vmem:[%s318 + $0x140] sm:$0xff]
        %v668 = vld [vmem:[%s318 + $0x150] sm:$0xff]
        %v669 = vld [vmem:[%s318 + $0x158] sm:$0xff]
        %v670 = vld [vmem:[%s318 + $0x168] sm:$0xff]
        %v671 = vld [vmem:[%s318 + $0x170] sm:$0xff]
        %v672 = vpack.c.bf16 %v640, %v640
        %v673 = vpack.c.bf16 %v641, %v641
        %v674 = vpack.c.bf16 %v642, %v642
        %v675 = vpack.c.bf16 %v643, %v643
        %v676 = vpack.c.bf16 %v644, %v644
        %v677 = vpack.c.bf16 %v645, %v645
        %v678 = vpack.c.bf16 %v646, %v646
        %v679 = vpack.c.bf16 %v647, %v647
        %v680 = vpack.c.bf16 %v648, %v648
        %v681 = vpack.c.bf16 %v649, %v649
        %v682 = vpack.c.bf16 %v650, %v650
        %v683 = vpack.c.bf16 %v651, %v651
        %v684 = vpack.c.bf16 %v652, %v652
        %v685 = vpack.c.bf16 %v653, %v653
        %v686 = vpack.c.bf16 %v654, %v654
        %v687 = vpack.c.bf16 %v655, %v655
        %v688 = vpack.c.bf16 %v656, %v656
        %v689 = vpack.c.bf16 %v657, %v657
        %v690 = vpack.c.bf16 %v658, %v658
        %v691 = vpack.c.bf16 %v659, %v659
        %v692 = vpack.c.bf16 %v660, %v660
        %v693 = vpack.c.bf16 %v661, %v661
        %v694 = vpack.c.bf16 %v662, %v662
        %v695 = vpack.c.bf16 %v663, %v663
        %v696 = vpack.c.bf16 %v664, %v664
        %v697 = vpack.c.bf16 %v665, %v665
        %v698 = vpack.c.bf16 %v666, %v666
        %v699 = vpack.c.bf16 %v667, %v667
        %v700 = vpack.c.bf16 %v668, %v668
        %v701 = vpack.c.bf16 %v669, %v669
        %v702 = vpack.c.bf16 %v670, %v670
        %v703 = vpack.c.bf16 %v671, %v671
        %704 = vst [vmem:[#allocation3 + $0xc] sm:$0xf] %v672
        %705 = vst [vmem:[#allocation3 + $0x30] sm:$0xf] %v673
        %706 = vst [vmem:[#allocation3 + $0x54] sm:$0xf] %v674
        %707 = vst [vmem:[#allocation3 + $0x78] sm:$0xf] %v675
        %708 = vst [vmem:[#allocation3 + $0x9c] sm:$0xf] %v676
        %709 = vst [vmem:[#allocation3 + $0xc0] sm:$0xf] %v677
        %710 = vst [vmem:[#allocation3 + $0xe4] sm:$0xf] %v678
        %711 = vst [vmem:[#allocation3 + $0x108] sm:$0xf] %v679
        %712 = vst [vmem:[#allocation3 + $0x12c] sm:$0xf] %v680
        %713 = vst [vmem:[#allocation3 + $0x150] sm:$0xf] %v681
        %714 = vst [vmem:[#allocation3 + $0x174] sm:$0xf] %v682
        %715 = vst [vmem:[#allocation3 + $0x198] sm:$0xf] %v683
        %716 = vst [vmem:[#allocation3 + $0x1bc] sm:$0xf] %v684
        %717 = vst [vmem:[#allocation3 + $0x1e0] sm:$0xf] %v685
        %718 = vst [vmem:[#allocation3 + $0x204] sm:$0xf] %v686
        %719 = vst [vmem:[#allocation3 + $0x228] sm:$0xf] %v687
        %720 = vst [vmem:[#allocation3 + $0x24c] sm:$0xf] %v688
        %721 = vst [vmem:[#allocation3 + $0x270] sm:$0xf] %v689
        %722 = vst [vmem:[#allocation3 + $0x294] sm:$0xf] %v690
        %723 = vst [vmem:[#allocation3 + $0x2b8] sm:$0xf] %v691
        %724 = vst [vmem:[#allocation3 + $0x2dc] sm:$0xf] %v692
        %725 = vst [vmem:[#allocation3 + $0x300] sm:$0xf] %v693
        %726 = vst [vmem:[#allocation3 + $0x324] sm:$0xf] %v694
        %727 = vst [vmem:[#allocation3 + $0x348] sm:$0xf] %v695
        %728 = vst [vmem:[#allocation3 + $0x36c] sm:$0xf] %v696
        %729 = vst [vmem:[#allocation3 + $0x390] sm:$0xf] %v697
        %730 = vst [vmem:[#allocation3 + $0x3b4] sm:$0xf] %v698
        %731 = vst [vmem:[#allocation3 + $0x3d8] sm:$0xf] %v699
        %732 = vst [vmem:[#allocation3 + $0x3fc] sm:$0xf] %v700
        %733 = vst [vmem:[#allocation3 + $0x420] sm:$0xf] %v701
        %734 = vst [vmem:[#allocation3 + $0x444] sm:$0xf] %v702
        %735 = vst [vmem:[#allocation3 + $0x468] sm:$0xf] %v703
        %v736 = vld [vmem:[%s318 + $0x2] sm:$0xff]
        %v737 = vld [vmem:[%s318 + $0xa] sm:$0xff]
        %v738 = vld [vmem:[%s318 + $0x1a] sm:$0xff]
        %v739 = vld [vmem:[%s318 + $0x22] sm:$0xff]
        %v740 = vld [vmem:[%s318 + $0x32] sm:$0xff]
        %v741 = vld [vmem:[%s318 + $0x3a] sm:$0xff]
        %v742 = vld [vmem:[%s318 + $0x4a] sm:$0xff]
        %v743 = vld [vmem:[%s318 + $0x52] sm:$0xff]
        %v744 = vld [vmem:[%s318 + $0x62] sm:$0xff]
        %v745 = vld [vmem:[%s318 + $0x6a] sm:$0xff]
        %v746 = vld [vmem:[%s318 + $0x7a] sm:$0xff]
        %v747 = vld [vmem:[%s318 + $0x82] sm:$0xff]
        %v748 = vld [vmem:[%s318 + $0x92] sm:$0xff]
        %v749 = vld [vmem:[%s318 + $0x9a] sm:$0xff]
        %v750 = vld [vmem:[%s318 + $0xaa] sm:$0xff]
        %v751 = vld [vmem:[%s318 + $0xb2] sm:$0xff]
        %v752 = vld [vmem:[%s318 + $0xc2] sm:$0xff]
        %v753 = vld [vmem:[%s318 + $0xca] sm:$0xff]
        %v754 = vld [vmem:[%s318 + $0xda] sm:$0xff]
        %v755 = vld [vmem:[%s318 + $0xe2] sm:$0xff]
        %v756 = vld [vmem:[%s318 + $0xf2] sm:$0xff]
        %v757 = vld [vmem:[%s318 + $0xfa] sm:$0xff]
        %v758 = vld [vmem:[%s318 + $0x10a] sm:$0xff]
        %v759 = vld [vmem:[%s318 + $0x112] sm:$0xff]
        %v760 = vld [vmem:[%s318 + $0x122] sm:$0xff]
        %v761 = vld [vmem:[%s318 + $0x12a] sm:$0xff]
        %v762 = vld [vmem:[%s318 + $0x13a] sm:$0xff]
        %v763 = vld [vmem:[%s318 + $0x142] sm:$0xff]
        %v764 = vld [vmem:[%s318 + $0x152] sm:$0xff]
        %v765 = vld [vmem:[%s318 + $0x15a] sm:$0xff]
        %v766 = vld [vmem:[%s318 + $0x16a] sm:$0xff]
        %v767 = vld [vmem:[%s318 + $0x172] sm:$0xff]
        %v768 = vpack.c.bf16 %v736, %v736
        %v769 = vpack.c.bf16 %v737, %v737
        %v770 = vpack.c.bf16 %v738, %v738
        %v771 = vpack.c.bf16 %v739, %v739
        %v772 = vpack.c.bf16 %v740, %v740
        %v773 = vpack.c.bf16 %v741, %v741
        %v774 = vpack.c.bf16 %v742, %v742
        %v775 = vpack.c.bf16 %v743, %v743
        %v776 = vpack.c.bf16 %v744, %v744
        %v777 = vpack.c.bf16 %v745, %v745
        %v778 = vpack.c.bf16 %v746, %v746
        %v779 = vpack.c.bf16 %v747, %v747
        %v780 = vpack.c.bf16 %v748, %v748
        %v781 = vpack.c.bf16 %v749, %v749
        %v782 = vpack.c.bf16 %v750, %v750
        %v783 = vpack.c.bf16 %v751, %v751
        %v784 = vpack.c.bf16 %v752, %v752
        %v785 = vpack.c.bf16 %v753, %v753
        %v786 = vpack.c.bf16 %v754, %v754
        %v787 = vpack.c.bf16 %v755, %v755
        %v788 = vpack.c.bf16 %v756, %v756
        %v789 = vpack.c.bf16 %v757, %v757
        %v790 = vpack.c.bf16 %v758, %v758
        %v791 = vpack.c.bf16 %v759, %v759
        %v792 = vpack.c.bf16 %v760, %v760
        %v793 = vpack.c.bf16 %v761, %v761
        %v794 = vpack.c.bf16 %v762, %v762
        %v795 = vpack.c.bf16 %v763, %v763
        %v796 = vpack.c.bf16 %v764, %v764
        %v797 = vpack.c.bf16 %v765, %v765
        %v798 = vpack.c.bf16 %v766, %v766
        %v799 = vpack.c.bf16 %v767, %v767
        %800 = vst [vmem:[#allocation3 + $0x10] sm:$0xf] %v768
        %801 = vst [vmem:[#allocation3 + $0x34] sm:$0xf] %v769
        %802 = vst [vmem:[#allocation3 + $0x58] sm:$0xf] %v770
        %803 = vst [vmem:[#allocation3 + $0x7c] sm:$0xf] %v771
        %804 = vst [vmem:[#allocation3 + $0xa0] sm:$0xf] %v772
        %805 = vst [vmem:[#allocation3 + $0xc4] sm:$0xf] %v773
        %806 = vst [vmem:[#allocation3 + $0xe8] sm:$0xf] %v774
        %807 = vst [vmem:[#allocation3 + $0x10c] sm:$0xf] %v775
        %808 = vst [vmem:[#allocation3 + $0x130] sm:$0xf] %v776
        %809 = vst [vmem:[#allocation3 + $0x154] sm:$0xf] %v777
        %810 = vst [vmem:[#allocation3 + $0x178] sm:$0xf] %v778
        %811 = vst [vmem:[#allocation3 + $0x19c] sm:$0xf] %v779
        %812 = vst [vmem:[#allocation3 + $0x1c0] sm:$0xf] %v780
        %813 = vst [vmem:[#allocation3 + $0x1e4] sm:$0xf] %v781
        %814 = vst [vmem:[#allocation3 + $0x208] sm:$0xf] %v782
        %815 = vst [vmem:[#allocation3 + $0x22c] sm:$0xf] %v783
        %816 = vst [vmem:[#allocation3 + $0x250] sm:$0xf] %v784
        %817 = vst [vmem:[#allocation3 + $0x274] sm:$0xf] %v785
        %818 = vst [vmem:[#allocation3 + $0x298] sm:$0xf] %v786
        %819 = vst [vmem:[#allocation3 + $0x2bc] sm:$0xf] %v787
        %820 = vst [vmem:[#allocation3 + $0x2e0] sm:$0xf] %v788
        %821 = vst [vmem:[#allocation3 + $0x304] sm:$0xf] %v789
        %822 = vst [vmem:[#allocation3 + $0x328] sm:$0xf] %v790
        %823 = vst [vmem:[#allocation3 + $0x34c] sm:$0xf] %v791
        %824 = vst [vmem:[#allocation3 + $0x370] sm:$0xf] %v792
        %825 = vst [vmem:[#allocation3 + $0x394] sm:$0xf] %v793
        %826 = vst [vmem:[#allocation3 + $0x3b8] sm:$0xf] %v794
        %827 = vst [vmem:[#allocation3 + $0x3dc] sm:$0xf] %v795
        %828 = vst [vmem:[#allocation3 + $0x400] sm:$0xf] %v796
        %829 = vst [vmem:[#allocation3 + $0x424] sm:$0xf] %v797
        %830 = vst [vmem:[#allocation3 + $0x448] sm:$0xf] %v798
        %831 = vst [vmem:[#allocation3 + $0x46c] sm:$0xf] %v799
        %v832 = vld [vmem:[%s318 + $0x4] sm:$0xff]
        %v833 = vld [vmem:[%s318 + $0xc] sm:$0xff]
        %v834 = vld [vmem:[%s318 + $0x1c] sm:$0xff]
        %v835 = vld [vmem:[%s318 + $0x24] sm:$0xff]
        %v836 = vld [vmem:[%s318 + $0x34] sm:$0xff]
        %v837 = vld [vmem:[%s318 + $0x3c] sm:$0xff]
        %v838 = vld [vmem:[%s318 + $0x4c] sm:$0xff]
        %v839 = vld [vmem:[%s318 + $0x54] sm:$0xff]
        %v840 = vld [vmem:[%s318 + $0x64] sm:$0xff]
        %v841 = vld [vmem:[%s318 + $0x6c] sm:$0xff]
        %v842 = vld [vmem:[%s318 + $0x7c] sm:$0xff]
        %v843 = vld [vmem:[%s318 + $0x84] sm:$0xff]
        %v844 = vld [vmem:[%s318 + $0x94] sm:$0xff]
        %v845 = vld [vmem:[%s318 + $0x9c] sm:$0xff]
        %v846 = vld [vmem:[%s318 + $0xac] sm:$0xff]
        %v847 = vld [vmem:[%s318 + $0xb4] sm:$0xff]
        %v848 = vld [vmem:[%s318 + $0xc4] sm:$0xff]
        %v849 = vld [vmem:[%s318 + $0xcc] sm:$0xff]
        %v850 = vld [vmem:[%s318 + $0xdc] sm:$0xff]
        %v851 = vld [vmem:[%s318 + $0xe4] sm:$0xff]
        %v852 = vld [vmem:[%s318 + $0xf4] sm:$0xff]
        %v853 = vld [vmem:[%s318 + $0xfc] sm:$0xff]
        %v854 = vld [vmem:[%s318 + $0x10c] sm:$0xff]
        %v855 = vld [vmem:[%s318 + $0x114] sm:$0xff]
        %v856 = vld [vmem:[%s318 + $0x124] sm:$0xff]
        %v857 = vld [vmem:[%s318 + $0x12c] sm:$0xff]
        %v858 = vld [vmem:[%s318 + $0x13c] sm:$0xff]
        %v859 = vld [vmem:[%s318 + $0x144] sm:$0xff]
        %v860 = vld [vmem:[%s318 + $0x154] sm:$0xff]
        %v861 = vld [vmem:[%s318 + $0x15c] sm:$0xff]
        %v862 = vld [vmem:[%s318 + $0x16c] sm:$0xff]
        %v863 = vld [vmem:[%s318 + $0x174] sm:$0xff]
        %v864 = vpack.c.bf16 %v832, %v832
        %v865 = vpack.c.bf16 %v833, %v833
        %v866 = vpack.c.bf16 %v834, %v834
        %v867 = vpack.c.bf16 %v835, %v835
        %v868 = vpack.c.bf16 %v836, %v836
        %v869 = vpack.c.bf16 %v837, %v837
        %v870 = vpack.c.bf16 %v838, %v838
        %v871 = vpack.c.bf16 %v839, %v839
        %v872 = vpack.c.bf16 %v840, %v840
        %v873 = vpack.c.bf16 %v841, %v841
        %v874 = vpack.c.bf16 %v842, %v842
        %v875 = vpack.c.bf16 %v843, %v843
        %v876 = vpack.c.bf16 %v844, %v844
        %v877 = vpack.c.bf16 %v845, %v845
        %v878 = vpack.c.bf16 %v846, %v846
        %v879 = vpack.c.bf16 %v847, %v847
        %v880 = vpack.c.bf16 %v848, %v848
        %v881 = vpack.c.bf16 %v849, %v849
        %v882 = vpack.c.bf16 %v850, %v850
        %v883 = vpack.c.bf16 %v851, %v851
        %v884 = vpack.c.bf16 %v852, %v852
        %v885 = vpack.c.bf16 %v853, %v853
        %v886 = vpack.c.bf16 %v854, %v854
        %v887 = vpack.c.bf16 %v855, %v855
        %v888 = vpack.c.bf16 %v856, %v856
        %v889 = vpack.c.bf16 %v857, %v857
        %v890 = vpack.c.bf16 %v858, %v858
        %v891 = vpack.c.bf16 %v859, %v859
        %v892 = vpack.c.bf16 %v860, %v860
        %v893 = vpack.c.bf16 %v861, %v861
        %v894 = vpack.c.bf16 %v862, %v862
        %v895 = vpack.c.bf16 %v863, %v863
        %896 = vst [vmem:[#allocation3 + $0x14] sm:$0xf] %v864
        %897 = vst [vmem:[#allocation3 + $0x38] sm:$0xf] %v865
        %898 = vst [vmem:[#allocation3 + $0x5c] sm:$0xf] %v866
        %899 = vst [vmem:[#allocation3 + $0x80] sm:$0xf] %v867
        %900 = vst [vmem:[#allocation3 + $0xa4] sm:$0xf] %v868
        %901 = vst [vmem:[#allocation3 + $0xc8] sm:$0xf] %v869
        %902 = vst [vmem:[#allocation3 + $0xec] sm:$0xf] %v870
        %903 = vst [vmem:[#allocation3 + $0x110] sm:$0xf] %v871
        %904 = vst [vmem:[#allocation3 + $0x134] sm:$0xf] %v872
        %905 = vst [vmem:[#allocation3 + $0x158] sm:$0xf] %v873
        %906 = vst [vmem:[#allocation3 + $0x17c] sm:$0xf] %v874
        %907 = vst [vmem:[#allocation3 + $0x1a0] sm:$0xf] %v875
        %908 = vst [vmem:[#allocation3 + $0x1c4] sm:$0xf] %v876
        %909 = vst [vmem:[#allocation3 + $0x1e8] sm:$0xf] %v877
        %910 = vst [vmem:[#allocation3 + $0x20c] sm:$0xf] %v878
        %911 = vst [vmem:[#allocation3 + $0x230] sm:$0xf] %v879
        %912 = vst [vmem:[#allocation3 + $0x254] sm:$0xf] %v880
        %913 = vst [vmem:[#allocation3 + $0x278] sm:$0xf] %v881
        %914 = vst [vmem:[#allocation3 + $0x29c] sm:$0xf] %v882
        %915 = vst [vmem:[#allocation3 + $0x2c0] sm:$0xf] %v883
        %916 = vst [vmem:[#allocation3 + $0x2e4] sm:$0xf] %v884
        %917 = vst [vmem:[#allocation3 + $0x308] sm:$0xf] %v885
        %918 = vst [vmem:[#allocation3 + $0x32c] sm:$0xf] %v886
        %919 = vst [vmem:[#allocation3 + $0x350] sm:$0xf] %v887
        %920 = vst [vmem:[#allocation3 + $0x374] sm:$0xf] %v888
        %921 = vst [vmem:[#allocation3 + $0x398] sm:$0xf] %v889
        %922 = vst [vmem:[#allocation3 + $0x3bc] sm:$0xf] %v890
        %923 = vst [vmem:[#allocation3 + $0x3e0] sm:$0xf] %v891
        %924 = vst [vmem:[#allocation3 + $0x404] sm:$0xf] %v892
        %925 = vst [vmem:[#allocation3 + $0x428] sm:$0xf] %v893
        %926 = vst [vmem:[#allocation3 + $0x44c] sm:$0xf] %v894
        %927 = vst [vmem:[#allocation3 + $0x470] sm:$0xf] %v895
        %s928 = scalar_lea.vmem [#allocation2], 96
        %v929 = vld [vmem:[%s928] sm:$0xff]
        %v930 = vld [vmem:[%s928 + $0x8] sm:$0xff]
        %v931 = vld [vmem:[%s928 + $0x18] sm:$0xff]
        %v932 = vld [vmem:[%s928 + $0x20] sm:$0xff]
        %v933 = vld [vmem:[%s928 + $0x30] sm:$0xff]
        %v934 = vld [vmem:[%s928 + $0x38] sm:$0xff]
        %v935 = vld [vmem:[%s928 + $0x48] sm:$0xff]
        %v936 = vld [vmem:[%s928 + $0x50] sm:$0xff]
        %v937 = vld [vmem:[%s928 + $0x60] sm:$0xff]
        %v938 = vld [vmem:[%s928 + $0x68] sm:$0xff]
        %v939 = vld [vmem:[%s928 + $0x78] sm:$0xff]
        %v940 = vld [vmem:[%s928 + $0x80] sm:$0xff]
        %v941 = vld [vmem:[%s928 + $0x90] sm:$0xff]
        %v942 = vld [vmem:[%s928 + $0x98] sm:$0xff]
        %v943 = vld [vmem:[%s928 + $0xa8] sm:$0xff]
        %v944 = vld [vmem:[%s928 + $0xb0] sm:$0xff]
        %v945 = vld [vmem:[%s928 + $0xc0] sm:$0xff]
        %v946 = vld [vmem:[%s928 + $0xc8] sm:$0xff]
        %v947 = vld [vmem:[%s928 + $0xd8] sm:$0xff]
        %v948 = vld [vmem:[%s928 + $0xe0] sm:$0xff]
        %v949 = vld [vmem:[%s928 + $0xf0] sm:$0xff]
        %v950 = vld [vmem:[%s928 + $0xf8] sm:$0xff]
        %v951 = vld [vmem:[%s928 + $0x108] sm:$0xff]
        %v952 = vld [vmem:[%s928 + $0x110] sm:$0xff]
        %v953 = vld [vmem:[%s928 + $0x120] sm:$0xff]
        %v954 = vld [vmem:[%s928 + $0x128] sm:$0xff]
        %v955 = vld [vmem:[%s928 + $0x138] sm:$0xff]
        %v956 = vld [vmem:[%s928 + $0x140] sm:$0xff]
        %v957 = vld [vmem:[%s928 + $0x150] sm:$0xff]
        %v958 = vld [vmem:[%s928 + $0x158] sm:$0xff]
        %v959 = vld [vmem:[%s928 + $0x168] sm:$0xff]
        %v960 = vld [vmem:[%s928 + $0x170] sm:$0xff]
        %v961 = vpack.c.bf16 %v929, %v929
        %v962 = vpack.c.bf16 %v930, %v930
        %v963 = vpack.c.bf16 %v931, %v931
        %v964 = vpack.c.bf16 %v932, %v932
        %v965 = vpack.c.bf16 %v933, %v933
        %v966 = vpack.c.bf16 %v934, %v934
        %v967 = vpack.c.bf16 %v935, %v935
        %v968 = vpack.c.bf16 %v936, %v936
        %v969 = vpack.c.bf16 %v937, %v937
        %v970 = vpack.c.bf16 %v938, %v938
        %v971 = vpack.c.bf16 %v939, %v939
        %v972 = vpack.c.bf16 %v940, %v940
        %v973 = vpack.c.bf16 %v941, %v941
        %v974 = vpack.c.bf16 %v942, %v942
        %v975 = vpack.c.bf16 %v943, %v943
        %v976 = vpack.c.bf16 %v944, %v944
        %v977 = vpack.c.bf16 %v945, %v945
        %v978 = vpack.c.bf16 %v946, %v946
        %v979 = vpack.c.bf16 %v947, %v947
        %v980 = vpack.c.bf16 %v948, %v948
        %v981 = vpack.c.bf16 %v949, %v949
        %v982 = vpack.c.bf16 %v950, %v950
        %v983 = vpack.c.bf16 %v951, %v951
        %v984 = vpack.c.bf16 %v952, %v952
        %v985 = vpack.c.bf16 %v953, %v953
        %v986 = vpack.c.bf16 %v954, %v954
        %v987 = vpack.c.bf16 %v955, %v955
        %v988 = vpack.c.bf16 %v956, %v956
        %v989 = vpack.c.bf16 %v957, %v957
        %v990 = vpack.c.bf16 %v958, %v958
        %v991 = vpack.c.bf16 %v959, %v959
        %v992 = vpack.c.bf16 %v960, %v960
        %993 = vst [vmem:[#allocation3 + $0x18] sm:$0xf] %v961
        %994 = vst [vmem:[#allocation3 + $0x3c] sm:$0xf] %v962
        %995 = vst [vmem:[#allocation3 + $0x60] sm:$0xf] %v963
        %996 = vst [vmem:[#allocation3 + $0x84] sm:$0xf] %v964
        %997 = vst [vmem:[#allocation3 + $0xa8] sm:$0xf] %v965
        %998 = vst [vmem:[#allocation3 + $0xcc] sm:$0xf] %v966
        %999 = vst [vmem:[#allocation3 + $0xf0] sm:$0xf] %v967
        %1000 = vst [vmem:[#allocation3 + $0x114] sm:$0xf] %v968
        %1001 = vst [vmem:[#allocation3 + $0x138] sm:$0xf] %v969
        %1002 = vst [vmem:[#allocation3 + $0x15c] sm:$0xf] %v970
        %1003 = vst [vmem:[#allocation3 + $0x180] sm:$0xf] %v971
        %1004 = vst [vmem:[#allocation3 + $0x1a4] sm:$0xf] %v972
        %1005 = vst [vmem:[#allocation3 + $0x1c8] sm:$0xf] %v973
        %1006 = vst [vmem:[#allocation3 + $0x1ec] sm:$0xf] %v974
        %1007 = vst [vmem:[#allocation3 + $0x210] sm:$0xf] %v975
        %1008 = vst [vmem:[#allocation3 + $0x234] sm:$0xf] %v976
        %1009 = vst [vmem:[#allocation3 + $0x258] sm:$0xf] %v977
        %1010 = vst [vmem:[#allocation3 + $0x27c] sm:$0xf] %v978
        %1011 = vst [vmem:[#allocation3 + $0x2a0] sm:$0xf] %v979
        %1012 = vst [vmem:[#allocation3 + $0x2c4] sm:$0xf] %v980
        %1013 = vst [vmem:[#allocation3 + $0x2e8] sm:$0xf] %v981
        %1014 = vst [vmem:[#allocation3 + $0x30c] sm:$0xf] %v982
        %1015 = vst [vmem:[#allocation3 + $0x330] sm:$0xf] %v983
        %1016 = vst [vmem:[#allocation3 + $0x354] sm:$0xf] %v984
        %1017 = vst [vmem:[#allocation3 + $0x378] sm:$0xf] %v985
        %1018 = vst [vmem:[#allocation3 + $0x39c] sm:$0xf] %v986
        %1019 = vst [vmem:[#allocation3 + $0x3c0] sm:$0xf] %v987
        %1020 = vst [vmem:[#allocation3 + $0x3e4] sm:$0xf] %v988
        %1021 = vst [vmem:[#allocation3 + $0x408] sm:$0xf] %v989
        %1022 = vst [vmem:[#allocation3 + $0x42c] sm:$0xf] %v990
        %1023 = vst [vmem:[#allocation3 + $0x450] sm:$0xf] %v991
        %1024 = vst [vmem:[#allocation3 + $0x474] sm:$0xf] %v992
        %v1025 = vld [vmem:[%s928 + $0x2] sm:$0xff]
        %v1026 = vld [vmem:[%s928 + $0xa] sm:$0xff]
        %v1027 = vld [vmem:[%s928 + $0x1a] sm:$0xff]
        %v1028 = vld [vmem:[%s928 + $0x22] sm:$0xff]
        %v1029 = vld [vmem:[%s928 + $0x32] sm:$0xff]
        %v1030 = vld [vmem:[%s928 + $0x3a] sm:$0xff]
        %v1031 = vld [vmem:[%s928 + $0x4a] sm:$0xff]
        %v1032 = vld [vmem:[%s928 + $0x52] sm:$0xff]
        %v1033 = vld [vmem:[%s928 + $0x62] sm:$0xff]
        %v1034 = vld [vmem:[%s928 + $0x6a] sm:$0xff]
        %v1035 = vld [vmem:[%s928 + $0x7a] sm:$0xff]
        %v1036 = vld [vmem:[%s928 + $0x82] sm:$0xff]
        %v1037 = vld [vmem:[%s928 + $0x92] sm:$0xff]
        %v1038 = vld [vmem:[%s928 + $0x9a] sm:$0xff]
        %v1039 = vld [vmem:[%s928 + $0xaa] sm:$0xff]
        %v1040 = vld [vmem:[%s928 + $0xb2] sm:$0xff]
        %v1041 = vld [vmem:[%s928 + $0xc2] sm:$0xff]
        %v1042 = vld [vmem:[%s928 + $0xca] sm:$0xff]
        %v1043 = vld [vmem:[%s928 + $0xda] sm:$0xff]
        %v1044 = vld [vmem:[%s928 + $0xe2] sm:$0xff]
        %v1045 = vld [vmem:[%s928 + $0xf2] sm:$0xff]
        %v1046 = vld [vmem:[%s928 + $0xfa] sm:$0xff]
        %v1047 = vld [vmem:[%s928 + $0x10a] sm:$0xff]
        %v1048 = vld [vmem:[%s928 + $0x112] sm:$0xff]
        %v1049 = vld [vmem:[%s928 + $0x122] sm:$0xff]
        %v1050 = vld [vmem:[%s928 + $0x12a] sm:$0xff]
        %v1051 = vld [vmem:[%s928 + $0x13a] sm:$0xff]
        %v1052 = vld [vmem:[%s928 + $0x142] sm:$0xff]
        %v1053 = vld [vmem:[%s928 + $0x152] sm:$0xff]
        %v1054 = vld [vmem:[%s928 + $0x15a] sm:$0xff]
        %v1055 = vld [vmem:[%s928 + $0x16a] sm:$0xff]
        %v1056 = vld [vmem:[%s928 + $0x172] sm:$0xff]
        %v1057 = vpack.c.bf16 %v1025, %v1025
        %v1058 = vpack.c.bf16 %v1026, %v1026
        %v1059 = vpack.c.bf16 %v1027, %v1027
        %v1060 = vpack.c.bf16 %v1028, %v1028
        %v1061 = vpack.c.bf16 %v1029, %v1029
        %v1062 = vpack.c.bf16 %v1030, %v1030
        %v1063 = vpack.c.bf16 %v1031, %v1031
        %v1064 = vpack.c.bf16 %v1032, %v1032
        %v1065 = vpack.c.bf16 %v1033, %v1033
        %v1066 = vpack.c.bf16 %v1034, %v1034
        %v1067 = vpack.c.bf16 %v1035, %v1035
        %v1068 = vpack.c.bf16 %v1036, %v1036
        %v1069 = vpack.c.bf16 %v1037, %v1037
        %v1070 = vpack.c.bf16 %v1038, %v1038
        %v1071 = vpack.c.bf16 %v1039, %v1039
        %v1072 = vpack.c.bf16 %v1040, %v1040
        %v1073 = vpack.c.bf16 %v1041, %v1041
        %v1074 = vpack.c.bf16 %v1042, %v1042
        %v1075 = vpack.c.bf16 %v1043, %v1043
        %v1076 = vpack.c.bf16 %v1044, %v1044
        %v1077 = vpack.c.bf16 %v1045, %v1045
        %v1078 = vpack.c.bf16 %v1046, %v1046
        %v1079 = vpack.c.bf16 %v1047, %v1047
        %v1080 = vpack.c.bf16 %v1048, %v1048
        %v1081 = vpack.c.bf16 %v1049, %v1049
        %v1082 = vpack.c.bf16 %v1050, %v1050
        %v1083 = vpack.c.bf16 %v1051, %v1051
        %v1084 = vpack.c.bf16 %v1052, %v1052
        %v1085 = vpack.c.bf16 %v1053, %v1053
        %v1086 = vpack.c.bf16 %v1054, %v1054
        %v1087 = vpack.c.bf16 %v1055, %v1055
        %v1088 = vpack.c.bf16 %v1056, %v1056
        %1089 = vst [vmem:[#allocation3 + $0x1c] sm:$0xf] %v1057
        %1090 = vst [vmem:[#allocation3 + $0x40] sm:$0xf] %v1058
        %1091 = vst [vmem:[#allocation3 + $0x64] sm:$0xf] %v1059
        %1092 = vst [vmem:[#allocation3 + $0x88] sm:$0xf] %v1060
        %1093 = vst [vmem:[#allocation3 + $0xac] sm:$0xf] %v1061
        %1094 = vst [vmem:[#allocation3 + $0xd0] sm:$0xf] %v1062
        %1095 = vst [vmem:[#allocation3 + $0xf4] sm:$0xf] %v1063
        %1096 = vst [vmem:[#allocation3 + $0x118] sm:$0xf] %v1064
        %1097 = vst [vmem:[#allocation3 + $0x13c] sm:$0xf] %v1065
        %1098 = vst [vmem:[#allocation3 + $0x160] sm:$0xf] %v1066
        %1099 = vst [vmem:[#allocation3 + $0x184] sm:$0xf] %v1067
        %1100 = vst [vmem:[#allocation3 + $0x1a8] sm:$0xf] %v1068
        %1101 = vst [vmem:[#allocation3 + $0x1cc] sm:$0xf] %v1069
        %1102 = vst [vmem:[#allocation3 + $0x1f0] sm:$0xf] %v1070
        %1103 = vst [vmem:[#allocation3 + $0x214] sm:$0xf] %v1071
        %1104 = vst [vmem:[#allocation3 + $0x238] sm:$0xf] %v1072
        %1105 = vst [vmem:[#allocation3 + $0x25c] sm:$0xf] %v1073
        %1106 = vst [vmem:[#allocation3 + $0x280] sm:$0xf] %v1074
        %1107 = vst [vmem:[#allocation3 + $0x2a4] sm:$0xf] %v1075
        %1108 = vst [vmem:[#allocation3 + $0x2c8] sm:$0xf] %v1076
        %1109 = vst [vmem:[#allocation3 + $0x2ec] sm:$0xf] %v1077
        %1110 = vst [vmem:[#allocation3 + $0x310] sm:$0xf] %v1078
        %1111 = vst [vmem:[#allocation3 + $0x334] sm:$0xf] %v1079
        %1112 = vst [vmem:[#allocation3 + $0x358] sm:$0xf] %v1080
        %1113 = vst [vmem:[#allocation3 + $0x37c] sm:$0xf] %v1081
        %1114 = vst [vmem:[#allocation3 + $0x3a0] sm:$0xf] %v1082
        %1115 = vst [vmem:[#allocation3 + $0x3c4] sm:$0xf] %v1083
        %1116 = vst [vmem:[#allocation3 + $0x3e8] sm:$0xf] %v1084
        %1117 = vst [vmem:[#allocation3 + $0x40c] sm:$0xf] %v1085
        %1118 = vst [vmem:[#allocation3 + $0x430] sm:$0xf] %v1086
        %1119 = vst [vmem:[#allocation3 + $0x454] sm:$0xf] %v1087
        %1120 = vst [vmem:[#allocation3 + $0x478] sm:$0xf] %v1088
        %v1121 = vld [vmem:[%s928 + $0x4] sm:$0xff]
        %v1122 = vld [vmem:[%s928 + $0xc] sm:$0xff]
        %v1123 = vld [vmem:[%s928 + $0x1c] sm:$0xff]
        %v1124 = vld [vmem:[%s928 + $0x24] sm:$0xff]
        %v1125 = vld [vmem:[%s928 + $0x34] sm:$0xff]
        %v1126 = vld [vmem:[%s928 + $0x3c] sm:$0xff]
        %v1127 = vld [vmem:[%s928 + $0x4c] sm:$0xff]
        %v1128 = vld [vmem:[%s928 + $0x54] sm:$0xff]
        %v1129 = vld [vmem:[%s928 + $0x64] sm:$0xff]
        %v1130 = vld [vmem:[%s928 + $0x6c] sm:$0xff]
        %v1131 = vld [vmem:[%s928 + $0x7c] sm:$0xff]
        %v1132 = vld [vmem:[%s928 + $0x84] sm:$0xff]
        %v1133 = vld [vmem:[%s928 + $0x94] sm:$0xff]
        %v1134 = vld [vmem:[%s928 + $0x9c] sm:$0xff]
        %v1135 = vld [vmem:[%s928 + $0xac] sm:$0xff]
        %v1136 = vld [vmem:[%s928 + $0xb4] sm:$0xff]
        %v1137 = vld [vmem:[%s928 + $0xc4] sm:$0xff]
        %v1138 = vld [vmem:[%s928 + $0xcc] sm:$0xff]
        %v1139 = vld [vmem:[%s928 + $0xdc] sm:$0xff]
        %v1140 = vld [vmem:[%s928 + $0xe4] sm:$0xff]
        %v1141 = vld [vmem:[%s928 + $0xf4] sm:$0xff]
        %v1142 = vld [vmem:[%s928 + $0xfc] sm:$0xff]
        %v1143 = vld [vmem:[%s928 + $0x10c] sm:$0xff]
        %v1144 = vld [vmem:[%s928 + $0x114] sm:$0xff]
        %v1145 = vld [vmem:[%s928 + $0x124] sm:$0xff]
        %v1146 = vld [vmem:[%s928 + $0x12c] sm:$0xff]
        %v1147 = vld [vmem:[%s928 + $0x13c] sm:$0xff]
        %v1148 = vld [vmem:[%s928 + $0x144] sm:$0xff]
        %v1149 = vld [vmem:[%s928 + $0x154] sm:$0xff]
        %v1150 = vld [vmem:[%s928 + $0x15c] sm:$0xff]
        %v1151 = vld [vmem:[%s928 + $0x16c] sm:$0xff]
        %v1152 = vld [vmem:[%s928 + $0x174] sm:$0xff]
        %v1153 = vpack.c.bf16 %v1121, %v1121
        %v1154 = vpack.c.bf16 %v1122, %v1122
        %v1155 = vpack.c.bf16 %v1123, %v1123
        %v1156 = vpack.c.bf16 %v1124, %v1124
        %v1157 = vpack.c.bf16 %v1125, %v1125
        %v1158 = vpack.c.bf16 %v1126, %v1126
        %v1159 = vpack.c.bf16 %v1127, %v1127
        %v1160 = vpack.c.bf16 %v1128, %v1128
        %v1161 = vpack.c.bf16 %v1129, %v1129
        %v1162 = vpack.c.bf16 %v1130, %v1130
        %v1163 = vpack.c.bf16 %v1131, %v1131
        %v1164 = vpack.c.bf16 %v1132, %v1132
        %v1165 = vpack.c.bf16 %v1133, %v1133
        %v1166 = vpack.c.bf16 %v1134, %v1134
        %v1167 = vpack.c.bf16 %v1135, %v1135
        %v1168 = vpack.c.bf16 %v1136, %v1136
        %v1169 = vpack.c.bf16 %v1137, %v1137
        %v1170 = vpack.c.bf16 %v1138, %v1138
        %v1171 = vpack.c.bf16 %v1139, %v1139
        %v1172 = vpack.c.bf16 %v1140, %v1140
        %v1173 = vpack.c.bf16 %v1141, %v1141
        %v1174 = vpack.c.bf16 %v1142, %v1142
        %v1175 = vpack.c.bf16 %v1143, %v1143
        %v1176 = vpack.c.bf16 %v1144, %v1144
        %v1177 = vpack.c.bf16 %v1145, %v1145
        %v1178 = vpack.c.bf16 %v1146, %v1146
        %v1179 = vpack.c.bf16 %v1147, %v1147
        %v1180 = vpack.c.bf16 %v1148, %v1148
        %v1181 = vpack.c.bf16 %v1149, %v1149
        %v1182 = vpack.c.bf16 %v1150, %v1150
        %v1183 = vpack.c.bf16 %v1151, %v1151
        %v1184 = vpack.c.bf16 %v1152, %v1152
        %1185 = vst [vmem:[#allocation3 + $0x20] sm:$0xf] %v1153
        %1186 = vst [vmem:[#allocation3 + $0x44] sm:$0xf] %v1154
        %1187 = vst [vmem:[#allocation3 + $0x68] sm:$0xf] %v1155
        %1188 = vst [vmem:[#allocation3 + $0x8c] sm:$0xf] %v1156
        %1189 = vst [vmem:[#allocation3 + $0xb0] sm:$0xf] %v1157
        %1190 = vst [vmem:[#allocation3 + $0xd4] sm:$0xf] %v1158
        %1191 = vst [vmem:[#allocation3 + $0xf8] sm:$0xf] %v1159
        %1192 = vst [vmem:[#allocation3 + $0x11c] sm:$0xf] %v1160
        %1193 = vst [vmem:[#allocation3 + $0x140] sm:$0xf] %v1161
        %1194 = vst [vmem:[#allocation3 + $0x164] sm:$0xf] %v1162
        %1195 = vst [vmem:[#allocation3 + $0x188] sm:$0xf] %v1163
        %1196 = vst [vmem:[#allocation3 + $0x1ac] sm:$0xf] %v1164
        %1197 = vst [vmem:[#allocation3 + $0x1d0] sm:$0xf] %v1165
        %1198 = vst [vmem:[#allocation3 + $0x1f4] sm:$0xf] %v1166
        %1199 = vst [vmem:[#allocation3 + $0x218] sm:$0xf] %v1167
        %1200 = vst [vmem:[#allocation3 + $0x23c] sm:$0xf] %v1168
        %1201 = vst [vmem:[#allocation3 + $0x260] sm:$0xf] %v1169
        %1202 = vst [vmem:[#allocation3 + $0x284] sm:$0xf] %v1170
        %1203 = vst [vmem:[#allocation3 + $0x2a8] sm:$0xf] %v1171
        %1204 = vst [vmem:[#allocation3 + $0x2cc] sm:$0xf] %v1172
        %1205 = vst [vmem:[#allocation3 + $0x2f0] sm:$0xf] %v1173
        %1206 = vst [vmem:[#allocation3 + $0x314] sm:$0xf] %v1174
        %1207 = vst [vmem:[#allocation3 + $0x338] sm:$0xf] %v1175
        %1208 = vst [vmem:[#allocation3 + $0x35c] sm:$0xf] %v1176
        %1209 = vst [vmem:[#allocation3 + $0x380] sm:$0xf] %v1177
        %1210 = vst [vmem:[#allocation3 + $0x3a4] sm:$0xf] %v1178
        %1211 = vst [vmem:[#allocation3 + $0x3c8] sm:$0xf] %v1179
        %1212 = vst [vmem:[#allocation3 + $0x3ec] sm:$0xf] %v1180
        %1213 = vst [vmem:[#allocation3 + $0x410] sm:$0xf] %v1181
        %1214 = vst [vmem:[#allocation3 + $0x434] sm:$0xf] %v1182
        %1215 = vst [vmem:[#allocation3 + $0x458] sm:$0xf] %v1183
        %1216 = vst [vmem:[#allocation3 + $0x47c] sm:$0xf] %v1184
      $region36: #{hasp_module_apply.1} parent=31 // pred_fallthru
        _
      %v1217 = vld [vmem:[#allocation3] sm:$0xff]
      %v1218 = vld [vmem:[#allocation3 + $0x8] sm:$0xff]
      %v1219 = vld [vmem:[#allocation3 + $0x10] sm:$0xff]
      %v1220 = vld [vmem:[#allocation3 + $0x18] sm:$0xff]
      %v1221 = vld [vmem:[#allocation3 + $0x20] sm:$0xf]
      %v1222 = vld [vmem:[#allocation3 + $0x24] sm:$0xff]
      %v1223 = vld [vmem:[#allocation3 + $0x2c] sm:$0xff]
      %v1224 = vld [vmem:[#allocation3 + $0x34] sm:$0xff]
      %v1225 = vld [vmem:[#allocation3 + $0x3c] sm:$0xff]
      %v1226 = vld [vmem:[#allocation3 + $0x44] sm:$0xf]
      %v1227 = vld [vmem:[#allocation3 + $0x48] sm:$0xff]
      %v1228 = vld [vmem:[#allocation3 + $0x50] sm:$0xff]
      %v1229 = vld [vmem:[#allocation3 + $0x58] sm:$0xff]
      %v1230 = vld [vmem:[#allocation3 + $0x60] sm:$0xff]
      %v1231 = vld [vmem:[#allocation3 + $0x68] sm:$0xf]
      %v1232 = vld [vmem:[#allocation3 + $0x6c] sm:$0xff]
      %v1233 = vld [vmem:[#allocation3 + $0x74] sm:$0xff]
      %v1234 = vld [vmem:[#allocation3 + $0x7c] sm:$0xff]
      %v1235 = vld [vmem:[#allocation3 + $0x84] sm:$0xff]
      %v1236 = vld [vmem:[#allocation3 + $0x8c] sm:$0xf]
      %v1237 = vld [vmem:[#allocation3 + $0x90] sm:$0xff]
      %v1238 = vld [vmem:[#allocation3 + $0x98] sm:$0xff]
      %v1239 = vld [vmem:[#allocation3 + $0xa0] sm:$0xff]
      %v1240 = vld [vmem:[#allocation3 + $0xa8] sm:$0xff]
      %v1241 = vld [vmem:[#allocation3 + $0xb0] sm:$0xf]
      %v1242 = vld [vmem:[#allocation3 + $0xb4] sm:$0xff]
      %v1243 = vld [vmem:[#allocation3 + $0xbc] sm:$0xff]
      %v1244 = vld [vmem:[#allocation3 + $0xc4] sm:$0xff]
      %v1245 = vld [vmem:[#allocation3 + $0xcc] sm:$0xff]
      %v1246 = vld [vmem:[#allocation3 + $0xd4] sm:$0xf]
      %v1247 = vld [vmem:[#allocation3 + $0xd8] sm:$0xff]
      %v1248 = vld [vmem:[#allocation3 + $0xe0] sm:$0xff]
      %v1249 = vld [vmem:[#allocation3 + $0xe8] sm:$0xff]
      %v1250 = vld [vmem:[#allocation3 + $0xf0] sm:$0xff]
      %v1251 = vld [vmem:[#allocation3 + $0xf8] sm:$0xf]
      %v1252 = vld [vmem:[#allocation3 + $0xfc] sm:$0xff]
      %v1253 = vld [vmem:[#allocation3 + $0x104] sm:$0xff]
      %v1254 = vld [vmem:[#allocation3 + $0x10c] sm:$0xff]
      %v1255 = vld [vmem:[#allocation3 + $0x114] sm:$0xff]
      %v1256 = vld [vmem:[#allocation3 + $0x11c] sm:$0xf]
      %v1257 = vld [vmem:[#allocation3 + $0x120] sm:$0xff]
      %v1258 = vld [vmem:[#allocation3 + $0x128] sm:$0xff]
      %v1259 = vld [vmem:[#allocation3 + $0x130] sm:$0xff]
      %v1260 = vld [vmem:[#allocation3 + $0x138] sm:$0xff]
      %v1261 = vld [vmem:[#allocation3 + $0x140] sm:$0xf]
      %v1262 = vld [vmem:[#allocation3 + $0x144] sm:$0xff]
      %v1263 = vld [vmem:[#allocation3 + $0x14c] sm:$0xff]
      %v1264 = vld [vmem:[#allocation3 + $0x154] sm:$0xff]
      %v1265 = vld [vmem:[#allocation3 + $0x15c] sm:$0xff]
      %v1266 = vld [vmem:[#allocation3 + $0x164] sm:$0xf]
      %v1267 = vld [vmem:[#allocation3 + $0x168] sm:$0xff]
      %v1268 = vld [vmem:[#allocation3 + $0x170] sm:$0xff]
      %v1269 = vld [vmem:[#allocation3 + $0x178] sm:$0xff]
      %v1270 = vld [vmem:[#allocation3 + $0x180] sm:$0xff]
      %v1271 = vld [vmem:[#allocation3 + $0x188] sm:$0xf]
      %v1272 = vld [vmem:[#allocation3 + $0x18c] sm:$0xff]
      %v1273 = vld [vmem:[#allocation3 + $0x194] sm:$0xff]
      %v1274 = vld [vmem:[#allocation3 + $0x19c] sm:$0xff]
      %v1275 = vld [vmem:[#allocation3 + $0x1a4] sm:$0xff]
      %v1276 = vld [vmem:[#allocation3 + $0x1ac] sm:$0xf]
      %v1277 = vld [vmem:[#allocation3 + $0x1b0] sm:$0xff]
      %v1278 = vld [vmem:[#allocation3 + $0x1b8] sm:$0xff]
      %v1279 = vld [vmem:[#allocation3 + $0x1c0] sm:$0xff]
      %v1280 = vld [vmem:[#allocation3 + $0x1c8] sm:$0xff]
      %v1281 = vld [vmem:[#allocation3 + $0x1d0] sm:$0xf]
      %v1282 = vld [vmem:[#allocation3 + $0x1d4] sm:$0xff]
      %v1283 = vld [vmem:[#allocation3 + $0x1dc] sm:$0xff]
      %v1284 = vld [vmem:[#allocation3 + $0x1e4] sm:$0xff]
      %v1285 = vld [vmem:[#allocation3 + $0x1ec] sm:$0xff]
      %v1286 = vld [vmem:[#allocation3 + $0x1f4] sm:$0xf]
      %v1287 = vld [vmem:[#allocation3 + $0x1f8] sm:$0xff]
      %v1288 = vld [vmem:[#allocation3 + $0x200] sm:$0xff]
      %v1289 = vld [vmem:[#allocation3 + $0x208] sm:$0xff]
      %v1290 = vld [vmem:[#allocation3 + $0x210] sm:$0xff]
      %v1291 = vld [vmem:[#allocation3 + $0x218] sm:$0xf]
      %v1292 = vld [vmem:[#allocation3 + $0x21c] sm:$0xff]
      %v1293 = vld [vmem:[#allocation3 + $0x224] sm:$0xff]
      %v1294 = vld [vmem:[#allocation3 + $0x22c] sm:$0xff]
      %v1295 = vld [vmem:[#allocation3 + $0x234] sm:$0xff]
      %v1296 = vld [vmem:[#allocation3 + $0x23c] sm:$0xf]
      %v1297 = vld [vmem:[#allocation3 + $0x240] sm:$0xff]
      %v1298 = vld [vmem:[#allocation3 + $0x248] sm:$0xff]
      %v1299 = vld [vmem:[#allocation3 + $0x250] sm:$0xff]
      %v1300 = vld [vmem:[#allocation3 + $0x258] sm:$0xff]
      %v1301 = vld [vmem:[#allocation3 + $0x260] sm:$0xf]
      %v1302 = vld [vmem:[#allocation3 + $0x264] sm:$0xff]
      %v1303 = vld [vmem:[#allocation3 + $0x26c] sm:$0xff]
      %v1304 = vld [vmem:[#allocation3 + $0x274] sm:$0xff]
      %v1305 = vld [vmem:[#allocation3 + $0x27c] sm:$0xff]
      %v1306 = vld [vmem:[#allocation3 + $0x284] sm:$0xf]
      %v1307 = vld [vmem:[#allocation3 + $0x288] sm:$0xff]
      %v1308 = vld [vmem:[#allocation3 + $0x290] sm:$0xff]
      %v1309 = vld [vmem:[#allocation3 + $0x298] sm:$0xff]
      %v1310 = vld [vmem:[#allocation3 + $0x2a0] sm:$0xff]
      %v1311 = vld [vmem:[#allocation3 + $0x2a8] sm:$0xf]
      %v1312 = vld [vmem:[#allocation3 + $0x2ac] sm:$0xff]
      %v1313 = vld [vmem:[#allocation3 + $0x2b4] sm:$0xff]
      %v1314 = vld [vmem:[#allocation3 + $0x2bc] sm:$0xff]
      %v1315 = vld [vmem:[#allocation3 + $0x2c4] sm:$0xff]
      %v1316 = vld [vmem:[#allocation3 + $0x2cc] sm:$0xf]
      %v1317 = vld [vmem:[#allocation3 + $0x2d0] sm:$0xff]
      %v1318 = vld [vmem:[#allocation3 + $0x2d8] sm:$0xff]
      %v1319 = vld [vmem:[#allocation3 + $0x2e0] sm:$0xff]
      %v1320 = vld [vmem:[#allocation3 + $0x2e8] sm:$0xff]
      %v1321 = vld [vmem:[#allocation3 + $0x2f0] sm:$0xf]
      %v1322 = vld [vmem:[#allocation3 + $0x2f4] sm:$0xff]
      %v1323 = vld [vmem:[#allocation3 + $0x2fc] sm:$0xff]
      %v1324 = vld [vmem:[#allocation3 + $0x304] sm:$0xff]
      %v1325 = vld [vmem:[#allocation3 + $0x30c] sm:$0xff]
      %v1326 = vld [vmem:[#allocation3 + $0x314] sm:$0xf]
      %v1327 = vld [vmem:[#allocation3 + $0x318] sm:$0xff]
      %v1328 = vld [vmem:[#allocation3 + $0x320] sm:$0xff]
      %v1329 = vld [vmem:[#allocation3 + $0x328] sm:$0xff]
      %v1330 = vld [vmem:[#allocation3 + $0x330] sm:$0xff]
      %v1331 = vld [vmem:[#allocation3 + $0x338] sm:$0xf]
      %v1332 = vld [vmem:[#allocation3 + $0x33c] sm:$0xff]
      %v1333 = vld [vmem:[#allocation3 + $0x344] sm:$0xff]
      %v1334 = vld [vmem:[#allocation3 + $0x34c] sm:$0xff]
      %v1335 = vld [vmem:[#allocation3 + $0x354] sm:$0xff]
      %v1336 = vld [vmem:[#allocation3 + $0x35c] sm:$0xf]
      %v1337 = vld [vmem:[#allocation3 + $0x360] sm:$0xff]
      %v1338 = vld [vmem:[#allocation3 + $0x368] sm:$0xff]
      %v1339 = vld [vmem:[#allocation3 + $0x370] sm:$0xff]
      %v1340 = vld [vmem:[#allocation3 + $0x378] sm:$0xff]
      %v1341 = vld [vmem:[#allocation3 + $0x380] sm:$0xf]
      %v1342 = vld [vmem:[#allocation3 + $0x384] sm:$0xff]
      %v1343 = vld [vmem:[#allocation3 + $0x38c] sm:$0xff]
      %v1344 = vld [vmem:[#allocation3 + $0x394] sm:$0xff]
      %v1345 = vld [vmem:[#allocation3 + $0x39c] sm:$0xff]
      %v1346 = vld [vmem:[#allocation3 + $0x3a4] sm:$0xf]
      %v1347 = vld [vmem:[#allocation3 + $0x3a8] sm:$0xff]
      %v1348 = vld [vmem:[#allocation3 + $0x3b0] sm:$0xff]
      %v1349 = vld [vmem:[#allocation3 + $0x3b8] sm:$0xff]
      %v1350 = vld [vmem:[#allocation3 + $0x3c0] sm:$0xff]
      %v1351 = vld [vmem:[#allocation3 + $0x3c8] sm:$0xf]
      %v1352 = vld [vmem:[#allocation3 + $0x3cc] sm:$0xff]
      %v1353 = vld [vmem:[#allocation3 + $0x3d4] sm:$0xff]
      %v1354 = vld [vmem:[#allocation3 + $0x3dc] sm:$0xff]
      %v1355 = vld [vmem:[#allocation3 + $0x3e4] sm:$0xff]
      %v1356 = vld [vmem:[#allocation3 + $0x3ec] sm:$0xf]
      %v1357 = vld [vmem:[#allocation3 + $0x3f0] sm:$0xff]
      %v1358 = vld [vmem:[#allocation3 + $0x3f8] sm:$0xff]
      %v1359 = vld [vmem:[#allocation3 + $0x400] sm:$0xff]
      %v1360 = vld [vmem:[#allocation3 + $0x408] sm:$0xff]
      %v1361 = vld [vmem:[#allocation3 + $0x410] sm:$0xf]
      %v1362 = vld [vmem:[#allocation3 + $0x414] sm:$0xff]
      %v1363 = vld [vmem:[#allocation3 + $0x41c] sm:$0xff]
      %v1364 = vld [vmem:[#allocation3 + $0x424] sm:$0xff]
      %v1365 = vld [vmem:[#allocation3 + $0x42c] sm:$0xff]
      %v1366 = vld [vmem:[#allocation3 + $0x434] sm:$0xf]
      %v1367 = vld [vmem:[#allocation3 + $0x438] sm:$0xff]
      %v1368 = vld [vmem:[#allocation3 + $0x440] sm:$0xff]
      %v1369 = vld [vmem:[#allocation3 + $0x448] sm:$0xff]
      %v1370 = vld [vmem:[#allocation3 + $0x450] sm:$0xff]
      %v1371 = vld [vmem:[#allocation3 + $0x458] sm:$0xf]
      %v1372 = vld [vmem:[#allocation3 + $0x45c] sm:$0xff]
      %v1373 = vld [vmem:[#allocation3 + $0x464] sm:$0xff]
      %v1374 = vld [vmem:[#allocation3 + $0x46c] sm:$0xff]
      %v1375 = vld [vmem:[#allocation3 + $0x474] sm:$0xff]
      %v1376 = vld [vmem:[#allocation3 + $0x47c] sm:$0xf]
      %v1377 = vld [vmem:[%s210] sm:$0xf]
      %v1378 = vld [vmem:[%s210 + $0x4] sm:$0xf]
      %v1379 = vld [vmem:[%s210 + $0x8] sm:$0xf]
      %v1380 = vld [vmem:[%s210 + $0xc] sm:$0xf]
      %v1381 = vld [vmem:[%s210 + $0x10] sm:$0xf]
      %v1382 = vld [vmem:[%s210 + $0x14] sm:$0xf]
      %v1383 = vld [vmem:[%s210 + $0x18] sm:$0xf]
      %v1384 = vld [vmem:[%s210 + $0x1c] sm:$0xf]
      %v1385 = vld [vmem:[%s210 + $0x20] sm:$0xf]
      %v1386 = vld [vmem:[%s210 + $0x24] sm:$0xf]
      %v1387 = vld [vmem:[%s210 + $0x28] sm:$0xf]
      %v1388 = vld [vmem:[%s210 + $0x2c] sm:$0xf]
      %v1389 = vld [vmem:[%s210 + $0x30] sm:$0xf]
      %v1390 = vld [vmem:[%s210 + $0x34] sm:$0xf]
      %v1391 = vld [vmem:[%s210 + $0x38] sm:$0xf]
      %v1392 = vld [vmem:[%s210 + $0x3c] sm:$0xf]
      %v1393 = vld [vmem:[%s210 + $0x40] sm:$0xf]
      %v1394 = vld [vmem:[%s210 + $0x44] sm:$0xf]
      %v1395 = vld [vmem:[%s210 + $0x48] sm:$0xf]
      %v1396 = vld [vmem:[%s210 + $0x4c] sm:$0xf]
      %v1397 = vld [vmem:[%s210 + $0x50] sm:$0xf]
      %v1398 = vld [vmem:[%s210 + $0x54] sm:$0xf]
      %v1399 = vld [vmem:[%s210 + $0x58] sm:$0xf]
      %v1400 = vld [vmem:[%s210 + $0x5c] sm:$0xf]
      %v1401 = vld [vmem:[%s210 + $0x60] sm:$0xf]
      %v1402 = vld [vmem:[%s210 + $0x64] sm:$0xf]
      %v1403 = vld [vmem:[%s210 + $0x68] sm:$0xf]
      %v1404 = vld [vmem:[%s210 + $0x6c] sm:$0xf]
      %v1405 = vld [vmem:[%s210 + $0x70] sm:$0xf]
      %v1406 = vld [vmem:[%s210 + $0x74] sm:$0xf]
      %v1407 = vld [vmem:[%s210 + $0x78] sm:$0xf]
      %v1408 = vld [vmem:[%s210 + $0x7c] sm:$0xf]
      %v1409 = vld [vmem:[%s210 + $0x80] sm:$0xf]
      %v1410 = vld [vmem:[%s210 + $0x84] sm:$0xf]
      %v1411 = vld [vmem:[%s210 + $0x88] sm:$0xf]
      %v1412 = vld [vmem:[%s210 + $0x8c] sm:$0xf]
      %v1413 = vld [vmem:[%s210 + $0x90] sm:$0xf]
      %v1414 = vld [vmem:[%s210 + $0x94] sm:$0xf]
      %v1415 = vld [vmem:[%s210 + $0x98] sm:$0xf]
      %v1416 = vld [vmem:[%s210 + $0x9c] sm:$0xf]
      %v1417 = vld [vmem:[%s210 + $0xa0] sm:$0xf]
      %v1418 = vld [vmem:[%s210 + $0xa4] sm:$0xf]
      %v1419 = vld [vmem:[%s210 + $0xa8] sm:$0xf]
      %v1420 = vld [vmem:[%s210 + $0xac] sm:$0xf]
      %v1421 = vld [vmem:[%s210 + $0xb0] sm:$0xf]
      %v1422 = vld [vmem:[%s210 + $0xb4] sm:$0xf]
      %v1423 = vld [vmem:[%s210 + $0xb8] sm:$0xf]
      %v1424 = vld [vmem:[%s210 + $0xbc] sm:$0xf]
      %v1425 = vld [vmem:[%s210 + $0xc0] sm:$0xf]
      %v1426 = vld [vmem:[%s210 + $0xc4] sm:$0xf]
      %v1427 = vld [vmem:[%s210 + $0xc8] sm:$0xf]
      %v1428 = vld [vmem:[%s210 + $0xcc] sm:$0xf]
      %v1429 = vld [vmem:[%s210 + $0xd0] sm:$0xf]
      %v1430 = vld [vmem:[%s210 + $0xd4] sm:$0xf]
      %v1431 = vld [vmem:[%s210 + $0xd8] sm:$0xf]
      %v1432 = vld [vmem:[%s210 + $0xdc] sm:$0xf]
      %v1433 = vld [vmem:[%s210 + $0xe0] sm:$0xf]
      %v1434 = vld [vmem:[%s210 + $0xe4] sm:$0xf]
      %v1435 = vld [vmem:[%s210 + $0xe8] sm:$0xf]
      %v1436 = vld [vmem:[%s210 + $0xec] sm:$0xf]
      %v1437 = vld [vmem:[%s210 + $0xf0] sm:$0xf]
      %v1438 = vld [vmem:[%s210 + $0xf4] sm:$0xf]
      %v1439 = vld [vmem:[%s210 + $0xf8] sm:$0xf]
      %v1440 = vld [vmem:[%s210 + $0xfc] sm:$0xf]
      %v1441 = vld [vmem:[%s210 + $0x100] sm:$0xf]
      %v1442 = vld [vmem:[%s210 + $0x104] sm:$0xf]
      %v1443 = vld [vmem:[%s210 + $0x108] sm:$0xf]
      %v1444 = vld [vmem:[%s210 + $0x10c] sm:$0xf]
      %v1445 = vld [vmem:[%s210 + $0x110] sm:$0xf]
      %v1446 = vld [vmem:[%s210 + $0x114] sm:$0xf]
      %v1447 = vld [vmem:[%s210 + $0x118] sm:$0xf]
      %v1448 = vld [vmem:[%s210 + $0x11c] sm:$0xf]
      %v1449 = vld [vmem:[%s210 + $0x120] sm:$0xf]
      %v1450 = vld [vmem:[%s210 + $0x124] sm:$0xf]
      %v1451 = vld [vmem:[%s210 + $0x128] sm:$0xf]
      %v1452 = vld [vmem:[%s210 + $0x12c] sm:$0xf]
      %v1453 = vld [vmem:[%s210 + $0x130] sm:$0xf]
      %v1454 = vld [vmem:[%s210 + $0x134] sm:$0xf]
      %v1455 = vld [vmem:[%s210 + $0x138] sm:$0xf]
      %v1456 = vld [vmem:[%s210 + $0x13c] sm:$0xf]
      %v1457 = vld [vmem:[%s210 + $0x140] sm:$0xf]
      %v1458 = vld [vmem:[%s210 + $0x144] sm:$0xf]
      %v1459 = vld [vmem:[%s210 + $0x148] sm:$0xf]
      %v1460 = vld [vmem:[%s210 + $0x14c] sm:$0xf]
      %v1461 = vld [vmem:[%s210 + $0x150] sm:$0xf]
      %v1462 = vld [vmem:[%s210 + $0x154] sm:$0xf]
      %v1463 = vld [vmem:[%s210 + $0x158] sm:$0xf]
      %v1464 = vld [vmem:[%s210 + $0x15c] sm:$0xf]
      %v1465 = vld [vmem:[%s210 + $0x160] sm:$0xf]
      %v1466 = vld [vmem:[%s210 + $0x164] sm:$0xf]
      %v1467 = vld [vmem:[%s210 + $0x168] sm:$0xf]
      %v1468 = vld [vmem:[%s210 + $0x16c] sm:$0xf]
      %v1469 = vld [vmem:[%s210 + $0x170] sm:$0xf]
      %v1470 = vld [vmem:[%s210 + $0x174] sm:$0xf]
      %v1471 = vld [vmem:[%s210 + $0x178] sm:$0xf]
      %v1472 = vld [vmem:[%s210 + $0x17c] sm:$0xf]
      %v1473 = vld [vmem:[%s210 + $0x180] sm:$0xf]
      %v1474 = vld [vmem:[%s210 + $0x184] sm:$0xf]
      %v1475 = vld [vmem:[%s210 + $0x188] sm:$0xf]
      %v1476 = vld [vmem:[%s210 + $0x18c] sm:$0xf]
      %v1477 = vld [vmem:[%s210 + $0x190] sm:$0xf]
      %v1478 = vld [vmem:[%s210 + $0x194] sm:$0xf]
      %v1479 = vld [vmem:[%s210 + $0x198] sm:$0xf]
      %v1480 = vld [vmem:[%s210 + $0x19c] sm:$0xf]
      %v1481 = vld [vmem:[%s210 + $0x1a0] sm:$0xf]
      %v1482 = vld [vmem:[%s210 + $0x1a4] sm:$0xf]
      %v1483 = vld [vmem:[%s210 + $0x1a8] sm:$0xf]
      %v1484 = vld [vmem:[%s210 + $0x1ac] sm:$0xf]
      %v1485 = vld [vmem:[%s210 + $0x1b0] sm:$0xf]
      %v1486 = vld [vmem:[%s210 + $0x1b4] sm:$0xf]
      %v1487 = vld [vmem:[%s210 + $0x1b8] sm:$0xf]
      %v1488 = vld [vmem:[%s210 + $0x1bc] sm:$0xf]
      %v1489 = vld [vmem:[%s210 + $0x1c0] sm:$0xf]
      %v1490 = vld [vmem:[%s210 + $0x1c4] sm:$0xf]
      %v1491 = vld [vmem:[%s210 + $0x1c8] sm:$0xf]
      %v1492 = vld [vmem:[%s210 + $0x1cc] sm:$0xf]
      %v1493 = vld [vmem:[%s210 + $0x1d0] sm:$0xf]
      %v1494 = vld [vmem:[%s210 + $0x1d4] sm:$0xf]
      %v1495 = vld [vmem:[%s210 + $0x1d8] sm:$0xf]
      %v1496 = vld [vmem:[%s210 + $0x1dc] sm:$0xf]
      %v1497 = vld [vmem:[%s210 + $0x1e0] sm:$0xf]
      %v1498 = vld [vmem:[%s210 + $0x1e4] sm:$0xf]
      %v1499 = vld [vmem:[%s210 + $0x1e8] sm:$0xf]
      %v1500 = vld [vmem:[%s210 + $0x1ec] sm:$0xf]
      %v1501 = vld [vmem:[%s210 + $0x1f0] sm:$0xf]
      %v1502 = vld [vmem:[%s210 + $0x1f4] sm:$0xf]
      %v1503 = vld [vmem:[%s210 + $0x1f8] sm:$0xf]
      %v1504 = vld [vmem:[%s210 + $0x1fc] sm:$0xf]
      %v1505 = vld [vmem:[%s210 + $0x200] sm:$0xf]
      %v1506 = vld [vmem:[%s210 + $0x204] sm:$0xf]
      %v1507 = vld [vmem:[%s210 + $0x208] sm:$0xf]
      %v1508 = vld [vmem:[%s210 + $0x20c] sm:$0xf]
      %v1509 = vld [vmem:[%s210 + $0x210] sm:$0xf]
      %v1510 = vld [vmem:[%s210 + $0x214] sm:$0xf]
      %v1511 = vld [vmem:[%s210 + $0x218] sm:$0xf]
      %v1512 = vld [vmem:[%s210 + $0x21c] sm:$0xf]
      %v1513 = vld [vmem:[%s210 + $0x220] sm:$0xf]
      %v1514 = vld [vmem:[%s210 + $0x224] sm:$0xf]
      %v1515 = vld [vmem:[%s210 + $0x228] sm:$0xf]
      %v1516 = vld [vmem:[%s210 + $0x22c] sm:$0xf]
      %v1517 = vld [vmem:[%s210 + $0x230] sm:$0xf]
      %v1518 = vld [vmem:[%s210 + $0x234] sm:$0xf]
      %v1519 = vld [vmem:[%s210 + $0x238] sm:$0xf]
      %v1520 = vld [vmem:[%s210 + $0x23c] sm:$0xf]
      %v1521 = vld [vmem:[%s213] sm:$0x1]
      %v1523 = vperm.slane %v1521, 0
      %v1685 = vunpack.c.l.b16 %v1217
      %v1686 = vunpack.c.h.b16 %v1217
      %v1687 = vunpack.c.l.b16 %v1218
      %v1688 = vunpack.c.h.b16 %v1218
      %v1689 = vunpack.c.l.b16 %v1219
      %v1690 = vunpack.c.h.b16 %v1219
      %v1691 = vunpack.c.l.b16 %v1220
      %v1692 = vunpack.c.h.b16 %v1220
      %v1693 = vunpack.c.l.b16 %v1221
      %v1694 = vunpack.c.l.b16 %v1222
      %v1695 = vunpack.c.h.b16 %v1222
      %v1696 = vunpack.c.l.b16 %v1223
      %v1697 = vunpack.c.h.b16 %v1223
      %v1698 = vunpack.c.l.b16 %v1224
      %v1699 = vunpack.c.h.b16 %v1224
      %v1700 = vunpack.c.l.b16 %v1225
      %v1701 = vunpack.c.h.b16 %v1225
      %v1702 = vunpack.c.l.b16 %v1226
      %v1703 = vunpack.c.l.b16 %v1227
      %v1704 = vunpack.c.h.b16 %v1227
      %v1705 = vunpack.c.l.b16 %v1228
      %v1706 = vunpack.c.h.b16 %v1228
      %v1707 = vunpack.c.l.b16 %v1229
      %v1708 = vunpack.c.h.b16 %v1229
      %v1709 = vunpack.c.l.b16 %v1230
      %v1710 = vunpack.c.h.b16 %v1230
      %v1711 = vunpack.c.l.b16 %v1231
      %v1712 = vunpack.c.l.b16 %v1232
      %v1713 = vunpack.c.h.b16 %v1232
      %v1714 = vunpack.c.l.b16 %v1233
      %v1715 = vunpack.c.h.b16 %v1233
      %v1716 = vunpack.c.l.b16 %v1234
      %v1717 = vunpack.c.h.b16 %v1234
      %v1718 = vunpack.c.l.b16 %v1235
      %v1719 = vunpack.c.h.b16 %v1235
      %v1720 = vunpack.c.l.b16 %v1236
      %v1721 = vunpack.c.l.b16 %v1237
      %v1722 = vunpack.c.h.b16 %v1237
      %v1723 = vunpack.c.l.b16 %v1238
      %v1724 = vunpack.c.h.b16 %v1238
      %v1725 = vunpack.c.l.b16 %v1239
      %v1726 = vunpack.c.h.b16 %v1239
      %v1727 = vunpack.c.l.b16 %v1240
      %v1728 = vunpack.c.h.b16 %v1240
      %v1729 = vunpack.c.l.b16 %v1241
      %v1730 = vunpack.c.l.b16 %v1242
      %v1731 = vunpack.c.h.b16 %v1242
      %v1732 = vunpack.c.l.b16 %v1243
      %v1733 = vunpack.c.h.b16 %v1243
      %v1734 = vunpack.c.l.b16 %v1244
      %v1735 = vunpack.c.h.b16 %v1244
      %v1736 = vunpack.c.l.b16 %v1245
      %v1737 = vunpack.c.h.b16 %v1245
      %v1738 = vunpack.c.l.b16 %v1246
      %v1739 = vunpack.c.l.b16 %v1247
      %v1740 = vunpack.c.h.b16 %v1247
      %v1741 = vunpack.c.l.b16 %v1248
      %v1742 = vunpack.c.h.b16 %v1248
      %v1743 = vunpack.c.l.b16 %v1249
      %v1744 = vunpack.c.h.b16 %v1249
      %v1745 = vunpack.c.l.b16 %v1250
      %v1746 = vunpack.c.h.b16 %v1250
      %v1747 = vunpack.c.l.b16 %v1251
      %v1748 = vunpack.c.l.b16 %v1252
      %v1749 = vunpack.c.h.b16 %v1252
      %v1750 = vunpack.c.l.b16 %v1253
      %v1751 = vunpack.c.h.b16 %v1253
      %v1752 = vunpack.c.l.b16 %v1254
      %v1753 = vunpack.c.h.b16 %v1254
      %v1754 = vunpack.c.l.b16 %v1255
      %v1755 = vunpack.c.h.b16 %v1255
      %v1756 = vunpack.c.l.b16 %v1256
      %v1757 = vunpack.c.l.b16 %v1257
      %v1758 = vunpack.c.h.b16 %v1257
      %v1759 = vunpack.c.l.b16 %v1258
      %v1760 = vunpack.c.h.b16 %v1258
      %v1761 = vunpack.c.l.b16 %v1259
      %v1762 = vunpack.c.h.b16 %v1259
      %v1763 = vunpack.c.l.b16 %v1260
      %v1764 = vunpack.c.h.b16 %v1260
      %v1765 = vunpack.c.l.b16 %v1261
      %v1766 = vunpack.c.l.b16 %v1262
      %v1767 = vunpack.c.h.b16 %v1262
      %v1768 = vunpack.c.l.b16 %v1263
      %v1769 = vunpack.c.h.b16 %v1263
      %v1770 = vunpack.c.l.b16 %v1264
      %v1771 = vunpack.c.h.b16 %v1264
      %v1772 = vunpack.c.l.b16 %v1265
      %v1773 = vunpack.c.h.b16 %v1265
      %v1774 = vunpack.c.l.b16 %v1266
      %v1775 = vunpack.c.l.b16 %v1267
      %v1776 = vunpack.c.h.b16 %v1267
      %v1777 = vunpack.c.l.b16 %v1268
      %v1778 = vunpack.c.h.b16 %v1268
      %v1779 = vunpack.c.l.b16 %v1269
      %v1780 = vunpack.c.h.b16 %v1269
      %v1781 = vunpack.c.l.b16 %v1270
      %v1782 = vunpack.c.h.b16 %v1270
      %v1783 = vunpack.c.l.b16 %v1271
      %v1784 = vunpack.c.l.b16 %v1272
      %v1785 = vunpack.c.h.b16 %v1272
      %v1786 = vunpack.c.l.b16 %v1273
      %v1787 = vunpack.c.h.b16 %v1273
      %v1788 = vunpack.c.l.b16 %v1274
      %v1789 = vunpack.c.h.b16 %v1274
      %v1790 = vunpack.c.l.b16 %v1275
      %v1791 = vunpack.c.h.b16 %v1275
      %v1792 = vunpack.c.l.b16 %v1276
      %v1793 = vunpack.c.l.b16 %v1277
      %v1794 = vunpack.c.h.b16 %v1277
      %v1795 = vunpack.c.l.b16 %v1278
      %v1796 = vunpack.c.h.b16 %v1278
      %v1797 = vunpack.c.l.b16 %v1279
      %v1798 = vunpack.c.h.b16 %v1279
      %v1799 = vunpack.c.l.b16 %v1280
      %v1800 = vunpack.c.h.b16 %v1280
      %v1801 = vunpack.c.l.b16 %v1281
      %v1802 = vunpack.c.l.b16 %v1282
      %v1803 = vunpack.c.h.b16 %v1282
      %v1804 = vunpack.c.l.b16 %v1283
      %v1805 = vunpack.c.h.b16 %v1283
      %v1806 = vunpack.c.l.b16 %v1284
      %v1807 = vunpack.c.h.b16 %v1284
      %v1808 = vunpack.c.l.b16 %v1285
      %v1809 = vunpack.c.h.b16 %v1285
      %v1810 = vunpack.c.l.b16 %v1286
      %v1811 = vunpack.c.l.b16 %v1287
      %v1812 = vunpack.c.h.b16 %v1287
      %v1813 = vunpack.c.l.b16 %v1288
      %v1814 = vunpack.c.h.b16 %v1288
      %v1815 = vunpack.c.l.b16 %v1289
      %v1816 = vunpack.c.h.b16 %v1289
      %v1817 = vunpack.c.l.b16 %v1290
      %v1818 = vunpack.c.h.b16 %v1290
      %v1819 = vunpack.c.l.b16 %v1291
      %v1820 = vunpack.c.l.b16 %v1292
      %v1821 = vunpack.c.h.b16 %v1292
      %v1822 = vunpack.c.l.b16 %v1293
      %v1823 = vunpack.c.h.b16 %v1293
      %v1824 = vunpack.c.l.b16 %v1294
      %v1825 = vunpack.c.h.b16 %v1294
      %v1826 = vunpack.c.l.b16 %v1295
      %v1827 = vunpack.c.h.b16 %v1295
      %v1828 = vunpack.c.l.b16 %v1296
      %v1829 = vunpack.c.l.b16 %v1297
      %v1830 = vunpack.c.h.b16 %v1297
      %v1831 = vunpack.c.l.b16 %v1298
      %v1832 = vunpack.c.h.b16 %v1298
      %v1833 = vunpack.c.l.b16 %v1299
      %v1834 = vunpack.c.h.b16 %v1299
      %v1835 = vunpack.c.l.b16 %v1300
      %v1836 = vunpack.c.h.b16 %v1300
      %v1837 = vunpack.c.l.b16 %v1301
      %v1838 = vunpack.c.l.b16 %v1302
      %v1839 = vunpack.c.h.b16 %v1302
      %v1840 = vunpack.c.l.b16 %v1303
      %v1841 = vunpack.c.h.b16 %v1303
      %v1842 = vunpack.c.l.b16 %v1304
      %v1843 = vunpack.c.h.b16 %v1304
      %v1844 = vunpack.c.l.b16 %v1305
      %v1845 = vunpack.c.h.b16 %v1305
      %v1846 = vunpack.c.l.b16 %v1306
      %v1847 = vunpack.c.l.b16 %v1307
      %v1848 = vunpack.c.h.b16 %v1307
      %v1849 = vunpack.c.l.b16 %v1308
      %v1850 = vunpack.c.h.b16 %v1308
      %v1851 = vunpack.c.l.b16 %v1309
      %v1852 = vunpack.c.h.b16 %v1309
      %v1853 = vunpack.c.l.b16 %v1310
      %v1854 = vunpack.c.h.b16 %v1310
      %v1855 = vunpack.c.l.b16 %v1311
      %v1856 = vunpack.c.l.b16 %v1312
      %v1857 = vunpack.c.h.b16 %v1312
      %v1858 = vunpack.c.l.b16 %v1313
      %v1859 = vunpack.c.h.b16 %v1313
      %v1860 = vunpack.c.l.b16 %v1314
      %v1861 = vunpack.c.h.b16 %v1314
      %v1862 = vunpack.c.l.b16 %v1315
      %v1863 = vunpack.c.h.b16 %v1315
      %v1864 = vunpack.c.l.b16 %v1316
      %v1865 = vunpack.c.l.b16 %v1317
      %v1866 = vunpack.c.h.b16 %v1317
      %v1867 = vunpack.c.l.b16 %v1318
      %v1868 = vunpack.c.h.b16 %v1318
      %v1869 = vunpack.c.l.b16 %v1319
      %v1870 = vunpack.c.h.b16 %v1319
      %v1871 = vunpack.c.l.b16 %v1320
      %v1872 = vunpack.c.h.b16 %v1320
      %v1873 = vunpack.c.l.b16 %v1321
      %v1874 = vunpack.c.l.b16 %v1322
      %v1875 = vunpack.c.h.b16 %v1322
      %v1876 = vunpack.c.l.b16 %v1323
      %v1877 = vunpack.c.h.b16 %v1323
      %v1878 = vunpack.c.l.b16 %v1324
      %v1879 = vunpack.c.h.b16 %v1324
      %v1880 = vunpack.c.l.b16 %v1325
      %v1881 = vunpack.c.h.b16 %v1325
      %v1882 = vunpack.c.l.b16 %v1326
      %v1883 = vunpack.c.l.b16 %v1327
      %v1884 = vunpack.c.h.b16 %v1327
      %v1885 = vunpack.c.l.b16 %v1328
      %v1886 = vunpack.c.h.b16 %v1328
      %v1887 = vunpack.c.l.b16 %v1329
      %v1888 = vunpack.c.h.b16 %v1329
      %v1889 = vunpack.c.l.b16 %v1330
      %v1890 = vunpack.c.h.b16 %v1330
      %v1891 = vunpack.c.l.b16 %v1331
      %v1892 = vunpack.c.l.b16 %v1332
      %v1893 = vunpack.c.h.b16 %v1332
      %v1894 = vunpack.c.l.b16 %v1333
      %v1895 = vunpack.c.h.b16 %v1333
      %v1896 = vunpack.c.l.b16 %v1334
      %v1897 = vunpack.c.h.b16 %v1334
      %v1898 = vunpack.c.l.b16 %v1335
      %v1899 = vunpack.c.h.b16 %v1335
      %v1900 = vunpack.c.l.b16 %v1336
      %v1901 = vunpack.c.l.b16 %v1337
      %v1902 = vunpack.c.h.b16 %v1337
      %v1903 = vunpack.c.l.b16 %v1338
      %v1904 = vunpack.c.h.b16 %v1338
      %v1905 = vunpack.c.l.b16 %v1339
      %v1906 = vunpack.c.h.b16 %v1339
      %v1907 = vunpack.c.l.b16 %v1340
      %v1908 = vunpack.c.h.b16 %v1340
      %v1909 = vunpack.c.l.b16 %v1341
      %v1910 = vunpack.c.l.b16 %v1342
      %v1911 = vunpack.c.h.b16 %v1342
      %v1912 = vunpack.c.l.b16 %v1343
      %v1913 = vunpack.c.h.b16 %v1343
      %v1914 = vunpack.c.l.b16 %v1344
      %v1915 = vunpack.c.h.b16 %v1344
      %v1916 = vunpack.c.l.b16 %v1345
      %v1917 = vunpack.c.h.b16 %v1345
      %v1918 = vunpack.c.l.b16 %v1346
      %v1919 = vunpack.c.l.b16 %v1347
      %v1920 = vunpack.c.h.b16 %v1347
      %v1921 = vunpack.c.l.b16 %v1348
      %v1922 = vunpack.c.h.b16 %v1348
      %v1923 = vunpack.c.l.b16 %v1349
      %v1924 = vunpack.c.h.b16 %v1349
      %v1925 = vunpack.c.l.b16 %v1350
      %v1926 = vunpack.c.h.b16 %v1350
      %v1927 = vunpack.c.l.b16 %v1351
      %v1928 = vunpack.c.l.b16 %v1352
      %v1929 = vunpack.c.h.b16 %v1352
      %v1930 = vunpack.c.l.b16 %v1353
      %v1931 = vunpack.c.h.b16 %v1353
      %v1932 = vunpack.c.l.b16 %v1354
      %v1933 = vunpack.c.h.b16 %v1354
      %v1934 = vunpack.c.l.b16 %v1355
      %v1935 = vunpack.c.h.b16 %v1355
      %v1936 = vunpack.c.l.b16 %v1356
      %v1937 = vunpack.c.l.b16 %v1357
      %v1938 = vunpack.c.h.b16 %v1357
      %v1939 = vunpack.c.l.b16 %v1358
      %v1940 = vunpack.c.h.b16 %v1358
      %v1941 = vunpack.c.l.b16 %v1359
      %v1942 = vunpack.c.h.b16 %v1359
      %v1943 = vunpack.c.l.b16 %v1360
      %v1944 = vunpack.c.h.b16 %v1360
      %v1945 = vunpack.c.l.b16 %v1361
      %v1946 = vunpack.c.l.b16 %v1362
      %v1947 = vunpack.c.h.b16 %v1362
      %v1948 = vunpack.c.l.b16 %v1363
      %v1949 = vunpack.c.h.b16 %v1363
      %v1950 = vunpack.c.l.b16 %v1364
      %v1951 = vunpack.c.h.b16 %v1364
      %v1952 = vunpack.c.l.b16 %v1365
      %v1953 = vunpack.c.h.b16 %v1365
      %v1954 = vunpack.c.l.b16 %v1366
      %v1955 = vunpack.c.l.b16 %v1367
      %v1956 = vunpack.c.h.b16 %v1367
      %v1957 = vunpack.c.l.b16 %v1368
      %v1958 = vunpack.c.h.b16 %v1368
      %v1959 = vunpack.c.l.b16 %v1369
      %v1960 = vunpack.c.h.b16 %v1369
      %v1961 = vunpack.c.l.b16 %v1370
      %v1962 = vunpack.c.h.b16 %v1370
      %v1963 = vunpack.c.l.b16 %v1371
      %v1964 = vunpack.c.l.b16 %v1372
      %v1965 = vunpack.c.h.b16 %v1372
      %v1966 = vunpack.c.l.b16 %v1373
      %v1967 = vunpack.c.h.b16 %v1373
      %v1968 = vunpack.c.l.b16 %v1374
      %v1969 = vunpack.c.h.b16 %v1374
      %v1970 = vunpack.c.l.b16 %v1375
      %v1971 = vunpack.c.h.b16 %v1375
      %v1972 = vunpack.c.l.b16 %v1376
      %v1973 = vpack.c.b16 %v1694, %v1685
      %v1974 = vpack.c.b16 %v1695, %v1686
      %v1975 = vpack.c.b16 %v1696, %v1687
      %v1976 = vpack.c.b16 %v1697, %v1688
      %v1977 = vpack.c.b16 %v1698, %v1689
      %v1978 = vpack.c.b16 %v1699, %v1690
      %v1979 = vpack.c.b16 %v1700, %v1691
      %v1980 = vpack.c.b16 %v1701, %v1692
      %v1981 = vpack.c.b16 %v1702, %v1693
      %v1982 = vpack.c.b16 %v1712, %v1703
      %v1983 = vpack.c.b16 %v1713, %v1704
      %v1984 = vpack.c.b16 %v1714, %v1705
      %v1985 = vpack.c.b16 %v1715, %v1706
      %v1986 = vpack.c.b16 %v1716, %v1707
      %v1987 = vpack.c.b16 %v1717, %v1708
      %v1988 = vpack.c.b16 %v1718, %v1709
      %v1989 = vpack.c.b16 %v1719, %v1710
      %v1990 = vpack.c.b16 %v1720, %v1711
      %v1991 = vpack.c.b16 %v1730, %v1721
      %v1992 = vpack.c.b16 %v1731, %v1722
      %v1993 = vpack.c.b16 %v1732, %v1723
      %v1994 = vpack.c.b16 %v1733, %v1724
      %v1995 = vpack.c.b16 %v1734, %v1725
      %v1996 = vpack.c.b16 %v1735, %v1726
      %v1997 = vpack.c.b16 %v1736, %v1727
      %v1998 = vpack.c.b16 %v1737, %v1728
      %v1999 = vpack.c.b16 %v1738, %v1729
      %v2000 = vpack.c.b16 %v1748, %v1739
      %v2001 = vpack.c.b16 %v1749, %v1740
      %v2002 = vpack.c.b16 %v1750, %v1741
      %v2003 = vpack.c.b16 %v1751, %v1742
      %v2004 = vpack.c.b16 %v1752, %v1743
      %v2005 = vpack.c.b16 %v1753, %v1744
      %v2006 = vpack.c.b16 %v1754, %v1745
      %v2007 = vpack.c.b16 %v1755, %v1746
      %v2008 = vpack.c.b16 %v1756, %v1747
      %v2009 = vpack.c.b16 %v1766, %v1757
      %v2010 = vpack.c.b16 %v1767, %v1758
      %v2011 = vpack.c.b16 %v1768, %v1759
      %v2012 = vpack.c.b16 %v1769, %v1760
      %v2013 = vpack.c.b16 %v1770, %v1761
      %v2014 = vpack.c.b16 %v1771, %v1762
      %v2015 = vpack.c.b16 %v1772, %v1763
      %v2016 = vpack.c.b16 %v1773, %v1764
      %v2017 = vpack.c.b16 %v1774, %v1765
      %v2018 = vpack.c.b16 %v1784, %v1775
      %v2019 = vpack.c.b16 %v1785, %v1776
      %v2020 = vpack.c.b16 %v1786, %v1777
      %v2021 = vpack.c.b16 %v1787, %v1778
      %v2022 = vpack.c.b16 %v1788, %v1779
      %v2023 = vpack.c.b16 %v1789, %v1780
      %v2024 = vpack.c.b16 %v1790, %v1781
      %v2025 = vpack.c.b16 %v1791, %v1782
      %v2026 = vpack.c.b16 %v1792, %v1783
      %v2027 = vpack.c.b16 %v1802, %v1793
      %v2028 = vpack.c.b16 %v1803, %v1794
      %v2029 = vpack.c.b16 %v1804, %v1795
      %v2030 = vpack.c.b16 %v1805, %v1796
      %v2031 = vpack.c.b16 %v1806, %v1797
      %v2032 = vpack.c.b16 %v1807, %v1798
      %v2033 = vpack.c.b16 %v1808, %v1799
      %v2034 = vpack.c.b16 %v1809, %v1800
      %v2035 = vpack.c.b16 %v1810, %v1801
      %v2036 = vpack.c.b16 %v1820, %v1811
      %v2037 = vpack.c.b16 %v1821, %v1812
      %v2038 = vpack.c.b16 %v1822, %v1813
      %v2039 = vpack.c.b16 %v1823, %v1814
      %v2040 = vpack.c.b16 %v1824, %v1815
      %v2041 = vpack.c.b16 %v1825, %v1816
      %v2042 = vpack.c.b16 %v1826, %v1817
      %v2043 = vpack.c.b16 %v1827, %v1818
      %v2044 = vpack.c.b16 %v1828, %v1819
      %v2045 = vpack.c.b16 %v1838, %v1829
      %v2046 = vpack.c.b16 %v1839, %v1830
      %v2047 = vpack.c.b16 %v1840, %v1831
      %v2048 = vpack.c.b16 %v1841, %v1832
      %v2049 = vpack.c.b16 %v1842, %v1833
      %v2050 = vpack.c.b16 %v1843, %v1834
      %v2051 = vpack.c.b16 %v1844, %v1835
      %v2052 = vpack.c.b16 %v1845, %v1836
      %v2053 = vpack.c.b16 %v1846, %v1837
      %v2054 = vpack.c.b16 %v1856, %v1847
      %v2055 = vpack.c.b16 %v1857, %v1848
      %v2056 = vpack.c.b16 %v1858, %v1849
      %v2057 = vpack.c.b16 %v1859, %v1850
      %v2058 = vpack.c.b16 %v1860, %v1851
      %v2059 = vpack.c.b16 %v1861, %v1852
      %v2060 = vpack.c.b16 %v1862, %v1853
      %v2061 = vpack.c.b16 %v1863, %v1854
      %v2062 = vpack.c.b16 %v1864, %v1855
      %v2063 = vpack.c.b16 %v1874, %v1865
      %v2064 = vpack.c.b16 %v1875, %v1866
      %v2065 = vpack.c.b16 %v1876, %v1867
      %v2066 = vpack.c.b16 %v1877, %v1868
      %v2067 = vpack.c.b16 %v1878, %v1869
      %v2068 = vpack.c.b16 %v1879, %v1870
      %v2069 = vpack.c.b16 %v1880, %v1871
      %v2070 = vpack.c.b16 %v1881, %v1872
      %v2071 = vpack.c.b16 %v1882, %v1873
      %v2072 = vpack.c.b16 %v1892, %v1883
      %v2073 = vpack.c.b16 %v1893, %v1884
      %v2074 = vpack.c.b16 %v1894, %v1885
      %v2075 = vpack.c.b16 %v1895, %v1886
      %v2076 = vpack.c.b16 %v1896, %v1887
      %v2077 = vpack.c.b16 %v1897, %v1888
      %v2078 = vpack.c.b16 %v1898, %v1889
      %v2079 = vpack.c.b16 %v1899, %v1890
      %v2080 = vpack.c.b16 %v1900, %v1891
      %v2081 = vpack.c.b16 %v1910, %v1901
      %v2082 = vpack.c.b16 %v1911, %v1902
      %v2083 = vpack.c.b16 %v1912, %v1903
      %v2084 = vpack.c.b16 %v1913, %v1904
      %v2085 = vpack.c.b16 %v1914, %v1905
      %v2086 = vpack.c.b16 %v1915, %v1906
      %v2087 = vpack.c.b16 %v1916, %v1907
      %v2088 = vpack.c.b16 %v1917, %v1908
      %v2089 = vpack.c.b16 %v1918, %v1909
      %v2090 = vpack.c.b16 %v1928, %v1919
      %v2091 = vpack.c.b16 %v1929, %v1920
      %v2092 = vpack.c.b16 %v1930, %v1921
      %v2093 = vpack.c.b16 %v1931, %v1922
      %v2094 = vpack.c.b16 %v1932, %v1923
      %v2095 = vpack.c.b16 %v1933, %v1924
      %v2096 = vpack.c.b16 %v1934, %v1925
      %v2097 = vpack.c.b16 %v1935, %v1926
      %v2098 = vpack.c.b16 %v1936, %v1927
      %v2099 = vpack.c.b16 %v1946, %v1937
      %v2100 = vpack.c.b16 %v1947, %v1938
      %v2101 = vpack.c.b16 %v1948, %v1939
      %v2102 = vpack.c.b16 %v1949, %v1940
      %v2103 = vpack.c.b16 %v1950, %v1941
      %v2104 = vpack.c.b16 %v1951, %v1942
      %v2105 = vpack.c.b16 %v1952, %v1943
      %v2106 = vpack.c.b16 %v1953, %v1944
      %v2107 = vpack.c.b16 %v1954, %v1945
      %v2108 = vpack.c.b16 %v1964, %v1955
      %v2109 = vpack.c.b16 %v1965, %v1956
      %v2110 = vpack.c.b16 %v1966, %v1957
      %v2111 = vpack.c.b16 %v1967, %v1958
      %v2112 = vpack.c.b16 %v1968, %v1959
      %v2113 = vpack.c.b16 %v1969, %v1960
      %v2114 = vpack.c.b16 %v1970, %v1961
      %v2115 = vpack.c.b16 %v1971, %v1962
      %v2116 = vpack.c.b16 %v1972, %v1963
      %v2405 = vunpack.c.l.b16 %v1377
      %v2406 = vunpack.c.l.b16 %v1378
      %v2407 = vunpack.c.l.b16 %v1379
      %v2408 = vunpack.c.l.b16 %v1380
      %v2409 = vunpack.c.l.b16 %v1381
      %v2410 = vunpack.c.l.b16 %v1382
      %v2411 = vunpack.c.l.b16 %v1383
      %v2412 = vunpack.c.l.b16 %v1384
      %v2413 = vunpack.c.l.b16 %v1385
      %v2414 = vunpack.c.l.b16 %v1386
      %v2415 = vunpack.c.l.b16 %v1387
      %v2416 = vunpack.c.l.b16 %v1388
      %v2417 = vunpack.c.l.b16 %v1389
      %v2418 = vunpack.c.l.b16 %v1390
      %v2419 = vunpack.c.l.b16 %v1391
      %v2420 = vunpack.c.l.b16 %v1392
      %v2421 = vunpack.c.l.b16 %v1393
      %v2422 = vunpack.c.l.b16 %v1394
      %v2423 = vunpack.c.l.b16 %v1395
      %v2424 = vunpack.c.l.b16 %v1396
      %v2425 = vunpack.c.l.b16 %v1397
      %v2426 = vunpack.c.l.b16 %v1398
      %v2427 = vunpack.c.l.b16 %v1399
      %v2428 = vunpack.c.l.b16 %v1400
      %v2429 = vunpack.c.l.b16 %v1401
      %v2430 = vunpack.c.l.b16 %v1402
      %v2431 = vunpack.c.l.b16 %v1403
      %v2432 = vunpack.c.l.b16 %v1404
      %v2433 = vunpack.c.l.b16 %v1405
      %v2434 = vunpack.c.l.b16 %v1406
      %v2435 = vunpack.c.l.b16 %v1407
      %v2436 = vunpack.c.l.b16 %v1408
      %v2437 = vunpack.c.l.b16 %v1409
      %v2438 = vunpack.c.l.b16 %v1410
      %v2439 = vunpack.c.l.b16 %v1411
      %v2440 = vunpack.c.l.b16 %v1412
      %v2441 = vunpack.c.l.b16 %v1413
      %v2442 = vunpack.c.l.b16 %v1414
      %v2443 = vunpack.c.l.b16 %v1415
      %v2444 = vunpack.c.l.b16 %v1416
      %v2445 = vunpack.c.l.b16 %v1417
      %v2446 = vunpack.c.l.b16 %v1418
      %v2447 = vunpack.c.l.b16 %v1419
      %v2448 = vunpack.c.l.b16 %v1420
      %v2449 = vunpack.c.l.b16 %v1421
      %v2450 = vunpack.c.l.b16 %v1422
      %v2451 = vunpack.c.l.b16 %v1423
      %v2452 = vunpack.c.l.b16 %v1424
      %v2453 = vunpack.c.l.b16 %v1425
      %v2454 = vunpack.c.l.b16 %v1426
      %v2455 = vunpack.c.l.b16 %v1427
      %v2456 = vunpack.c.l.b16 %v1428
      %v2457 = vunpack.c.l.b16 %v1429
      %v2458 = vunpack.c.l.b16 %v1430
      %v2459 = vunpack.c.l.b16 %v1431
      %v2460 = vunpack.c.l.b16 %v1432
      %v2461 = vunpack.c.l.b16 %v1433
      %v2462 = vunpack.c.l.b16 %v1434
      %v2463 = vunpack.c.l.b16 %v1435
      %v2464 = vunpack.c.l.b16 %v1436
      %v2465 = vunpack.c.l.b16 %v1437
      %v2466 = vunpack.c.l.b16 %v1438
      %v2467 = vunpack.c.l.b16 %v1439
      %v2468 = vunpack.c.l.b16 %v1440
      %v2469 = vunpack.c.l.b16 %v1441
      %v2470 = vunpack.c.l.b16 %v1442
      %v2471 = vunpack.c.l.b16 %v1443
      %v2472 = vunpack.c.l.b16 %v1444
      %v2473 = vunpack.c.l.b16 %v1445
      %v2474 = vunpack.c.l.b16 %v1446
      %v2475 = vunpack.c.l.b16 %v1447
      %v2476 = vunpack.c.l.b16 %v1448
      %v2477 = vunpack.c.l.b16 %v1449
      %v2478 = vunpack.c.l.b16 %v1450
      %v2479 = vunpack.c.l.b16 %v1451
      %v2480 = vunpack.c.l.b16 %v1452
      %v2481 = vunpack.c.l.b16 %v1453
      %v2482 = vunpack.c.l.b16 %v1454
      %v2483 = vunpack.c.l.b16 %v1455
      %v2484 = vunpack.c.l.b16 %v1456
      %v2485 = vunpack.c.l.b16 %v1457
      %v2486 = vunpack.c.l.b16 %v1458
      %v2487 = vunpack.c.l.b16 %v1459
      %v2488 = vunpack.c.l.b16 %v1460
      %v2489 = vunpack.c.l.b16 %v1461
      %v2490 = vunpack.c.l.b16 %v1462
      %v2491 = vunpack.c.l.b16 %v1463
      %v2492 = vunpack.c.l.b16 %v1464
      %v2493 = vunpack.c.l.b16 %v1465
      %v2494 = vunpack.c.l.b16 %v1466
      %v2495 = vunpack.c.l.b16 %v1467
      %v2496 = vunpack.c.l.b16 %v1468
      %v2497 = vunpack.c.l.b16 %v1469
      %v2498 = vunpack.c.l.b16 %v1470
      %v2499 = vunpack.c.l.b16 %v1471
      %v2500 = vunpack.c.l.b16 %v1472
      %v2501 = vunpack.c.l.b16 %v1473
      %v2502 = vunpack.c.l.b16 %v1474
      %v2503 = vunpack.c.l.b16 %v1475
      %v2504 = vunpack.c.l.b16 %v1476
      %v2505 = vunpack.c.l.b16 %v1477
      %v2506 = vunpack.c.l.b16 %v1478
      %v2507 = vunpack.c.l.b16 %v1479
      %v2508 = vunpack.c.l.b16 %v1480
      %v2509 = vunpack.c.l.b16 %v1481
      %v2510 = vunpack.c.l.b16 %v1482
      %v2511 = vunpack.c.l.b16 %v1483
      %v2512 = vunpack.c.l.b16 %v1484
      %v2513 = vunpack.c.l.b16 %v1485
      %v2514 = vunpack.c.l.b16 %v1486
      %v2515 = vunpack.c.l.b16 %v1487
      %v2516 = vunpack.c.l.b16 %v1488
      %v2517 = vunpack.c.l.b16 %v1489
      %v2518 = vunpack.c.l.b16 %v1490
      %v2519 = vunpack.c.l.b16 %v1491
      %v2520 = vunpack.c.l.b16 %v1492
      %v2521 = vunpack.c.l.b16 %v1493
      %v2522 = vunpack.c.l.b16 %v1494
      %v2523 = vunpack.c.l.b16 %v1495
      %v2524 = vunpack.c.l.b16 %v1496
      %v2525 = vunpack.c.l.b16 %v1497
      %v2526 = vunpack.c.l.b16 %v1498
      %v2527 = vunpack.c.l.b16 %v1499
      %v2528 = vunpack.c.l.b16 %v1500
      %v2529 = vunpack.c.l.b16 %v1501
      %v2530 = vunpack.c.l.b16 %v1502
      %v2531 = vunpack.c.l.b16 %v1503
      %v2532 = vunpack.c.l.b16 %v1504
      %v2533 = vunpack.c.l.b16 %v1505
      %v2534 = vunpack.c.l.b16 %v1506
      %v2535 = vunpack.c.l.b16 %v1507
      %v2536 = vunpack.c.l.b16 %v1508
      %v2537 = vunpack.c.l.b16 %v1509
      %v2538 = vunpack.c.l.b16 %v1510
      %v2539 = vunpack.c.l.b16 %v1511
      %v2540 = vunpack.c.l.b16 %v1512
      %v2541 = vunpack.c.l.b16 %v1513
      %v2542 = vunpack.c.l.b16 %v1514
      %v2543 = vunpack.c.l.b16 %v1515
      %v2544 = vunpack.c.l.b16 %v1516
      %v2545 = vunpack.c.l.b16 %v1517
      %v2546 = vunpack.c.l.b16 %v1518
      %v2547 = vunpack.c.l.b16 %v1519
      %v2548 = vunpack.c.l.b16 %v1520
      %v2549 = vpack.c.b16 %v2406, %v2405
      %v2550 = vpack.c.b16 %v2408, %v2407
      %v2551 = vpack.c.b16 %v2410, %v2409
      %v2552 = vpack.c.b16 %v2412, %v2411
      %v2553 = vpack.c.b16 %v2414, %v2413
      %v2554 = vpack.c.b16 %v2416, %v2415
      %v2555 = vpack.c.b16 %v2418, %v2417
      %v2556 = vpack.c.b16 %v2420, %v2419
      %v2557 = vpack.c.b16 %v2422, %v2421
      %v2558 = vpack.c.b16 %v2424, %v2423
      %v2559 = vpack.c.b16 %v2426, %v2425
      %v2560 = vpack.c.b16 %v2428, %v2427
      %v2561 = vpack.c.b16 %v2430, %v2429
      %v2562 = vpack.c.b16 %v2432, %v2431
      %v2563 = vpack.c.b16 %v2434, %v2433
      %v2564 = vpack.c.b16 %v2436, %v2435
      %v2565 = vpack.c.b16 %v2438, %v2437
      %v2566 = vpack.c.b16 %v2440, %v2439
      %v2567 = vpack.c.b16 %v2442, %v2441
      %v2568 = vpack.c.b16 %v2444, %v2443
      %v2569 = vpack.c.b16 %v2446, %v2445
      %v2570 = vpack.c.b16 %v2448, %v2447
      %v2571 = vpack.c.b16 %v2450, %v2449
      %v2572 = vpack.c.b16 %v2452, %v2451
      %v2573 = vpack.c.b16 %v2454, %v2453
      %v2574 = vpack.c.b16 %v2456, %v2455
      %v2575 = vpack.c.b16 %v2458, %v2457
      %v2576 = vpack.c.b16 %v2460, %v2459
      %v2577 = vpack.c.b16 %v2462, %v2461
      %v2578 = vpack.c.b16 %v2464, %v2463
      %v2579 = vpack.c.b16 %v2466, %v2465
      %v2580 = vpack.c.b16 %v2468, %v2467
      %v2581 = vpack.c.b16 %v2470, %v2469
      %v2582 = vpack.c.b16 %v2472, %v2471
      %v2583 = vpack.c.b16 %v2474, %v2473
      %v2584 = vpack.c.b16 %v2476, %v2475
      %v2585 = vpack.c.b16 %v2478, %v2477
      %v2586 = vpack.c.b16 %v2480, %v2479
      %v2587 = vpack.c.b16 %v2482, %v2481
      %v2588 = vpack.c.b16 %v2484, %v2483
      %v2589 = vpack.c.b16 %v2486, %v2485
      %v2590 = vpack.c.b16 %v2488, %v2487
      %v2591 = vpack.c.b16 %v2490, %v2489
      %v2592 = vpack.c.b16 %v2492, %v2491
      %v2593 = vpack.c.b16 %v2494, %v2493
      %v2594 = vpack.c.b16 %v2496, %v2495
      %v2595 = vpack.c.b16 %v2498, %v2497
      %v2596 = vpack.c.b16 %v2500, %v2499
      %v2597 = vpack.c.b16 %v2502, %v2501
      %v2598 = vpack.c.b16 %v2504, %v2503
      %v2599 = vpack.c.b16 %v2506, %v2505
      %v2600 = vpack.c.b16 %v2508, %v2507
      %v2601 = vpack.c.b16 %v2510, %v2509
      %v2602 = vpack.c.b16 %v2512, %v2511
      %v2603 = vpack.c.b16 %v2514, %v2513
      %v2604 = vpack.c.b16 %v2516, %v2515
      %v2605 = vpack.c.b16 %v2518, %v2517
      %v2606 = vpack.c.b16 %v2520, %v2519
      %v2607 = vpack.c.b16 %v2522, %v2521
      %v2608 = vpack.c.b16 %v2524, %v2523
      %v2609 = vpack.c.b16 %v2526, %v2525
      %v2610 = vpack.c.b16 %v2528, %v2527
      %v2611 = vpack.c.b16 %v2530, %v2529
      %v2612 = vpack.c.b16 %v2532, %v2531
      %v2613 = vpack.c.b16 %v2534, %v2533
      %v2614 = vpack.c.b16 %v2536, %v2535
      %v2615 = vpack.c.b16 %v2538, %v2537
      %v2616 = vpack.c.b16 %v2540, %v2539
      %v2617 = vpack.c.b16 %v2542, %v2541
      %v2618 = vpack.c.b16 %v2544, %v2543
      %v2619 = vpack.c.b16 %v2546, %v2545
      %v2620 = vpack.c.b16 %v2548, %v2547
      %2693 = vmatpush.bf16.msra.mxu0 %v2556
      %2694 = vmatpush.bf16.msra.mxu0 %v2555
      %2695 = vmatpush.bf16.msra.mxu0 %v2554
      %2696 = vmatpush.bf16.msra.mxu0 %v2553
      %2697 = vmatpush.bf16.msra.mxu0 %v2552
      %2698 = vmatpush.bf16.msra.mxu0 %v2551
      %2699 = vmatpush.bf16.msra.mxu0 %v2550
      %2700 = vmatpush.bf16.msra.mxu0 %v2549
      %2701 = vmatmul.bf16.gmra.mxu0 %v1973
      %v2702 = vpop.f32.mrf.mxu0
      %v2703 = vadd.f32 %v1523, %v2702
      %v2704 = vpop.f32.mrf.mxu0
      %v2705 = vadd.f32 %v1523, %v2704
      %2706 = vmatmul.bf16.gmra.mxu0 %v1982
      %v2707 = vpop.f32.mrf.mxu0
      %v2708 = vadd.f32 %v1523, %v2707
      %v2709 = vpop.f32.mrf.mxu0
      %v2710 = vadd.f32 %v1523, %v2709
      %2711 = vmatmul.bf16.gmra.mxu0 %v1991
      %v2712 = vpop.f32.mrf.mxu0
      %v2713 = vadd.f32 %v1523, %v2712
      %v2714 = vpop.f32.mrf.mxu0
      %v2715 = vadd.f32 %v1523, %v2714
      %2716 = vmatmul.bf16.gmra.mxu0 %v2000
      %v2717 = vpop.f32.mrf.mxu0
      %v2718 = vadd.f32 %v1523, %v2717
      %v2719 = vpop.f32.mrf.mxu0
      %v2720 = vadd.f32 %v1523, %v2719
      %2721 = vmatmul.bf16.gmra.mxu0 %v2009
      %v2722 = vpop.f32.mrf.mxu0
      %v2723 = vadd.f32 %v1523, %v2722
      %v2724 = vpop.f32.mrf.mxu0
      %v2725 = vadd.f32 %v1523, %v2724
      %2726 = vmatmul.bf16.gmra.mxu0 %v2018
      %v2727 = vpop.f32.mrf.mxu0
      %v2728 = vadd.f32 %v1523, %v2727
      %v2729 = vpop.f32.mrf.mxu0
      %v2730 = vadd.f32 %v1523, %v2729
      %2731 = vmatmul.bf16.gmra.mxu0 %v2027
      %v2732 = vpop.f32.mrf.mxu0
      %v2733 = vadd.f32 %v1523, %v2732
      %v2734 = vpop.f32.mrf.mxu0
      %v2735 = vadd.f32 %v1523, %v2734
      %2736 = vmatmul.bf16.gmra.mxu0 %v2036
      %v2737 = vpop.f32.mrf.mxu0
      %v2738 = vadd.f32 %v1523, %v2737
      %v2739 = vpop.f32.mrf.mxu0
      %v2740 = vadd.f32 %v1523, %v2739
      %2741 = vmatmul.bf16.gmra.mxu0 %v2045
      %v2742 = vpop.f32.mrf.mxu0
      %v2743 = vadd.f32 %v1523, %v2742
      %v2744 = vpop.f32.mrf.mxu0
      %v2745 = vadd.f32 %v1523, %v2744
      %2746 = vmatmul.bf16.gmra.mxu0 %v2054
      %v2747 = vpop.f32.mrf.mxu0
      %v2748 = vadd.f32 %v1523, %v2747
      %v2749 = vpop.f32.mrf.mxu0
      %v2750 = vadd.f32 %v1523, %v2749
      %2751 = vmatmul.bf16.gmra.mxu0 %v2063
      %v2752 = vpop.f32.mrf.mxu0
      %v2753 = vadd.f32 %v1523, %v2752
      %v2754 = vpop.f32.mrf.mxu0
      %v2755 = vadd.f32 %v1523, %v2754
      %2756 = vmatmul.bf16.gmra.mxu0 %v2072
      %v2757 = vpop.f32.mrf.mxu0
      %v2758 = vadd.f32 %v1523, %v2757
      %v2759 = vpop.f32.mrf.mxu0
      %v2760 = vadd.f32 %v1523, %v2759
      %2761 = vmatmul.bf16.gmra.mxu0 %v2081
      %v2762 = vpop.f32.mrf.mxu0
      %v2763 = vadd.f32 %v1523, %v2762
      %v2764 = vpop.f32.mrf.mxu0
      %v2765 = vadd.f32 %v1523, %v2764
      %2766 = vmatmul.bf16.gmra.mxu0 %v2090
      %v2767 = vpop.f32.mrf.mxu0
      %v2768 = vadd.f32 %v1523, %v2767
      %v2769 = vpop.f32.mrf.mxu0
      %v2770 = vadd.f32 %v1523, %v2769
      %2771 = vmatmul.bf16.gmra.mxu0 %v2099
      %v2772 = vpop.f32.mrf.mxu0
      %v2773 = vadd.f32 %v1523, %v2772
      %v2774 = vpop.f32.mrf.mxu0
      %v2775 = vadd.f32 %v1523, %v2774
      %2776 = vmatmul.bf16.gmra.mxu0 %v2108
      %v2777 = vpop.f32.mrf.mxu0
      %v2778 = vadd.f32 %v1523, %v2777
      %v2779 = vpop.f32.mrf.mxu0
      %v2780 = vadd.f32 %v1523, %v2779
      %2781 = vdwg.mxu0
      %2782 = vmatpush.bf16.msra.mxu0 %v2564
      %2783 = vmatpush.bf16.msra.mxu0 %v2563
      %2784 = vmatpush.bf16.msra.mxu0 %v2562
      %2785 = vmatpush.bf16.msra.mxu0 %v2561
      %2786 = vmatpush.bf16.msra.mxu0 %v2560
      %2787 = vmatpush.bf16.msra.mxu0 %v2559
      %2788 = vmatpush.bf16.msra.mxu0 %v2558
      %2789 = vmatpush.bf16.msra.mxu0 %v2557
      %2790 = vmatmul.bf16.gmra.mxu0 %v1974
      %v2791 = vpop.f32.mrf.mxu0
      %v2792 = vadd.f32 %v2703, %v2791
      %v2793 = vpop.f32.mrf.mxu0
      %v2794 = vadd.f32 %v2705, %v2793
      %2795 = vmatmul.bf16.gmra.mxu0 %v1983
      %v2796 = vpop.f32.mrf.mxu0
      %v2797 = vadd.f32 %v2708, %v2796
      %v2798 = vpop.f32.mrf.mxu0
      %v2799 = vadd.f32 %v2710, %v2798
      %2800 = vmatmul.bf16.gmra.mxu0 %v1992
      %v2801 = vpop.f32.mrf.mxu0
      %v2802 = vadd.f32 %v2713, %v2801
      %v2803 = vpop.f32.mrf.mxu0
      %v2804 = vadd.f32 %v2715, %v2803
      %2805 = vmatmul.bf16.gmra.mxu0 %v2001
      %v2806 = vpop.f32.mrf.mxu0
      %v2807 = vadd.f32 %v2718, %v2806
      %v2808 = vpop.f32.mrf.mxu0
      %v2809 = vadd.f32 %v2720, %v2808
      %2810 = vmatmul.bf16.gmra.mxu0 %v2010
      %v2811 = vpop.f32.mrf.mxu0
      %v2812 = vadd.f32 %v2723, %v2811
      %v2813 = vpop.f32.mrf.mxu0
      %v2814 = vadd.f32 %v2725, %v2813
      %2815 = vmatmul.bf16.gmra.mxu0 %v2019
      %v2816 = vpop.f32.mrf.mxu0
      %v2817 = vadd.f32 %v2728, %v2816
      %v2818 = vpop.f32.mrf.mxu0
      %v2819 = vadd.f32 %v2730, %v2818
      %2820 = vmatmul.bf16.gmra.mxu0 %v2028
      %v2821 = vpop.f32.mrf.mxu0
      %v2822 = vadd.f32 %v2733, %v2821
      %v2823 = vpop.f32.mrf.mxu0
      %v2824 = vadd.f32 %v2735, %v2823
      %2825 = vmatmul.bf16.gmra.mxu0 %v2037
      %v2826 = vpop.f32.mrf.mxu0
      %v2827 = vadd.f32 %v2738, %v2826
      %v2828 = vpop.f32.mrf.mxu0
      %v2829 = vadd.f32 %v2740, %v2828
      %2830 = vmatmul.bf16.gmra.mxu0 %v2046
      %v2831 = vpop.f32.mrf.mxu0
      %v2832 = vadd.f32 %v2743, %v2831
      %v2833 = vpop.f32.mrf.mxu0
      %v2834 = vadd.f32 %v2745, %v2833
      %2835 = vmatmul.bf16.gmra.mxu0 %v2055
      %v2836 = vpop.f32.mrf.mxu0
      %v2837 = vadd.f32 %v2748, %v2836
      %v2838 = vpop.f32.mrf.mxu0
      %v2839 = vadd.f32 %v2750, %v2838
      %2840 = vmatmul.bf16.gmra.mxu0 %v2064
      %v2841 = vpop.f32.mrf.mxu0
      %v2842 = vadd.f32 %v2753, %v2841
      %v2843 = vpop.f32.mrf.mxu0
      %v2844 = vadd.f32 %v2755, %v2843
      %2845 = vmatmul.bf16.gmra.mxu0 %v2073
      %v2846 = vpop.f32.mrf.mxu0
      %v2847 = vadd.f32 %v2758, %v2846
      %v2848 = vpop.f32.mrf.mxu0
      %v2849 = vadd.f32 %v2760, %v2848
      %2850 = vmatmul.bf16.gmra.mxu0 %v2082
      %v2851 = vpop.f32.mrf.mxu0
      %v2852 = vadd.f32 %v2763, %v2851
      %v2853 = vpop.f32.mrf.mxu0
      %v2854 = vadd.f32 %v2765, %v2853
      %2855 = vmatmul.bf16.gmra.mxu0 %v2091
      %v2856 = vpop.f32.mrf.mxu0
      %v2857 = vadd.f32 %v2768, %v2856
      %v2858 = vpop.f32.mrf.mxu0
      %v2859 = vadd.f32 %v2770, %v2858
      %2860 = vmatmul.bf16.gmra.mxu0 %v2100
      %v2861 = vpop.f32.mrf.mxu0
      %v2862 = vadd.f32 %v2773, %v2861
      %v2863 = vpop.f32.mrf.mxu0
      %v2864 = vadd.f32 %v2775, %v2863
      %2865 = vmatmul.bf16.gmra.mxu0 %v2109
      %v2866 = vpop.f32.mrf.mxu0
      %v2867 = vadd.f32 %v2778, %v2866
      %v2868 = vpop.f32.mrf.mxu0
      %v2869 = vadd.f32 %v2780, %v2868
      %2870 = vdwg.mxu0
      %2871 = vmatpush.bf16.msra.mxu0 %v2572
      %2872 = vmatpush.bf16.msra.mxu0 %v2571
      %2873 = vmatpush.bf16.msra.mxu0 %v2570
      %2874 = vmatpush.bf16.msra.mxu0 %v2569
      %2875 = vmatpush.bf16.msra.mxu0 %v2568
      %2876 = vmatpush.bf16.msra.mxu0 %v2567
      %2877 = vmatpush.bf16.msra.mxu0 %v2566
      %2878 = vmatpush.bf16.msra.mxu0 %v2565
      %2879 = vmatmul.bf16.gmra.mxu0 %v1975
      %v2880 = vpop.f32.mrf.mxu0
      %v2881 = vadd.f32 %v2792, %v2880
      %v2882 = vpop.f32.mrf.mxu0
      %v2883 = vadd.f32 %v2794, %v2882
      %2884 = vmatmul.bf16.gmra.mxu0 %v1984
      %v2885 = vpop.f32.mrf.mxu0
      %v2886 = vadd.f32 %v2797, %v2885
      %v2887 = vpop.f32.mrf.mxu0
      %v2888 = vadd.f32 %v2799, %v2887
      %2889 = vmatmul.bf16.gmra.mxu0 %v1993
      %v2890 = vpop.f32.mrf.mxu0
      %v2891 = vadd.f32 %v2802, %v2890
      %v2892 = vpop.f32.mrf.mxu0
      %v2893 = vadd.f32 %v2804, %v2892
      %2894 = vmatmul.bf16.gmra.mxu0 %v2002
      %v2895 = vpop.f32.mrf.mxu0
      %v2896 = vadd.f32 %v2807, %v2895
      %v2897 = vpop.f32.mrf.mxu0
      %v2898 = vadd.f32 %v2809, %v2897
      %2899 = vmatmul.bf16.gmra.mxu0 %v2011
      %v2900 = vpop.f32.mrf.mxu0
      %v2901 = vadd.f32 %v2812, %v2900
      %v2902 = vpop.f32.mrf.mxu0
      %v2903 = vadd.f32 %v2814, %v2902
      %2904 = vmatmul.bf16.gmra.mxu0 %v2020
      %v2905 = vpop.f32.mrf.mxu0
      %v2906 = vadd.f32 %v2817, %v2905
      %v2907 = vpop.f32.mrf.mxu0
      %v2908 = vadd.f32 %v2819, %v2907
      %2909 = vmatmul.bf16.gmra.mxu0 %v2029
      %v2910 = vpop.f32.mrf.mxu0
      %v2911 = vadd.f32 %v2822, %v2910
      %v2912 = vpop.f32.mrf.mxu0
      %v2913 = vadd.f32 %v2824, %v2912
      %2914 = vmatmul.bf16.gmra.mxu0 %v2038
      %v2915 = vpop.f32.mrf.mxu0
      %v2916 = vadd.f32 %v2827, %v2915
      %v2917 = vpop.f32.mrf.mxu0
      %v2918 = vadd.f32 %v2829, %v2917
      %2919 = vmatmul.bf16.gmra.mxu0 %v2047
      %v2920 = vpop.f32.mrf.mxu0
      %v2921 = vadd.f32 %v2832, %v2920
      %v2922 = vpop.f32.mrf.mxu0
      %v2923 = vadd.f32 %v2834, %v2922
      %2924 = vmatmul.bf16.gmra.mxu0 %v2056
      %v2925 = vpop.f32.mrf.mxu0
      %v2926 = vadd.f32 %v2837, %v2925
      %v2927 = vpop.f32.mrf.mxu0
      %v2928 = vadd.f32 %v2839, %v2927
      %2929 = vmatmul.bf16.gmra.mxu0 %v2065
      %v2930 = vpop.f32.mrf.mxu0
      %v2931 = vadd.f32 %v2842, %v2930
      %v2932 = vpop.f32.mrf.mxu0
      %v2933 = vadd.f32 %v2844, %v2932
      %2934 = vmatmul.bf16.gmra.mxu0 %v2074
      %v2935 = vpop.f32.mrf.mxu0
      %v2936 = vadd.f32 %v2847, %v2935
      %v2937 = vpop.f32.mrf.mxu0
      %v2938 = vadd.f32 %v2849, %v2937
      %2939 = vmatmul.bf16.gmra.mxu0 %v2083
      %v2940 = vpop.f32.mrf.mxu0
      %v2941 = vadd.f32 %v2852, %v2940
      %v2942 = vpop.f32.mrf.mxu0
      %v2943 = vadd.f32 %v2854, %v2942
      %2944 = vmatmul.bf16.gmra.mxu0 %v2092
      %v2945 = vpop.f32.mrf.mxu0
      %v2946 = vadd.f32 %v2857, %v2945
      %v2947 = vpop.f32.mrf.mxu0
      %v2948 = vadd.f32 %v2859, %v2947
      %2949 = vmatmul.bf16.gmra.mxu0 %v2101
      %v2950 = vpop.f32.mrf.mxu0
      %v2951 = vadd.f32 %v2862, %v2950
      %v2952 = vpop.f32.mrf.mxu0
      %v2953 = vadd.f32 %v2864, %v2952
      %2954 = vmatmul.bf16.gmra.mxu0 %v2110
      %v2955 = vpop.f32.mrf.mxu0
      %v2956 = vadd.f32 %v2867, %v2955
      %v2957 = vpop.f32.mrf.mxu0
      %v2958 = vadd.f32 %v2869, %v2957
      %2959 = vdwg.mxu0
      %2960 = vmatpush.bf16.msra.mxu0 %v2580
      %2961 = vmatpush.bf16.msra.mxu0 %v2579
      %2962 = vmatpush.bf16.msra.mxu0 %v2578
      %2963 = vmatpush.bf16.msra.mxu0 %v2577
      %2964 = vmatpush.bf16.msra.mxu0 %v2576
      %2965 = vmatpush.bf16.msra.mxu0 %v2575
      %2966 = vmatpush.bf16.msra.mxu0 %v2574
      %2967 = vmatpush.bf16.msra.mxu0 %v2573
      %2968 = vmatmul.bf16.gmra.mxu0 %v1976
      %v2969 = vpop.f32.mrf.mxu0
      %v2970 = vadd.f32 %v2881, %v2969
      %v2971 = vpop.f32.mrf.mxu0
      %v2972 = vadd.f32 %v2883, %v2971
      %2973 = vmatmul.bf16.gmra.mxu0 %v1985
      %v2974 = vpop.f32.mrf.mxu0
      %v2975 = vadd.f32 %v2886, %v2974
      %v2976 = vpop.f32.mrf.mxu0
      %v2977 = vadd.f32 %v2888, %v2976
      %2978 = vmatmul.bf16.gmra.mxu0 %v1994
      %v2979 = vpop.f32.mrf.mxu0
      %v2980 = vadd.f32 %v2891, %v2979
      %v2981 = vpop.f32.mrf.mxu0
      %v2982 = vadd.f32 %v2893, %v2981
      %2983 = vmatmul.bf16.gmra.mxu0 %v2003
      %v2984 = vpop.f32.mrf.mxu0
      %v2985 = vadd.f32 %v2896, %v2984
      %v2986 = vpop.f32.mrf.mxu0
      %v2987 = vadd.f32 %v2898, %v2986
      %2988 = vmatmul.bf16.gmra.mxu0 %v2012
      %v2989 = vpop.f32.mrf.mxu0
      %v2990 = vadd.f32 %v2901, %v2989
      %v2991 = vpop.f32.mrf.mxu0
      %v2992 = vadd.f32 %v2903, %v2991
      %2993 = vmatmul.bf16.gmra.mxu0 %v2021
      %v2994 = vpop.f32.mrf.mxu0
      %v2995 = vadd.f32 %v2906, %v2994
      %v2996 = vpop.f32.mrf.mxu0
      %v2997 = vadd.f32 %v2908, %v2996
      %2998 = vmatmul.bf16.gmra.mxu0 %v2030
      %v2999 = vpop.f32.mrf.mxu0
      %v3000 = vadd.f32 %v2911, %v2999
      %v3001 = vpop.f32.mrf.mxu0
      %v3002 = vadd.f32 %v2913, %v3001
      %3003 = vmatmul.bf16.gmra.mxu0 %v2039
      %v3004 = vpop.f32.mrf.mxu0
      %v3005 = vadd.f32 %v2916, %v3004
      %v3006 = vpop.f32.mrf.mxu0
      %v3007 = vadd.f32 %v2918, %v3006
      %3008 = vmatmul.bf16.gmra.mxu0 %v2048
      %v3009 = vpop.f32.mrf.mxu0
      %v3010 = vadd.f32 %v2921, %v3009
      %v3011 = vpop.f32.mrf.mxu0
      %v3012 = vadd.f32 %v2923, %v3011
      %3013 = vmatmul.bf16.gmra.mxu0 %v2057
      %v3014 = vpop.f32.mrf.mxu0
      %v3015 = vadd.f32 %v2926, %v3014
      %v3016 = vpop.f32.mrf.mxu0
      %v3017 = vadd.f32 %v2928, %v3016
      %3018 = vmatmul.bf16.gmra.mxu0 %v2066
      %v3019 = vpop.f32.mrf.mxu0
      %v3020 = vadd.f32 %v2931, %v3019
      %v3021 = vpop.f32.mrf.mxu0
      %v3022 = vadd.f32 %v2933, %v3021
      %3023 = vmatmul.bf16.gmra.mxu0 %v2075
      %v3024 = vpop.f32.mrf.mxu0
      %v3025 = vadd.f32 %v2936, %v3024
      %v3026 = vpop.f32.mrf.mxu0
      %v3027 = vadd.f32 %v2938, %v3026
      %3028 = vmatmul.bf16.gmra.mxu0 %v2084
      %v3029 = vpop.f32.mrf.mxu0
      %v3030 = vadd.f32 %v2941, %v3029
      %v3031 = vpop.f32.mrf.mxu0
      %v3032 = vadd.f32 %v2943, %v3031
      %3033 = vmatmul.bf16.gmra.mxu0 %v2093
      %v3034 = vpop.f32.mrf.mxu0
      %v3035 = vadd.f32 %v2946, %v3034
      %v3036 = vpop.f32.mrf.mxu0
      %v3037 = vadd.f32 %v2948, %v3036
      %3038 = vmatmul.bf16.gmra.mxu0 %v2102
      %v3039 = vpop.f32.mrf.mxu0
      %v3040 = vadd.f32 %v2951, %v3039
      %v3041 = vpop.f32.mrf.mxu0
      %v3042 = vadd.f32 %v2953, %v3041
      %3043 = vmatmul.bf16.gmra.mxu0 %v2111
      %v3044 = vpop.f32.mrf.mxu0
      %v3045 = vadd.f32 %v2956, %v3044
      %v3046 = vpop.f32.mrf.mxu0
      %v3047 = vadd.f32 %v2958, %v3046
      %3048 = vdwg.mxu0
      %3049 = vmatpush.bf16.msra.mxu0 %v2588
      %3050 = vmatpush.bf16.msra.mxu0 %v2587
      %3051 = vmatpush.bf16.msra.mxu0 %v2586
      %3052 = vmatpush.bf16.msra.mxu0 %v2585
      %3053 = vmatpush.bf16.msra.mxu0 %v2584
      %3054 = vmatpush.bf16.msra.mxu0 %v2583
      %3055 = vmatpush.bf16.msra.mxu0 %v2582
      %3056 = vmatpush.bf16.msra.mxu0 %v2581
      %3057 = vmatmul.bf16.gmra.mxu0 %v1977
      %v3058 = vpop.f32.mrf.mxu0
      %v3059 = vadd.f32 %v2970, %v3058
      %v3060 = vpop.f32.mrf.mxu0
      %v3061 = vadd.f32 %v2972, %v3060
      %3062 = vmatmul.bf16.gmra.mxu0 %v1986
      %v3063 = vpop.f32.mrf.mxu0
      %v3064 = vadd.f32 %v2975, %v3063
      %v3065 = vpop.f32.mrf.mxu0
      %v3066 = vadd.f32 %v2977, %v3065
      %3067 = vmatmul.bf16.gmra.mxu0 %v1995
      %v3068 = vpop.f32.mrf.mxu0
      %v3069 = vadd.f32 %v2980, %v3068
      %v3070 = vpop.f32.mrf.mxu0
      %v3071 = vadd.f32 %v2982, %v3070
      %3072 = vmatmul.bf16.gmra.mxu0 %v2004
      %v3073 = vpop.f32.mrf.mxu0
      %v3074 = vadd.f32 %v2985, %v3073
      %v3075 = vpop.f32.mrf.mxu0
      %v3076 = vadd.f32 %v2987, %v3075
      %3077 = vmatmul.bf16.gmra.mxu0 %v2013
      %v3078 = vpop.f32.mrf.mxu0
      %v3079 = vadd.f32 %v2990, %v3078
      %v3080 = vpop.f32.mrf.mxu0
      %v3081 = vadd.f32 %v2992, %v3080
      %3082 = vmatmul.bf16.gmra.mxu0 %v2022
      %v3083 = vpop.f32.mrf.mxu0
      %v3084 = vadd.f32 %v2995, %v3083
      %v3085 = vpop.f32.mrf.mxu0
      %v3086 = vadd.f32 %v2997, %v3085
      %3087 = vmatmul.bf16.gmra.mxu0 %v2031
      %v3088 = vpop.f32.mrf.mxu0
      %v3089 = vadd.f32 %v3000, %v3088
      %v3090 = vpop.f32.mrf.mxu0
      %v3091 = vadd.f32 %v3002, %v3090
      %3092 = vmatmul.bf16.gmra.mxu0 %v2040
      %v3093 = vpop.f32.mrf.mxu0
      %v3094 = vadd.f32 %v3005, %v3093
      %v3095 = vpop.f32.mrf.mxu0
      %v3096 = vadd.f32 %v3007, %v3095
      %3097 = vmatmul.bf16.gmra.mxu0 %v2049
      %v3098 = vpop.f32.mrf.mxu0
      %v3099 = vadd.f32 %v3010, %v3098
      %v3100 = vpop.f32.mrf.mxu0
      %v3101 = vadd.f32 %v3012, %v3100
      %3102 = vmatmul.bf16.gmra.mxu0 %v2058
      %v3103 = vpop.f32.mrf.mxu0
      %v3104 = vadd.f32 %v3015, %v3103
      %v3105 = vpop.f32.mrf.mxu0
      %v3106 = vadd.f32 %v3017, %v3105
      %3107 = vmatmul.bf16.gmra.mxu0 %v2067
      %v3108 = vpop.f32.mrf.mxu0
      %v3109 = vadd.f32 %v3020, %v3108
      %v3110 = vpop.f32.mrf.mxu0
      %v3111 = vadd.f32 %v3022, %v3110
      %3112 = vmatmul.bf16.gmra.mxu0 %v2076
      %v3113 = vpop.f32.mrf.mxu0
      %v3114 = vadd.f32 %v3025, %v3113
      %v3115 = vpop.f32.mrf.mxu0
      %v3116 = vadd.f32 %v3027, %v3115
      %3117 = vmatmul.bf16.gmra.mxu0 %v2085
      %v3118 = vpop.f32.mrf.mxu0
      %v3119 = vadd.f32 %v3030, %v3118
      %v3120 = vpop.f32.mrf.mxu0
      %v3121 = vadd.f32 %v3032, %v3120
      %3122 = vmatmul.bf16.gmra.mxu0 %v2094
      %v3123 = vpop.f32.mrf.mxu0
      %v3124 = vadd.f32 %v3035, %v3123
      %v3125 = vpop.f32.mrf.mxu0
      %v3126 = vadd.f32 %v3037, %v3125
      %3127 = vmatmul.bf16.gmra.mxu0 %v2103
      %v3128 = vpop.f32.mrf.mxu0
      %v3129 = vadd.f32 %v3040, %v3128
      %v3130 = vpop.f32.mrf.mxu0
      %v3131 = vadd.f32 %v3042, %v3130
      %3132 = vmatmul.bf16.gmra.mxu0 %v2112
      %v3133 = vpop.f32.mrf.mxu0
      %v3134 = vadd.f32 %v3045, %v3133
      %v3135 = vpop.f32.mrf.mxu0
      %v3136 = vadd.f32 %v3047, %v3135
      %3137 = vdwg.mxu0
      %3138 = vmatpush.bf16.msra.mxu0 %v2596
      %3139 = vmatpush.bf16.msra.mxu0 %v2595
      %3140 = vmatpush.bf16.msra.mxu0 %v2594
      %3141 = vmatpush.bf16.msra.mxu0 %v2593
      %3142 = vmatpush.bf16.msra.mxu0 %v2592
      %3143 = vmatpush.bf16.msra.mxu0 %v2591
      %3144 = vmatpush.bf16.msra.mxu0 %v2590
      %3145 = vmatpush.bf16.msra.mxu0 %v2589
      %3146 = vmatmul.bf16.gmra.mxu0 %v1978
      %v3147 = vpop.f32.mrf.mxu0
      %v3148 = vadd.f32 %v3059, %v3147
      %v3149 = vpop.f32.mrf.mxu0
      %v3150 = vadd.f32 %v3061, %v3149
      %3151 = vmatmul.bf16.gmra.mxu0 %v1987
      %v3152 = vpop.f32.mrf.mxu0
      %v3153 = vadd.f32 %v3064, %v3152
      %v3154 = vpop.f32.mrf.mxu0
      %v3155 = vadd.f32 %v3066, %v3154
      %3156 = vmatmul.bf16.gmra.mxu0 %v1996
      %v3157 = vpop.f32.mrf.mxu0
      %v3158 = vadd.f32 %v3069, %v3157
      %v3159 = vpop.f32.mrf.mxu0
      %v3160 = vadd.f32 %v3071, %v3159
      %3161 = vmatmul.bf16.gmra.mxu0 %v2005
      %v3162 = vpop.f32.mrf.mxu0
      %v3163 = vadd.f32 %v3074, %v3162
      %v3164 = vpop.f32.mrf.mxu0
      %v3165 = vadd.f32 %v3076, %v3164
      %3166 = vmatmul.bf16.gmra.mxu0 %v2014
      %v3167 = vpop.f32.mrf.mxu0
      %v3168 = vadd.f32 %v3079, %v3167
      %v3169 = vpop.f32.mrf.mxu0
      %v3170 = vadd.f32 %v3081, %v3169
      %3171 = vmatmul.bf16.gmra.mxu0 %v2023
      %v3172 = vpop.f32.mrf.mxu0
      %v3173 = vadd.f32 %v3084, %v3172
      %v3174 = vpop.f32.mrf.mxu0
      %v3175 = vadd.f32 %v3086, %v3174
      %3176 = vmatmul.bf16.gmra.mxu0 %v2032
      %v3177 = vpop.f32.mrf.mxu0
      %v3178 = vadd.f32 %v3089, %v3177
      %v3179 = vpop.f32.mrf.mxu0
      %v3180 = vadd.f32 %v3091, %v3179
      %3181 = vmatmul.bf16.gmra.mxu0 %v2041
      %v3182 = vpop.f32.mrf.mxu0
      %v3183 = vadd.f32 %v3094, %v3182
      %v3184 = vpop.f32.mrf.mxu0
      %v3185 = vadd.f32 %v3096, %v3184
      %3186 = vmatmul.bf16.gmra.mxu0 %v2050
      %v3187 = vpop.f32.mrf.mxu0
      %v3188 = vadd.f32 %v3099, %v3187
      %v3189 = vpop.f32.mrf.mxu0
      %v3190 = vadd.f32 %v3101, %v3189
      %3191 = vmatmul.bf16.gmra.mxu0 %v2059
      %v3192 = vpop.f32.mrf.mxu0
      %v3193 = vadd.f32 %v3104, %v3192
      %v3194 = vpop.f32.mrf.mxu0
      %v3195 = vadd.f32 %v3106, %v3194
      %3196 = vmatmul.bf16.gmra.mxu0 %v2068
      %v3197 = vpop.f32.mrf.mxu0
      %v3198 = vadd.f32 %v3109, %v3197
      %v3199 = vpop.f32.mrf.mxu0
      %v3200 = vadd.f32 %v3111, %v3199
      %3201 = vmatmul.bf16.gmra.mxu0 %v2077
      %v3202 = vpop.f32.mrf.mxu0
      %v3203 = vadd.f32 %v3114, %v3202
      %v3204 = vpop.f32.mrf.mxu0
      %v3205 = vadd.f32 %v3116, %v3204
      %3206 = vmatmul.bf16.gmra.mxu0 %v2086
      %v3207 = vpop.f32.mrf.mxu0
      %v3208 = vadd.f32 %v3119, %v3207
      %v3209 = vpop.f32.mrf.mxu0
      %v3210 = vadd.f32 %v3121, %v3209
      %3211 = vmatmul.bf16.gmra.mxu0 %v2095
      %v3212 = vpop.f32.mrf.mxu0
      %v3213 = vadd.f32 %v3124, %v3212
      %v3214 = vpop.f32.mrf.mxu0
      %v3215 = vadd.f32 %v3126, %v3214
      %3216 = vmatmul.bf16.gmra.mxu0 %v2104
      %v3217 = vpop.f32.mrf.mxu0
      %v3218 = vadd.f32 %v3129, %v3217
      %v3219 = vpop.f32.mrf.mxu0
      %v3220 = vadd.f32 %v3131, %v3219
      %3221 = vmatmul.bf16.gmra.mxu0 %v2113
      %v3222 = vpop.f32.mrf.mxu0
      %v3223 = vadd.f32 %v3134, %v3222
      %v3224 = vpop.f32.mrf.mxu0
      %v3225 = vadd.f32 %v3136, %v3224
      %3226 = vdwg.mxu0
      %3227 = vmatpush.bf16.msra.mxu0 %v2604
      %3228 = vmatpush.bf16.msra.mxu0 %v2603
      %3229 = vmatpush.bf16.msra.mxu0 %v2602
      %3230 = vmatpush.bf16.msra.mxu0 %v2601
      %3231 = vmatpush.bf16.msra.mxu0 %v2600
      %3232 = vmatpush.bf16.msra.mxu0 %v2599
      %3233 = vmatpush.bf16.msra.mxu0 %v2598
      %3234 = vmatpush.bf16.msra.mxu0 %v2597
      %3235 = vmatmul.bf16.gmra.mxu0 %v1979
      %v3236 = vpop.f32.mrf.mxu0
      %v3237 = vadd.f32 %v3148, %v3236
      %v3238 = vpop.f32.mrf.mxu0
      %v3239 = vadd.f32 %v3150, %v3238
      %3240 = vmatmul.bf16.gmra.mxu0 %v1988
      %v3241 = vpop.f32.mrf.mxu0
      %v3242 = vadd.f32 %v3153, %v3241
      %v3243 = vpop.f32.mrf.mxu0
      %v3244 = vadd.f32 %v3155, %v3243
      %3245 = vmatmul.bf16.gmra.mxu0 %v1997
      %v3246 = vpop.f32.mrf.mxu0
      %v3247 = vadd.f32 %v3158, %v3246
      %v3248 = vpop.f32.mrf.mxu0
      %v3249 = vadd.f32 %v3160, %v3248
      %3250 = vmatmul.bf16.gmra.mxu0 %v2006
      %v3251 = vpop.f32.mrf.mxu0
      %v3252 = vadd.f32 %v3163, %v3251
      %v3253 = vpop.f32.mrf.mxu0
      %v3254 = vadd.f32 %v3165, %v3253
      %3255 = vmatmul.bf16.gmra.mxu0 %v2015
      %v3256 = vpop.f32.mrf.mxu0
      %v3257 = vadd.f32 %v3168, %v3256
      %v3258 = vpop.f32.mrf.mxu0
      %v3259 = vadd.f32 %v3170, %v3258
      %3260 = vmatmul.bf16.gmra.mxu0 %v2024
      %v3261 = vpop.f32.mrf.mxu0
      %v3262 = vadd.f32 %v3173, %v3261
      %v3263 = vpop.f32.mrf.mxu0
      %v3264 = vadd.f32 %v3175, %v3263
      %3265 = vmatmul.bf16.gmra.mxu0 %v2033
      %v3266 = vpop.f32.mrf.mxu0
      %v3267 = vadd.f32 %v3178, %v3266
      %v3268 = vpop.f32.mrf.mxu0
      %v3269 = vadd.f32 %v3180, %v3268
      %3270 = vmatmul.bf16.gmra.mxu0 %v2042
      %v3271 = vpop.f32.mrf.mxu0
      %v3272 = vadd.f32 %v3183, %v3271
      %v3273 = vpop.f32.mrf.mxu0
      %v3274 = vadd.f32 %v3185, %v3273
      %3275 = vmatmul.bf16.gmra.mxu0 %v2051
      %v3276 = vpop.f32.mrf.mxu0
      %v3277 = vadd.f32 %v3188, %v3276
      %v3278 = vpop.f32.mrf.mxu0
      %v3279 = vadd.f32 %v3190, %v3278
      %3280 = vmatmul.bf16.gmra.mxu0 %v2060
      %v3281 = vpop.f32.mrf.mxu0
      %v3282 = vadd.f32 %v3193, %v3281
      %v3283 = vpop.f32.mrf.mxu0
      %v3284 = vadd.f32 %v3195, %v3283
      %3285 = vmatmul.bf16.gmra.mxu0 %v2069
      %v3286 = vpop.f32.mrf.mxu0
      %v3287 = vadd.f32 %v3198, %v3286
      %v3288 = vpop.f32.mrf.mxu0
      %v3289 = vadd.f32 %v3200, %v3288
      %3290 = vmatmul.bf16.gmra.mxu0 %v2078
      %v3291 = vpop.f32.mrf.mxu0
      %v3292 = vadd.f32 %v3203, %v3291
      %v3293 = vpop.f32.mrf.mxu0
      %v3294 = vadd.f32 %v3205, %v3293
      %3295 = vmatmul.bf16.gmra.mxu0 %v2087
      %v3296 = vpop.f32.mrf.mxu0
      %v3297 = vadd.f32 %v3208, %v3296
      %v3298 = vpop.f32.mrf.mxu0
      %v3299 = vadd.f32 %v3210, %v3298
      %3300 = vmatmul.bf16.gmra.mxu0 %v2096
      %v3301 = vpop.f32.mrf.mxu0
      %v3302 = vadd.f32 %v3213, %v3301
      %v3303 = vpop.f32.mrf.mxu0
      %v3304 = vadd.f32 %v3215, %v3303
      %3305 = vmatmul.bf16.gmra.mxu0 %v2105
      %v3306 = vpop.f32.mrf.mxu0
      %v3307 = vadd.f32 %v3218, %v3306
      %v3308 = vpop.f32.mrf.mxu0
      %v3309 = vadd.f32 %v3220, %v3308
      %3310 = vmatmul.bf16.gmra.mxu0 %v2114
      %v3311 = vpop.f32.mrf.mxu0
      %v3312 = vadd.f32 %v3223, %v3311
      %v3313 = vpop.f32.mrf.mxu0
      %v3314 = vadd.f32 %v3225, %v3313
      %3315 = vdwg.mxu0
      %3316 = vmatpush.bf16.msra.mxu0 %v2612
      %3317 = vmatpush.bf16.msra.mxu0 %v2611
      %3318 = vmatpush.bf16.msra.mxu0 %v2610
      %3319 = vmatpush.bf16.msra.mxu0 %v2609
      %3320 = vmatpush.bf16.msra.mxu0 %v2608
      %3321 = vmatpush.bf16.msra.mxu0 %v2607
      %3322 = vmatpush.bf16.msra.mxu0 %v2606
      %3323 = vmatpush.bf16.msra.mxu0 %v2605
      %3324 = vmatmul.bf16.gmra.mxu0 %v1980
      %v3325 = vpop.f32.mrf.mxu0
      %v3326 = vadd.f32 %v3237, %v3325
      %v3327 = vpop.f32.mrf.mxu0
      %v3328 = vadd.f32 %v3239, %v3327
      %3329 = vmatmul.bf16.gmra.mxu0 %v1989
      %v3330 = vpop.f32.mrf.mxu0
      %v3331 = vadd.f32 %v3242, %v3330
      %v3332 = vpop.f32.mrf.mxu0
      %v3333 = vadd.f32 %v3244, %v3332
      %3334 = vmatmul.bf16.gmra.mxu0 %v1998
      %v3335 = vpop.f32.mrf.mxu0
      %v3336 = vadd.f32 %v3247, %v3335
      %v3337 = vpop.f32.mrf.mxu0
      %v3338 = vadd.f32 %v3249, %v3337
      %3339 = vmatmul.bf16.gmra.mxu0 %v2007
      %v3340 = vpop.f32.mrf.mxu0
      %v3341 = vadd.f32 %v3252, %v3340
      %v3342 = vpop.f32.mrf.mxu0
      %v3343 = vadd.f32 %v3254, %v3342
      %3344 = vmatmul.bf16.gmra.mxu0 %v2016
      %v3345 = vpop.f32.mrf.mxu0
      %v3346 = vadd.f32 %v3257, %v3345
      %v3347 = vpop.f32.mrf.mxu0
      %v3348 = vadd.f32 %v3259, %v3347
      %3349 = vmatmul.bf16.gmra.mxu0 %v2025
      %v3350 = vpop.f32.mrf.mxu0
      %v3351 = vadd.f32 %v3262, %v3350
      %v3352 = vpop.f32.mrf.mxu0
      %v3353 = vadd.f32 %v3264, %v3352
      %3354 = vmatmul.bf16.gmra.mxu0 %v2034
      %v3355 = vpop.f32.mrf.mxu0
      %v3356 = vadd.f32 %v3267, %v3355
      %v3357 = vpop.f32.mrf.mxu0
      %v3358 = vadd.f32 %v3269, %v3357
      %3359 = vmatmul.bf16.gmra.mxu0 %v2043
      %v3360 = vpop.f32.mrf.mxu0
      %v3361 = vadd.f32 %v3272, %v3360
      %v3362 = vpop.f32.mrf.mxu0
      %v3363 = vadd.f32 %v3274, %v3362
      %3364 = vmatmul.bf16.gmra.mxu0 %v2052
      %v3365 = vpop.f32.mrf.mxu0
      %v3366 = vadd.f32 %v3277, %v3365
      %v3367 = vpop.f32.mrf.mxu0
      %v3368 = vadd.f32 %v3279, %v3367
      %3369 = vmatmul.bf16.gmra.mxu0 %v2061
      %v3370 = vpop.f32.mrf.mxu0
      %v3371 = vadd.f32 %v3282, %v3370
      %v3372 = vpop.f32.mrf.mxu0
      %v3373 = vadd.f32 %v3284, %v3372
      %3374 = vmatmul.bf16.gmra.mxu0 %v2070
      %v3375 = vpop.f32.mrf.mxu0
      %v3376 = vadd.f32 %v3287, %v3375
      %v3377 = vpop.f32.mrf.mxu0
      %v3378 = vadd.f32 %v3289, %v3377
      %3379 = vmatmul.bf16.gmra.mxu0 %v2079
      %v3380 = vpop.f32.mrf.mxu0
      %v3381 = vadd.f32 %v3292, %v3380
      %v3382 = vpop.f32.mrf.mxu0
      %v3383 = vadd.f32 %v3294, %v3382
      %3384 = vmatmul.bf16.gmra.mxu0 %v2088
      %v3385 = vpop.f32.mrf.mxu0
      %v3386 = vadd.f32 %v3297, %v3385
      %v3387 = vpop.f32.mrf.mxu0
      %v3388 = vadd.f32 %v3299, %v3387
      %3389 = vmatmul.bf16.gmra.mxu0 %v2097
      %v3390 = vpop.f32.mrf.mxu0
      %v3391 = vadd.f32 %v3302, %v3390
      %v3392 = vpop.f32.mrf.mxu0
      %v3393 = vadd.f32 %v3304, %v3392
      %3394 = vmatmul.bf16.gmra.mxu0 %v2106
      %v3395 = vpop.f32.mrf.mxu0
      %v3396 = vadd.f32 %v3307, %v3395
      %v3397 = vpop.f32.mrf.mxu0
      %v3398 = vadd.f32 %v3309, %v3397
      %3399 = vmatmul.bf16.gmra.mxu0 %v2115
      %v3400 = vpop.f32.mrf.mxu0
      %v3401 = vadd.f32 %v3312, %v3400
      %v3402 = vpop.f32.mrf.mxu0
      %v3403 = vadd.f32 %v3314, %v3402
      %3404 = vdwg.mxu0
      %3405 = vmatpush.bf16.msra.mxu0 %v2620
      %3406 = vmatpush.bf16.msra.mxu0 %v2619
      %3407 = vmatpush.bf16.msra.mxu0 %v2618
      %3408 = vmatpush.bf16.msra.mxu0 %v2617
      %3409 = vmatpush.bf16.msra.mxu0 %v2616
      %3410 = vmatpush.bf16.msra.mxu0 %v2615
      %3411 = vmatpush.bf16.msra.mxu0 %v2614
      %3412 = vmatpush.bf16.msra.mxu0 %v2613
      %3413 = vmatmul.bf16.gmra.mxu0 %v1981
      %v3414 = vpop.f32.mrf.mxu0
      %v3415 = vadd.f32 %v3326, %v3414
      %v3416 = vpop.f32.mrf.mxu0
      %v3417 = vadd.f32 %v3328, %v3416
      %3418 = vmatmul.bf16.gmra.mxu0 %v1990
      %v3419 = vpop.f32.mrf.mxu0
      %v3420 = vadd.f32 %v3331, %v3419
      %v3421 = vpop.f32.mrf.mxu0
      %v3422 = vadd.f32 %v3333, %v3421
      %3423 = vmatmul.bf16.gmra.mxu0 %v1999
      %v3424 = vpop.f32.mrf.mxu0
      %v3425 = vadd.f32 %v3336, %v3424
      %v3426 = vpop.f32.mrf.mxu0
      %v3427 = vadd.f32 %v3338, %v3426
      %3428 = vmatmul.bf16.gmra.mxu0 %v2008
      %v3429 = vpop.f32.mrf.mxu0
      %v3430 = vadd.f32 %v3341, %v3429
      %v3431 = vpop.f32.mrf.mxu0
      %v3432 = vadd.f32 %v3343, %v3431
      %3433 = vmatmul.bf16.gmra.mxu0 %v2017
      %v3434 = vpop.f32.mrf.mxu0
      %v3435 = vadd.f32 %v3346, %v3434
      %v3436 = vpop.f32.mrf.mxu0
      %v3437 = vadd.f32 %v3348, %v3436
      %3438 = vmatmul.bf16.gmra.mxu0 %v2026
      %v3439 = vpop.f32.mrf.mxu0
      %v3440 = vadd.f32 %v3351, %v3439
      %v3441 = vpop.f32.mrf.mxu0
      %v3442 = vadd.f32 %v3353, %v3441
      %3443 = vmatmul.bf16.gmra.mxu0 %v2035
      %v3444 = vpop.f32.mrf.mxu0
      %v3445 = vadd.f32 %v3356, %v3444
      %v3446 = vpop.f32.mrf.mxu0
      %v3447 = vadd.f32 %v3358, %v3446
      %3448 = vmatmul.bf16.gmra.mxu0 %v2044
      %v3449 = vpop.f32.mrf.mxu0
      %v3450 = vadd.f32 %v3361, %v3449
      %v3451 = vpop.f32.mrf.mxu0
      %v3452 = vadd.f32 %v3363, %v3451
      %3453 = vmatmul.bf16.gmra.mxu0 %v2053
      %v3454 = vpop.f32.mrf.mxu0
      %v3455 = vadd.f32 %v3366, %v3454
      %v3456 = vpop.f32.mrf.mxu0
      %v3457 = vadd.f32 %v3368, %v3456
      %3458 = vmatmul.bf16.gmra.mxu0 %v2062
      %v3459 = vpop.f32.mrf.mxu0
      %v3460 = vadd.f32 %v3371, %v3459
      %v3461 = vpop.f32.mrf.mxu0
      %v3462 = vadd.f32 %v3373, %v3461
      %3463 = vmatmul.bf16.gmra.mxu0 %v2071
      %v3464 = vpop.f32.mrf.mxu0
      %v3465 = vadd.f32 %v3376, %v3464
      %v3466 = vpop.f32.mrf.mxu0
      %v3467 = vadd.f32 %v3378, %v3466
      %3468 = vmatmul.bf16.gmra.mxu0 %v2080
      %v3469 = vpop.f32.mrf.mxu0
      %v3470 = vadd.f32 %v3381, %v3469
      %v3471 = vpop.f32.mrf.mxu0
      %v3472 = vadd.f32 %v3383, %v3471
      %3473 = vmatmul.bf16.gmra.mxu0 %v2089
      %v3474 = vpop.f32.mrf.mxu0
      %v3475 = vadd.f32 %v3386, %v3474
      %v3476 = vpop.f32.mrf.mxu0
      %v3477 = vadd.f32 %v3388, %v3476
      %3478 = vmatmul.bf16.gmra.mxu0 %v2098
      %v3479 = vpop.f32.mrf.mxu0
      %v3480 = vadd.f32 %v3391, %v3479
      %v3481 = vpop.f32.mrf.mxu0
      %v3482 = vadd.f32 %v3393, %v3481
      %3483 = vmatmul.bf16.gmra.mxu0 %v2107
      %v3484 = vpop.f32.mrf.mxu0
      %v3485 = vadd.f32 %v3396, %v3484
      %v3486 = vpop.f32.mrf.mxu0
      %v3487 = vadd.f32 %v3398, %v3486
      %3488 = vmatmul.bf16.gmra.mxu0 %v2116
      %v3489 = vpop.f32.mrf.mxu0
      %v3490 = vadd.f32 %v3401, %v3489
      %v3491 = vpop.f32.mrf.mxu0
      %v3492 = vadd.f32 %v3403, %v3491
      %3493 = vdwg.mxu0
      %v3494 = vmax.f32 %v3415, 0.0
      %v3495 = vmax.f32 %v3417, 0.0
      %v3496 = vmax.f32 %v3420, 0.0
      %v3497 = vmax.f32 %v3422, 0.0
      %v3498 = vmax.f32 %v3425, 0.0
      %v3499 = vmax.f32 %v3427, 0.0
      %v3500 = vmax.f32 %v3430, 0.0
      %v3501 = vmax.f32 %v3432, 0.0
      %v3502 = vmax.f32 %v3435, 0.0
      %v3503 = vmax.f32 %v3437, 0.0
      %v3504 = vmax.f32 %v3440, 0.0
      %v3505 = vmax.f32 %v3442, 0.0
      %v3506 = vmax.f32 %v3445, 0.0
      %v3507 = vmax.f32 %v3447, 0.0
      %v3508 = vmax.f32 %v3450, 0.0
      %v3509 = vmax.f32 %v3452, 0.0
      %v3510 = vmax.f32 %v3455, 0.0
      %v3511 = vmax.f32 %v3457, 0.0
      %v3512 = vmax.f32 %v3460, 0.0
      %v3513 = vmax.f32 %v3462, 0.0
      %v3514 = vmax.f32 %v3465, 0.0
      %v3515 = vmax.f32 %v3467, 0.0
      %v3516 = vmax.f32 %v3470, 0.0
      %v3517 = vmax.f32 %v3472, 0.0
      %v3518 = vmax.f32 %v3475, 0.0
      %v3519 = vmax.f32 %v3477, 0.0
      %v3520 = vmax.f32 %v3480, 0.0
      %v3521 = vmax.f32 %v3482, 0.0
      %v3522 = vmax.f32 %v3485, 0.0
      %v3523 = vmax.f32 %v3487, 0.0
      %v3524 = vmax.f32 %v3490, 0.0
      %v3525 = vmax.f32 %v3492, 0.0
      %3526 = vst [vmem:[%s221] sm:$0xff] %v3494
      %3527 = vst [vmem:[%s221 + $0x8] sm:$0xff] %v3495
      %3528 = vst [vmem:[%s221 + $0x10] sm:$0xff] %v3496
      %3529 = vst [vmem:[%s221 + $0x18] sm:$0xff] %v3497
      %3530 = vst [vmem:[%s221 + $0x20] sm:$0xff] %v3498
      %3531 = vst [vmem:[%s221 + $0x28] sm:$0xff] %v3499
      %3532 = vst [vmem:[%s221 + $0x30] sm:$0xff] %v3500
      %3533 = vst [vmem:[%s221 + $0x38] sm:$0xff] %v3501
      %3534 = vst [vmem:[%s221 + $0x40] sm:$0xff] %v3502
      %3535 = vst [vmem:[%s221 + $0x48] sm:$0xff] %v3503
      %3536 = vst [vmem:[%s221 + $0x50] sm:$0xff] %v3504
      %3537 = vst [vmem:[%s221 + $0x58] sm:$0xff] %v3505
      %3538 = vst [vmem:[%s221 + $0x60] sm:$0xff] %v3506
      %3539 = vst [vmem:[%s221 + $0x68] sm:$0xff] %v3507
      %3540 = vst [vmem:[%s221 + $0x70] sm:$0xff] %v3508
      %3541 = vst [vmem:[%s221 + $0x78] sm:$0xff] %v3509
      %3542 = vst [vmem:[%s221 + $0x80] sm:$0xff] %v3510
      %3543 = vst [vmem:[%s221 + $0x88] sm:$0xff] %v3511
      %3544 = vst [vmem:[%s221 + $0x90] sm:$0xff] %v3512
      %3545 = vst [vmem:[%s221 + $0x98] sm:$0xff] %v3513
      %3546 = vst [vmem:[%s221 + $0xa0] sm:$0xff] %v3514
      %3547 = vst [vmem:[%s221 + $0xa8] sm:$0xff] %v3515
      %3548 = vst [vmem:[%s221 + $0xb0] sm:$0xff] %v3516
      %3549 = vst [vmem:[%s221 + $0xb8] sm:$0xff] %v3517
      %3550 = vst [vmem:[%s221 + $0xc0] sm:$0xff] %v3518
      %3551 = vst [vmem:[%s221 + $0xc8] sm:$0xff] %v3519
      %3552 = vst [vmem:[%s221 + $0xd0] sm:$0xff] %v3520
      %3553 = vst [vmem:[%s221 + $0xd8] sm:$0xff] %v3521
      %3554 = vst [vmem:[%s221 + $0xe0] sm:$0xff] %v3522
      %3555 = vst [vmem:[%s221 + $0xe8] sm:$0xff] %v3523
      %3556 = vst [vmem:[%s221 + $0xf0] sm:$0xff] %v3524
      %3557 = vst [vmem:[%s221 + $0xf8] sm:$0xff] %v3525
      %p3558 = scmp.lt.s32.totalorder %s18, 1
      %s3559 = scalar_select %p3558, %s18, 1
      %p3560 = scmp.lt.s32.totalorder %s19, 0
      %s3561 = scalar_select %p3560, %s19, 0
      %s3562 = smul.addr %s3559, 32
      %s3563 = sadd.s32 %s3561, %s3562
      %s3564 = smul.addr %s3563, 8
      %s3565 = scalar_lea.vmem %s3, %s3564
      // Predicated region
      $region37: #{hasp_module_apply.1} parent=31 // pred_check
        %p3566 = pneg %p124
      $region38: #{hasp_module_apply.1} parent=31 // pred_check_branch
        %3568 = sbr.rel (%p3566) target = $region40
      $region39: #{hasp_module_apply.1} parent=31 // pred_region
        _
      $region40: #{hasp_module_apply.1} parent=31 // pred_fallthru
        _
    $region32: #{hasp_module_apply.1} parent=5 // pred_fallthru
      _
    %p3569 = scmp.le.s32.totalorder 2, %s9
    // Predicated region
    $region41: #{hasp_module_apply.1} parent=5 // pred_check
      %p3570 = pneg %p3569
    $region42: #{hasp_module_apply.1} parent=5 // pred_check_branch
      %3572 = sbr.rel (%p3570) target = $region44
    $region43: #{hasp_module_apply.1} parent=5 // pred_region
      %s3573 = ssub.s32 %s9, 2
      // Predicated region
      $region45: #{hasp_module_apply.1} parent=43 // pred_check
        %p3574 = pneg %p130
      $region46: #{hasp_module_apply.1} parent=43 // pred_check_branch
        %3576 = sbr.rel (%p3574) target = $region48
      $region47: #{hasp_module_apply.1} parent=43 // pred_region
        %p3577 = scmp.lt.s32.totalorder %s20, 1
        %s3578 = scalar_select %p3577, %s20, 1
        %p3579 = scmp.lt.s32.totalorder %s21, 0
        %s3580 = scalar_select %p3579, %s21, 0
        %s3581 = smul.addr %s3578, 32
        %s3582 = sadd.s32 %s3580, %s3581
        %s3583 = smul.addr %s3582, 8
        %s3584 = scalar_lea.vmem %s3, %s3583
      $region48: #{hasp_module_apply.1} parent=43 // pred_fallthru
        _
    $region44: #{hasp_module_apply.1} parent=5 // pred_fallthru
      _
  $region6: #{hasp_module_apply.1} parent=0 // loop_footer
    %s13 = sadd.s32 1, %s9
  $region7: #{hasp_module_apply.1} parent=0 // loop_footer_branch
    %8 = sbr.rel target = $region3
  $region8: #{hasp_module_apply.1} parent=0 // loop_exit
    _

</llo_original>
